<compile_context>
chip_gen: v6e
topology: v6e:2x2x1
jax: 0.10.0
libtpu: 0.0.40
codegen_flags: <defaults>
</compile_context>

<pallas_src>
import jax
import jax.numpy as jnp
from jax.experimental import pallas as pl
from jax.experimental.pallas import tpu as pltpu


def attn_pool_kernel(x_ref, s_ref, fcw_ref, const_ref, out_ref):
    # x_ref    : (B_TILE*C, N)  natural NCHW slab, channel-major rows (only big DMA)
    # s_ref    : (N, N//C)      kron(I_{N/C}, cls_col) -> bug-compatible logits via MXU
    # fcw_ref  : (C, C)         PyTorch Linear weight (out, in)
    # const_ref: (C, 1)         fc_w @ cls + fc_b + cls  (host-folded epilogue)
    # out_ref  : (B_TILE, C, 1)
    BT, C, _ = out_ref.shape
    _, N = x_ref.shape
    NC = N // C

    X = x_ref[...]            # (BT*C, N)  single read of the tile
    S = s_ref[...]            # (N, NC)    resident across grid steps
    fcw = fcw_ref[...]        # (C, C)
    const = const_ref[...]    # (C, 1)

    # One MXU matmul for the whole sub-batch:
    # logits[b*C + c, j] == (x.view(-1, C) @ cls)[b*N + c*NC + j]
    logits = jnp.dot(X, S, preferred_element_type=jnp.float32)   # (BT*C, NC)

    for b in range(BT):                       # static unroll over the sub-batch
        lg = logits[b * C:(b + 1) * C, :]     # (C, NC)  static sublane slice
        xb = X[b * C:(b + 1) * C, :]          # (C, N)

        # Per-batch safe softmax (unnormalized; 1/sum folded in after pooling).
        m = jnp.max(lg, axis=1, keepdims=True)
        m = jnp.max(m, axis=0, keepdims=True)                     # (1, 1)
        e = jnp.exp(lg - m)                                       # (C, NC)
        s = jnp.sum(e, axis=1, keepdims=True)
        s = jnp.sum(s, axis=0, keepdims=True)                     # (1, 1)

        # pooled[c'] = sum_q x[c', q] * e[q // NC, q % NC]
        # (the weight of flat-group q applies at spatial position q, per the
        #  original torch.bmm on x.view(B, C, -1)).  Static lane slices + VPU
        # multiply + lane reduction; no reshape / relayout needed.
        pooled = jnp.zeros((C, 1), jnp.float32)
        for c in range(C):
            seg = xb[:, c * NC:(c + 1) * NC]                      # (C, NC)
            w_row = e[c:c + 1, :]                                 # (1, NC)
            pooled = pooled + jnp.sum(seg * w_row, axis=1, keepdims=True)

        inv = 1.0 / s          # exact divide, once per batch element
        y = jnp.dot(fcw, pooled, preferred_element_type=jnp.float32) * inv + const
        out_ref[b] = y.astype(out_ref.dtype)


def attention_pooling(x, cls_vec, fc_w, fc_b, *, b_tile=8):
    B, C, H, W = x.shape
    N = H * W
    # TODO(synk): the kron-matmul logit path requires the bug-compatible
    # x.view(-1, C) groups to stay inside one channel row, i.e. C | H*W.
    assert N % C == 0, "kernel requires (H*W) % C == 0"
    NC = N // C

    b_tile = min(b_tile, B)
    grid_b = -(-B // b_tile)          # cdiv
    Bp = grid_b * b_tile

    # Natural contiguous view of x -- the single HBM read of the big tensor.
    x2 = x.reshape(B * C, N)
    if Bp != B:                        # pad batch to a multiple of b_tile
        x2 = jnp.pad(x2, ((0, (Bp - B) * C), (0, 0)))

    f32 = jnp.float32
    cls32 = cls_vec.astype(f32)
    # S[n, j] = cls[n - j*C] if j*C <= n < (j+1)*C else 0  (shape (N, N/C)).
    S = jnp.kron(jnp.eye(NC, dtype=f32), cls32.reshape(C, 1))
    # Folded epilogue: out = fcw @ pooled_norm + (fcw @ cls + b + cls).
    const = (fc_w.astype(f32) @ cls32 + fc_b.astype(f32) + cls32).reshape(C, 1)

    out = pl.pallas_call(
        attn_pool_kernel,
        out_shape=jax.ShapeDtypeStruct((Bp, C, 1), x.dtype),
        grid=(grid_b,),
        in_specs=[
            pl.BlockSpec((b_tile * C, N), lambda i: (i, 0)),     # x: only big DMA
            pl.BlockSpec((N, NC), lambda i: (0, 0)),             # S (stays resident)
            pl.BlockSpec((C, C), lambda i: (0, 0)),              # fc weight
            pl.BlockSpec((C, 1), lambda i: (0, 0)),              # folded constant
        ],
        out_specs=pl.BlockSpec((b_tile, C, 1), lambda i: (i, 0, 0)),
        compiler_params=pltpu.CompilerParams(
            dimension_semantics=("parallel",),        # lets v7x shard steps on 2 TCs
            vmem_limit_bytes=32 * 1024 * 1024,        # explicit; fits v5e/v6e/v7x
        ),
    )(x2, S, fc_w.astype(f32), const)

    # (Bp, C, 1) -> (B, C); matches torch .squeeze() for B > 1, C > 1.
    return out[:B, :, 0]


def attention_pooling_ref(x, cls_vec, fc_w, fc_b):
    """Pure-JAX reference that mirrors the PyTorch forward literally."""
    B, C, H, W = x.shape
    logits = x.reshape(-1, C) @ cls_vec                 # (B*H*W,)
    w = jax.nn.softmax(logits.reshape(B, -1), axis=-1)  # (B, N)
    pooled = jnp.einsum("bcn,bn->bc", x.reshape(B, C, -1), w)
    y = pooled + cls_vec
    y = y @ fc_w.T + fc_b
    return y + cls_vec


if __name__ == "__main__":
    key = jax.random.PRNGKey(0)
    k_x, k_cls, k_w, k_b = jax.random.split(key, 4)

    B, C, H, W = 16, 8, 16, 16          # in_dim = C = 8; 2 grid steps with b_tile=8
    x = jax.random.normal(k_x, (B, C, H, W), dtype=jnp.float32)

    # Deterministic synthetic parameters (shapes from the module __init__).
    cls_vec = jax.random.normal(k_cls, (C,), dtype=jnp.float32)
    fc_w = jax.random.normal(k_w, (C, C), dtype=jnp.float32) * (1.0 / jnp.sqrt(C))
    fc_b = jax.random.normal(k_b, (C,), dtype=jnp.float32) * 0.1

    out = attention_pooling(x, cls_vec, fc_w, fc_b, b_tile=8)
    out = jax.block_until_ready(out)

    ref = attention_pooling_ref(x, cls_vec, fc_w, fc_b)
    assert out.shape == (B, C)
    assert jnp.allclose(out, ref, rtol=5e-5, atol=5e-5), (out, ref)
    print("KERNEL_OK")
</pallas_src>

<mosaic_0001>
module attributes {stable_mosaic.version = 11 : i64} {
  func.func @attn_pool_kernel(%arg0: i32, %arg1: memref<64x256xf32, #tpu.memory_space<vmem>>, %arg2: memref<256x32xf32, #tpu.memory_space<vmem>>, %arg3: memref<8x8xf32, #tpu.memory_space<vmem>>, %arg4: memref<8x1xf32, #tpu.memory_space<vmem>>, %arg5: memref<8x8x1xf32, #tpu.memory_space<vmem>>) attributes {dimension_semantics = [#tpu.dimension_semantics<parallel>], iteration_bounds = array<i64: 2>, scalar_prefetch = 0 : i64, scratch_operands = 0 : i64, tpu.core_type = #tpu.core_type<tc>, window_params = [{transform_indices = @transform_0, window_bounds = array<i64: 64, 256>}, {pipeline_mode = #tpu.pipeline_mode<synchronous>, transform_indices = @transform_1, window_bounds = array<i64: 256, 32>}, {pipeline_mode = #tpu.pipeline_mode<synchronous>, transform_indices = @transform_2, window_bounds = array<i64: 8, 8>}, {pipeline_mode = #tpu.pipeline_mode<synchronous>, transform_indices = @transform_3, window_bounds = array<i64: 8, 1>}, {transform_indices = @transform_4, window_bounds = array<i64: 8, 8, 1>}]} {
    %c0 = arith.constant 0 : index
    %c0_0 = arith.constant 0 : index
    %0 = vector.load %arg1[%c0, %c0_0] : memref<64x256xf32, #tpu.memory_space<vmem>>, vector<64x256xf32>
    %c0_1 = arith.constant 0 : index
    %c0_2 = arith.constant 0 : index
    %1 = vector.load %arg2[%c0_1, %c0_2] : memref<256x32xf32, #tpu.memory_space<vmem>>, vector<256x32xf32>
    %c0_3 = arith.constant 0 : index
    %c0_4 = arith.constant 0 : index
    %2 = vector.load %arg3[%c0_3, %c0_4] : memref<8x8xf32, #tpu.memory_space<vmem>>, vector<8x8xf32>
    %c0_5 = arith.constant 0 : index
    %c0_6 = arith.constant 0 : index
    %3 = vector.load %arg4[%c0_5, %c0_6] : memref<8x1xf32, #tpu.memory_space<vmem>>, vector<8x1xf32>
    %cst = arith.constant dense<0.000000e+00> : vector<64x32xf32>
    %4 = tpu.matmul %0, %1, %cst {dimension_numbers = #tpu.dot_dimension_numbers<[1], [0], [0], [1], [0, 0, 1, 1], [], []>} : vector<64x256xf32>, vector<256x32xf32>, vector<64x32xf32> -> vector<64x32xf32>
    %5 = vector.extract_strided_slice %4 {offsets = [0, 0], sizes = [8, 32], strides = [1, 1]} : vector<64x32xf32> to vector<8x32xf32>
    %6 = vector.extract_strided_slice %0 {offsets = [0, 0], sizes = [8, 256], strides = [1, 1]} : vector<64x256xf32> to vector<8x256xf32>
    %cst_7 = arith.constant dense<0xFF800000> : vector<8xf32>
    %7 = vector.multi_reduction <maximumf>, %5, %cst_7 [1] : vector<8x32xf32> to vector<8xf32>
    %8 = vector.shape_cast %7 : vector<8xf32> to vector<8x1xf32>
    %cst_8 = arith.constant dense<0xFF800000> : vector<1xf32>
    %9 = vector.multi_reduction <maximumf>, %8, %cst_8 [0] : vector<8x1xf32> to vector<1xf32>
    %10 = vector.shape_cast %9 : vector<1xf32> to vector<1x1xf32>
    %11 = vector.broadcast %10 : vector<1x1xf32> to vector<8x32xf32>
    %12 = arith.subf %5, %11 : vector<8x32xf32>
    %13 = math.exp %12 : vector<8x32xf32>
    %cst_9 = arith.constant dense<0.000000e+00> : vector<8xf32>
    %14 = vector.multi_reduction <add>, %13, %cst_9 [1] : vector<8x32xf32> to vector<8xf32>
    %15 = vector.shape_cast %14 : vector<8xf32> to vector<8x1xf32>
    %cst_10 = arith.constant dense<0.000000e+00> : vector<1xf32>
    %16 = vector.multi_reduction <add>, %15, %cst_10 [0] : vector<8x1xf32> to vector<1xf32>
    %17 = vector.shape_cast %16 : vector<1xf32> to vector<1x1xf32>
    %cst_11 = arith.constant 0.000000e+00 : f32
    %18 = vector.broadcast %cst_11 : f32 to vector<8x1xf32>
    %19 = vector.extract_strided_slice %6 {offsets = [0, 0], sizes = [8, 32], strides = [1, 1]} : vector<8x256xf32> to vector<8x32xf32>
    %20 = vector.extract_strided_slice %13 {offsets = [0, 0], sizes = [1, 32], strides = [1, 1]} : vector<8x32xf32> to vector<1x32xf32>
    %21 = vector.broadcast %20 : vector<1x32xf32> to vector<8x32xf32>
    %22 = arith.mulf %19, %21 : vector<8x32xf32>
    %cst_12 = arith.constant dense<0.000000e+00> : vector<8xf32>
    %23 = vector.multi_reduction <add>, %22, %cst_12 [1] : vector<8x32xf32> to vector<8xf32>
    %24 = vector.shape_cast %23 : vector<8xf32> to vector<8x1xf32>
    %25 = arith.addf %18, %24 : vector<8x1xf32>
    %26 = vector.extract_strided_slice %6 {offsets = [0, 32], sizes = [8, 32], strides = [1, 1]} : vector<8x256xf32> to vector<8x32xf32>
    %27 = vector.extract_strided_slice %13 {offsets = [1, 0], sizes = [1, 32], strides = [1, 1]} : vector<8x32xf32> to vector<1x32xf32>
    %28 = vector.broadcast %27 : vector<1x32xf32> to vector<8x32xf32>
    %29 = arith.mulf %26, %28 : vector<8x32xf32>
    %cst_13 = arith.constant dense<0.000000e+00> : vector<8xf32>
    %30 = vector.multi_reduction <add>, %29, %cst_13 [1] : vector<8x32xf32> to vector<8xf32>
    %31 = vector.shape_cast %30 : vector<8xf32> to vector<8x1xf32>
    %32 = arith.addf %25, %31 : vector<8x1xf32>
    %33 = vector.extract_strided_slice %6 {offsets = [0, 64], sizes = [8, 32], strides = [1, 1]} : vector<8x256xf32> to vector<8x32xf32>
    %34 = vector.extract_strided_slice %13 {offsets = [2, 0], sizes = [1, 32], strides = [1, 1]} : vector<8x32xf32> to vector<1x32xf32>
    %35 = vector.broadcast %34 : vector<1x32xf32> to vector<8x32xf32>
    %36 = arith.mulf %33, %35 : vector<8x32xf32>
    %cst_14 = arith.constant dense<0.000000e+00> : vector<8xf32>
    %37 = vector.multi_reduction <add>, %36, %cst_14 [1] : vector<8x32xf32> to vector<8xf32>
    %38 = vector.shape_cast %37 : vector<8xf32> to vector<8x1xf32>
    %39 = arith.addf %32, %38 : vector<8x1xf32>
    %40 = vector.extract_strided_slice %6 {offsets = [0, 96], sizes = [8, 32], strides = [1, 1]} : vector<8x256xf32> to vector<8x32xf32>
    %41 = vector.extract_strided_slice %13 {offsets = [3, 0], sizes = [1, 32], strides = [1, 1]} : vector<8x32xf32> to vector<1x32xf32>
    %42 = vector.broadcast %41 : vector<1x32xf32> to vector<8x32xf32>
    %43 = arith.mulf %40, %42 : vector<8x32xf32>
    %cst_15 = arith.constant dense<0.000000e+00> : vector<8xf32>
    %44 = vector.multi_reduction <add>, %43, %cst_15 [1] : vector<8x32xf32> to vector<8xf32>
    %45 = vector.shape_cast %44 : vector<8xf32> to vector<8x1xf32>
    %46 = arith.addf %39, %45 : vector<8x1xf32>
    %47 = vector.extract_strided_slice %6 {offsets = [0, 128], sizes = [8, 32], strides = [1, 1]} : vector<8x256xf32> to vector<8x32xf32>
    %48 = vector.extract_strided_slice %13 {offsets = [4, 0], sizes = [1, 32], strides = [1, 1]} : vector<8x32xf32> to vector<1x32xf32>
    %49 = vector.broadcast %48 : vector<1x32xf32> to vector<8x32xf32>
    %50 = arith.mulf %47, %49 : vector<8x32xf32>
    %cst_16 = arith.constant dense<0.000000e+00> : vector<8xf32>
    %51 = vector.multi_reduction <add>, %50, %cst_16 [1] : vector<8x32xf32> to vector<8xf32>
    %52 = vector.shape_cast %51 : vector<8xf32> to vector<8x1xf32>
    %53 = arith.addf %46, %52 : vector<8x1xf32>
    %54 = vector.extract_strided_slice %6 {offsets = [0, 160], sizes = [8, 32], strides = [1, 1]} : vector<8x256xf32> to vector<8x32xf32>
    %55 = vector.extract_strided_slice %13 {offsets = [5, 0], sizes = [1, 32], strides = [1, 1]} : vector<8x32xf32> to vector<1x32xf32>
    %56 = vector.broadcast %55 : vector<1x32xf32> to vector<8x32xf32>
    %57 = arith.mulf %54, %56 : vector<8x32xf32>
    %cst_17 = arith.constant dense<0.000000e+00> : vector<8xf32>
    %58 = vector.multi_reduction <add>, %57, %cst_17 [1] : vector<8x32xf32> to vector<8xf32>
    %59 = vector.shape_cast %58 : vector<8xf32> to vector<8x1xf32>
    %60 = arith.addf %53, %59 : vector<8x1xf32>
    %61 = vector.extract_strided_slice %6 {offsets = [0, 192], sizes = [8, 32], strides = [1, 1]} : vector<8x256xf32> to vector<8x32xf32>
    %62 = vector.extract_strided_slice %13 {offsets = [6, 0], sizes = [1, 32], strides = [1, 1]} : vector<8x32xf32> to vector<1x32xf32>
    %63 = vector.broadcast %62 : vector<1x32xf32> to vector<8x32xf32>
    %64 = arith.mulf %61, %63 : vector<8x32xf32>
    %cst_18 = arith.constant dense<0.000000e+00> : vector<8xf32>
    %65 = vector.multi_reduction <add>, %64, %cst_18 [1] : vector<8x32xf32> to vector<8xf32>
    %66 = vector.shape_cast %65 : vector<8xf32> to vector<8x1xf32>
    %67 = arith.addf %60, %66 : vector<8x1xf32>
    %68 = vector.extract_strided_slice %6 {offsets = [0, 224], sizes = [8, 32], strides = [1, 1]} : vector<8x256xf32> to vector<8x32xf32>
    %69 = vector.extract_strided_slice %13 {offsets = [7, 0], sizes = [1, 32], strides = [1, 1]} : vector<8x32xf32> to vector<1x32xf32>
    %70 = vector.broadcast %69 : vector<1x32xf32> to vector<8x32xf32>
    %71 = arith.mulf %68, %70 : vector<8x32xf32>
    %cst_19 = arith.constant dense<0.000000e+00> : vector<8xf32>
    %72 = vector.multi_reduction <add>, %71, %cst_19 [1] : vector<8x32xf32> to vector<8xf32>
    %73 = vector.shape_cast %72 : vector<8xf32> to vector<8x1xf32>
    %74 = arith.addf %67, %73 : vector<8x1xf32>
    %cst_20 = arith.constant 1.000000e+00 : f32
    %75 = vector.broadcast %cst_20 : f32 to vector<1x1xf32>
    %76 = arith.divf %75, %17 : vector<1x1xf32>
    %cst_21 = arith.constant dense<0.000000e+00> : vector<8x1xf32>
    %77 = tpu.matmul %2, %74, %cst_21 {dimension_numbers = #tpu.dot_dimension_numbers<[1], [0], [0], [1], [0, 0, 1, 1], [], []>} : vector<8x8xf32>, vector<8x1xf32>, vector<8x1xf32> -> vector<8x1xf32>
    %78 = vector.broadcast %76 : vector<1x1xf32> to vector<8x1xf32>
    %79 = arith.mulf %77, %78 : vector<8x1xf32>
    %80 = arith.addf %79, %3 : vector<8x1xf32>
    %c0_22 = arith.constant 0 : index
    %c0_23 = arith.constant 0 : index
    %c0_24 = arith.constant 0 : index
    %81 = vector.load %arg5[%c0_22, %c0_23, %c0_24] : memref<8x8x1xf32, #tpu.memory_space<vmem>>, vector<1x8x1xf32>
    %82 = vector.shape_cast %81 : vector<1x8x1xf32> to vector<8x1xf32>
    %83 = vector.shape_cast %80 : vector<8x1xf32> to vector<1x8x1xf32>
    tpu.vector_store %arg5[%c0_22, %c0_23, %c0_24], %83 {strides = array<i32>} : memref<8x8x1xf32, #tpu.memory_space<vmem>>, vector<1x8x1xf32>,
    %84 = vector.extract_strided_slice %4 {offsets = [8, 0], sizes = [8, 32], strides = [1, 1]} : vector<64x32xf32> to vector<8x32xf32>
    %85 = vector.extract_strided_slice %0 {offsets = [8, 0], sizes = [8, 256], strides = [1, 1]} : vector<64x256xf32> to vector<8x256xf32>
    %cst_25 = arith.constant dense<0xFF800000> : vector<8xf32>
    %86 = vector.multi_reduction <maximumf>, %84, %cst_25 [1] : vector<8x32xf32> to vector<8xf32>
    %87 = vector.shape_cast %86 : vector<8xf32> to vector<8x1xf32>
    %cst_26 = arith.constant dense<0xFF800000> : vector<1xf32>
    %88 = vector.multi_reduction <maximumf>, %87, %cst_26 [0] : vector<8x1xf32> to vector<1xf32>
    %89 = vector.shape_cast %88 : vector<1xf32> to vector<1x1xf32>
    %90 = vector.broadcast %89 : vector<1x1xf32> to vector<8x32xf32>
    %91 = arith.subf %84, %90 : vector<8x32xf32>
    %92 = math.exp %91 : vector<8x32xf32>
    %cst_27 = arith.constant dense<0.000000e+00> : vector<8xf32>
    %93 = vector.multi_reduction <add>, %92, %cst_27 [1] : vector<8x32xf32> to vector<8xf32>
    %94 = vector.shape_cast %93 : vector<8xf32> to vector<8x1xf32>
    %cst_28 = arith.constant dense<0.000000e+00> : vector<1xf32>
    %95 = vector.multi_reduction <add>, %94, %cst_28 [0] : vector<8x1xf32> to vector<1xf32>
    %96 = vector.shape_cast %95 : vector<1xf32> to vector<1x1xf32>
    %cst_29 = arith.constant 0.000000e+00 : f32
    %97 = vector.broadcast %cst_29 : f32 to vector<8x1xf32>
    %98 = vector.extract_strided_slice %85 {offsets = [0, 0], sizes = [8, 32], strides = [1, 1]} : vector<8x256xf32> to vector<8x32xf32>
    %99 = vector.extract_strided_slice %92 {offsets = [0, 0], sizes = [1, 32], strides = [1, 1]} : vector<8x32xf32> to vector<1x32xf32>
    %100 = vector.broadcast %99 : vector<1x32xf32> to vector<8x32xf32>
    %101 = arith.mulf %98, %100 : vector<8x32xf32>
    %cst_30 = arith.constant dense<0.000000e+00> : vector<8xf32>
    %102 = vector.multi_reduction <add>, %101, %cst_30 [1] : vector<8x32xf32> to vector<8xf32>
    %103 = vector.shape_cast %102 : vector<8xf32> to vector<8x1xf32>
    %104 = arith.addf %97, %103 : vector<8x1xf32>
    %105 = vector.extract_strided_slice %85 {offsets = [0, 32], sizes = [8, 32], strides = [1, 1]} : vector<8x256xf32> to vector<8x32xf32>
    %106 = vector.extract_strided_slice %92 {offsets = [1, 0], sizes = [1, 32], strides = [1, 1]} : vector<8x32xf32> to vector<1x32xf32>
    %107 = vector.broadcast %106 : vector<1x32xf32> to vector<8x32xf32>
    %108 = arith.mulf %105, %107 : vector<8x32xf32>
    %cst_31 = arith.constant dense<0.000000e+00> : vector<8xf32>
    %109 = vector.multi_reduction <add>, %108, %cst_31 [1] : vector<8x32xf32> to vector<8xf32>
    %110 = vector.shape_cast %109 : vector<8xf32> to vector<8x1xf32>
    %111 = arith.addf %104, %110 : vector<8x1xf32>
    %112 = vector.extract_strided_slice %85 {offsets = [0, 64], sizes = [8, 32], strides = [1, 1]} : vector<8x256xf32> to vector<8x32xf32>
    %113 = vector.extract_strided_slice %92 {offsets = [2, 0], sizes = [1, 32], strides = [1, 1]} : vector<8x32xf32> to vector<1x32xf32>
    %114 = vector.broadcast %113 : vector<1x32xf32> to vector<8x32xf32>
    %115 = arith.mulf %112, %114 : vector<8x32xf32>
    %cst_32 = arith.constant dense<0.000000e+00> : vector<8xf32>
    %116 = vector.multi_reduction <add>, %115, %cst_32 [1] : vector<8x32xf32> to vector<8xf32>
    %117 = vector.shape_cast %116 : vector<8xf32> to vector<8x1xf32>
    %118 = arith.addf %111, %117 : vector<8x1xf32>
    %119 = vector.extract_strided_slice %85 {offsets = [0, 96], sizes = [8, 32], strides = [1, 1]} : vector<8x256xf32> to vector<8x32xf32>
    %120 = vector.extract_strided_slice %92 {offsets = [3, 0], sizes = [1, 32], strides = [1, 1]} : vector<8x32xf32> to vector<1x32xf32>
    %121 = vector.broadcast %120 : vector<1x32xf32> to vector<8x32xf32>
    %122 = arith.mulf %119, %121 : vector<8x32xf32>
    %cst_33 = arith.constant dense<0.000000e+00> : vector<8xf32>
    %123 = vector.multi_reduction <add>, %122, %cst_33 [1] : vector<8x32xf32> to vector<8xf32>
    %124 = vector.shape_cast %123 : vector<8xf32> to vector<8x1xf32>
    %125 = arith.addf %118, %124 : vector<8x1xf32>
    %126 = vector.extract_strided_slice %85 {offsets = [0, 128], sizes = [8, 32], strides = [1, 1]} : vector<8x256xf32> to vector<8x32xf32>
    %127 = vector.extract_strided_slice %92 {offsets = [4, 0], sizes = [1, 32], strides = [1, 1]} : vector<8x32xf32> to vector<1x32xf32>
    %128 = vector.broadcast %127 : vector<1x32xf32> to vector<8x32xf32>
    %129 = arith.mulf %126, %128 : vector<8x32xf32>
    %cst_34 = arith.constant dense<0.000000e+00> : vector<8xf32>
    %130 = vector.multi_reduction <add>, %129, %cst_34 [1] : vector<8x32xf32> to vector<8xf32>
    %131 = vector.shape_cast %130 : vector<8xf32> to vector<8x1xf32>
    %132 = arith.addf %125, %131 : vector<8x1xf32>
    %133 = vector.extract_strided_slice %85 {offsets = [0, 160], sizes = [8, 32], strides = [1, 1]} : vector<8x256xf32> to vector<8x32xf32>
    %134 = vector.extract_strided_slice %92 {offsets = [5, 0], sizes = [1, 32], strides = [1, 1]} : vector<8x32xf32> to vector<1x32xf32>
    %135 = vector.broadcast %134 : vector<1x32xf32> to vector<8x32xf32>
    %136 = arith.mulf %133, %135 : vector<8x32xf32>
    %cst_35 = arith.constant dense<0.000000e+00> : vector<8xf32>
    %137 = vector.multi_reduction <add>, %136, %cst_35 [1] : vector<8x32xf32> to vector<8xf32>
    %138 = vector.shape_cast %137 : vector<8xf32> to vector<8x1xf32>
    %139 = arith.addf %132, %138 : vector<8x1xf32>
    %140 = vector.extract_strided_slice %85 {offsets = [0, 192], sizes = [8, 32], strides = [1, 1]} : vector<8x256xf32> to vector<8x32xf32>
    %141 = vector.extract_strided_slice %92 {offsets = [6, 0], sizes = [1, 32], strides = [1, 1]} : vector<8x32xf32> to vector<1x32xf32>
    %142 = vector.broadcast %141 : vector<1x32xf32> to vector<8x32xf32>
    %143 = arith.mulf %140, %142 : vector<8x32xf32>
    %cst_36 = arith.constant dense<0.000000e+00> : vector<8xf32>
    %144 = vector.multi_reduction <add>, %143, %cst_36 [1] : vector<8x32xf32> to vector<8xf32>
    %145 = vector.shape_cast %144 : vector<8xf32> to vector<8x1xf32>
    %146 = arith.addf %139, %145 : vector<8x1xf32>
    %147 = vector.extract_strided_slice %85 {offsets = [0, 224], sizes = [8, 32], strides = [1, 1]} : vector<8x256xf32> to vector<8x32xf32>
    %148 = vector.extract_strided_slice %92 {offsets = [7, 0], sizes = [1, 32], strides = [1, 1]} : vector<8x32xf32> to vector<1x32xf32>
    %149 = vector.broadcast %148 : vector<1x32xf32> to vector<8x32xf32>
    %150 = arith.mulf %147, %149 : vector<8x32xf32>
    %cst_37 = arith.constant dense<0.000000e+00> : vector<8xf32>
    %151 = vector.multi_reduction <add>, %150, %cst_37 [1] : vector<8x32xf32> to vector<8xf32>
    %152 = vector.shape_cast %151 : vector<8xf32> to vector<8x1xf32>
    %153 = arith.addf %146, %152 : vector<8x1xf32>
    %cst_38 = arith.constant 1.000000e+00 : f32
    %154 = vector.broadcast %cst_38 : f32 to vector<1x1xf32>
    %155 = arith.divf %154, %96 : vector<1x1xf32>
    %cst_39 = arith.constant dense<0.000000e+00> : vector<8x1xf32>
    %156 = tpu.matmul %2, %153, %cst_39 {dimension_numbers = #tpu.dot_dimension_numbers<[1], [0], [0], [1], [0, 0, 1, 1], [], []>} : vector<8x8xf32>, vector<8x1xf32>, vector<8x1xf32> -> vector<8x1xf32>
    %157 = vector.broadcast %155 : vector<1x1xf32> to vector<8x1xf32>
    %158 = arith.mulf %156, %157 : vector<8x1xf32>
    %159 = arith.addf %158, %3 : vector<8x1xf32>
    %c1 = arith.constant 1 : index
    %c0_40 = arith.constant 0 : index
    %c0_41 = arith.constant 0 : index
    %160 = vector.load %arg5[%c1, %c0_40, %c0_41] : memref<8x8x1xf32, #tpu.memory_space<vmem>>, vector<1x8x1xf32>
    %161 = vector.shape_cast %160 : vector<1x8x1xf32> to vector<8x1xf32>
    %162 = vector.shape_cast %159 : vector<8x1xf32> to vector<1x8x1xf32>
    tpu.vector_store %arg5[%c1, %c0_40, %c0_41], %162 {strides = array<i32>} : memref<8x8x1xf32, #tpu.memory_space<vmem>>, vector<1x8x1xf32>,
    %163 = vector.extract_strided_slice %4 {offsets = [16, 0], sizes = [8, 32], strides = [1, 1]} : vector<64x32xf32> to vector<8x32xf32>
    %164 = vector.extract_strided_slice %0 {offsets = [16, 0], sizes = [8, 256], strides = [1, 1]} : vector<64x256xf32> to vector<8x256xf32>
    %cst_42 = arith.constant dense<0xFF800000> : vector<8xf32>
    %165 = vector.multi_reduction <maximumf>, %163, %cst_42 [1] : vector<8x32xf32> to vector<8xf32>
    %166 = vector.shape_cast %165 : vector<8xf32> to vector<8x1xf32>
    %cst_43 = arith.constant dense<0xFF800000> : vector<1xf32>
    %167 = vector.multi_reduction <maximumf>, %166, %cst_43 [0] : vector<8x1xf32> to vector<1xf32>
    %168 = vector.shape_cast %167 : vector<1xf32> to vector<1x1xf32>
    %169 = vector.broadcast %168 : vector<1x1xf32> to vector<8x32xf32>
    %170 = arith.subf %163, %169 : vector<8x32xf32>
    %171 = math.exp %170 : vector<8x32xf32>
    %cst_44 = arith.constant dense<0.000000e+00> : vector<8xf32>
    %172 = vector.multi_reduction <add>, %171, %cst_44 [1] : vector<8x32xf32> to vector<8xf32>
    %173 = vector.shape_cast %172 : vector<8xf32> to vector<8x1xf32>
    %cst_45 = arith.constant dense<0.000000e+00> : vector<1xf32>
    %174 = vector.multi_reduction <add>, %173, %cst_45 [0] : vector<8x1xf32> to vector<1xf32>
    %175 = vector.shape_cast %174 : vector<1xf32> to vector<1x1xf32>
    %cst_46 = arith.constant 0.000000e+00 : f32
    %176 = vector.broadcast %cst_46 : f32 to vector<8x1xf32>
    %177 = vector.extract_strided_slice %164 {offsets = [0, 0], sizes = [8, 32], strides = [1, 1]} : vector<8x256xf32> to vector<8x32xf32>
    %178 = vector.extract_strided_slice %171 {offsets = [0, 0], sizes = [1, 32], strides = [1, 1]} : vector<8x32xf32> to vector<1x32xf32>
    %179 = vector.broadcast %178 : vector<1x32xf32> to vector<8x32xf32>
    %180 = arith.mulf %177, %179 : vector<8x32xf32>
    %cst_47 = arith.constant dense<0.000000e+00> : vector<8xf32>
    %181 = vector.multi_reduction <add>, %180, %cst_47 [1] : vector<8x32xf32> to vector<8xf32>
    %182 = vector.shape_cast %181 : vector<8xf32> to vector<8x1xf32>
    %183 = arith.addf %176, %182 : vector<8x1xf32>
    %184 = vector.extract_strided_slice %164 {offsets = [0, 32], sizes = [8, 32], strides = [1, 1]} : vector<8x256xf32> to vector<8x32xf32>
    %185 = vector.extract_strided_slice %171 {offsets = [1, 0], sizes = [1, 32], strides = [1, 1]} : vector<8x32xf32> to vector<1x32xf32>
    %186 = vector.broadcast %185 : vector<1x32xf32> to vector<8x32xf32>
    %187 = arith.mulf %184, %186 : vector<8x32xf32>
    %cst_48 = arith.constant dense<0.000000e+00> : vector<8xf32>
    %188 = vector.multi_reduction <add>, %187, %cst_48 [1] : vector<8x32xf32> to vector<8xf32>
    %189 = vector.shape_cast %188 : vector<8xf32> to vector<8x1xf32>
    %190 = arith.addf %183, %189 : vector<8x1xf32>
    %191 = vector.extract_strided_slice %164 {offsets = [0, 64], sizes = [8, 32], strides = [1, 1]} : vector<8x256xf32> to vector<8x32xf32>
    %192 = vector.extract_strided_slice %171 {offsets = [2, 0], sizes = [1, 32], strides = [1, 1]} : vector<8x32xf32> to vector<1x32xf32>
    %193 = vector.broadcast %192 : vector<1x32xf32> to vector<8x32xf32>
    %194 = arith.mulf %191, %193 : vector<8x32xf32>
    %cst_49 = arith.constant dense<0.000000e+00> : vector<8xf32>
    %195 = vector.multi_reduction <add>, %194, %cst_49 [1] : vector<8x32xf32> to vector<8xf32>
    %196 = vector.shape_cast %195 : vector<8xf32> to vector<8x1xf32>
    %197 = arith.addf %190, %196 : vector<8x1xf32>
    %198 = vector.extract_strided_slice %164 {offsets = [0, 96], sizes = [8, 32], strides = [1, 1]} : vector<8x256xf32> to vector<8x32xf32>
    %199 = vector.extract_strided_slice %171 {offsets = [3, 0], sizes = [1, 32], strides = [1, 1]} : vector<8x32xf32> to vector<1x32xf32>
    %200 = vector.broadcast %199 : vector<1x32xf32> to vector<8x32xf32>
    %201 = arith.mulf %198, %200 : vector<8x32xf32>
    %cst_50 = arith.constant dense<0.000000e+00> : vector<8xf32>
    %202 = vector.multi_reduction <add>, %201, %cst_50 [1] : vector<8x32xf32> to vector<8xf32>
    %203 = vector.shape_cast %202 : vector<8xf32> to vector<8x1xf32>
    %204 = arith.addf %197, %203 : vector<8x1xf32>
    %205 = vector.extract_strided_slice %164 {offsets = [0, 128], sizes = [8, 32], strides = [1, 1]} : vector<8x256xf32> to vector<8x32xf32>
    %206 = vector.extract_strided_slice %171 {offsets = [4, 0], sizes = [1, 32], strides = [1, 1]} : vector<8x32xf32> to vector<1x32xf32>
    %207 = vector.broadcast %206 : vector<1x32xf32> to vector<8x32xf32>
    %208 = arith.mulf %205, %207 : vector<8x32xf32>
    %cst_51 = arith.constant dense<0.000000e+00> : vector<8xf32>
    %209 = vector.multi_reduction <add>, %208, %cst_51 [1] : vector<8x32xf32> to vector<8xf32>
    %210 = vector.shape_cast %209 : vector<8xf32> to vector<8x1xf32>
    %211 = arith.addf %204, %210 : vector<8x1xf32>
    %212 = vector.extract_strided_slice %164 {offsets = [0, 160], sizes = [8, 32], strides = [1, 1]} : vector<8x256xf32> to vector<8x32xf32>
    %213 = vector.extract_strided_slice %171 {offsets = [5, 0], sizes = [1, 32], strides = [1, 1]} : vector<8x32xf32> to vector<1x32xf32>
    %214 = vector.broadcast %213 : vector<1x32xf32> to vector<8x32xf32>
    %215 = arith.mulf %212, %214 : vector<8x32xf32>
    %cst_52 = arith.constant dense<0.000000e+00> : vector<8xf32>
    %216 = vector.multi_reduction <add>, %215, %cst_52 [1] : vector<8x32xf32> to vector<8xf32>
    %217 = vector.shape_cast %216 : vector<8xf32> to vector<8x1xf32>
    %218 = arith.addf %211, %217 : vector<8x1xf32>
    %219 = vector.extract_strided_slice %164 {offsets = [0, 192], sizes = [8, 32], strides = [1, 1]} : vector<8x256xf32> to vector<8x32xf32>
    %220 = vector.extract_strided_slice %171 {offsets = [6, 0], sizes = [1, 32], strides = [1, 1]} : vector<8x32xf32> to vector<1x32xf32>
    %221 = vector.broadcast %220 : vector<1x32xf32> to vector<8x32xf32>
    %222 = arith.mulf %219, %221 : vector<8x32xf32>
    %cst_53 = arith.constant dense<0.000000e+00> : vector<8xf32>
    %223 = vector.multi_reduction <add>, %222, %cst_53 [1] : vector<8x32xf32> to vector<8xf32>
    %224 = vector.shape_cast %223 : vector<8xf32> to vector<8x1xf32>
    %225 = arith.addf %218, %224 : vector<8x1xf32>
    %226 = vector.extract_strided_slice %164 {offsets = [0, 224], sizes = [8, 32], strides = [1, 1]} : vector<8x256xf32> to vector<8x32xf32>
    %227 = vector.extract_strided_slice %171 {offsets = [7, 0], sizes = [1, 32], strides = [1, 1]} : vector<8x32xf32> to vector<1x32xf32>
    %228 = vector.broadcast %227 : vector<1x32xf32> to vector<8x32xf32>
    %229 = arith.mulf %226, %228 : vector<8x32xf32>
    %cst_54 = arith.constant dense<0.000000e+00> : vector<8xf32>
    %230 = vector.multi_reduction <add>, %229, %cst_54 [1] : vector<8x32xf32> to vector<8xf32>
    %231 = vector.shape_cast %230 : vector<8xf32> to vector<8x1xf32>
    %232 = arith.addf %225, %231 : vector<8x1xf32>
    %cst_55 = arith.constant 1.000000e+00 : f32
    %233 = vector.broadcast %cst_55 : f32 to vector<1x1xf32>
    %234 = arith.divf %233, %175 : vector<1x1xf32>
    %cst_56 = arith.constant dense<0.000000e+00> : vector<8x1xf32>
    %235 = tpu.matmul %2, %232, %cst_56 {dimension_numbers = #tpu.dot_dimension_numbers<[1], [0], [0], [1], [0, 0, 1, 1], [], []>} : vector<8x8xf32>, vector<8x1xf32>, vector<8x1xf32> -> vector<8x1xf32>
    %236 = vector.broadcast %234 : vector<1x1xf32> to vector<8x1xf32>
    %237 = arith.mulf %235, %236 : vector<8x1xf32>
    %238 = arith.addf %237, %3 : vector<8x1xf32>
    %c2 = arith.constant 2 : index
    %c0_57 = arith.constant 0 : index
    %c0_58 = arith.constant 0 : index
    %239 = vector.load %arg5[%c2, %c0_57, %c0_58] : memref<8x8x1xf32, #tpu.memory_space<vmem>>, vector<1x8x1xf32>
    %240 = vector.shape_cast %239 : vector<1x8x1xf32> to vector<8x1xf32>
    %241 = vector.shape_cast %238 : vector<8x1xf32> to vector<1x8x1xf32>
    tpu.vector_store %arg5[%c2, %c0_57, %c0_58], %241 {strides = array<i32>} : memref<8x8x1xf32, #tpu.memory_space<vmem>>, vector<1x8x1xf32>,
    %242 = vector.extract_strided_slice %4 {offsets = [24, 0], sizes = [8, 32], strides = [1, 1]} : vector<64x32xf32> to vector<8x32xf32>
    %243 = vector.extract_strided_slice %0 {offsets = [24, 0], sizes = [8, 256], strides = [1, 1]} : vector<64x256xf32> to vector<8x256xf32>
    %cst_59 = arith.constant dense<0xFF800000> : vector<8xf32>
    %244 = vector.multi_reduction <maximumf>, %242, %cst_59 [1] : vector<8x32xf32> to vector<8xf32>
    %245 = vector.shape_cast %244 : vector<8xf32> to vector<8x1xf32>
    %cst_60 = arith.constant dense<0xFF800000> : vector<1xf32>
    %246 = vector.multi_reduction <maximumf>, %245, %cst_60 [0] : vector<8x1xf32> to vector<1xf32>
    %247 = vector.shape_cast %246 : vector<1xf32> to vector<1x1xf32>
    %248 = vector.broadcast %247 : vector<1x1xf32> to vector<8x32xf32>
    %249 = arith.subf %242, %248 : vector<8x32xf32>
    %250 = math.exp %249 : vector<8x32xf32>
    %cst_61 = arith.constant dense<0.000000e+00> : vector<8xf32>
    %251 = vector.multi_reduction <add>, %250, %cst_61 [1] : vector<8x32xf32> to vector<8xf32>
    %252 = vector.shape_cast %251 : vector<8xf32> to vector<8x1xf32>
    %cst_62 = arith.constant dense<0.000000e+00> : vector<1xf32>
    %253 = vector.multi_reduction <add>, %252, %cst_62 [0] : vector<8x1xf32> to vector<1xf32>
    %254 = vector.shape_cast %253 : vector<1xf32> to vector<1x1xf32>
    %cst_63 = arith.constant 0.000000e+00 : f32
    %255 = vector.broadcast %cst_63 : f32 to vector<8x1xf32>
    %256 = vector.extract_strided_slice %243 {offsets = [0, 0], sizes = [8, 32], strides = [1, 1]} : vector<8x256xf32> to vector<8x32xf32>
    %257 = vector.extract_strided_slice %250 {offsets = [0, 0], sizes = [1, 32], strides = [1, 1]} : vector<8x32xf32> to vector<1x32xf32>
    %258 = vector.broadcast %257 : vector<1x32xf32> to vector<8x32xf32>
    %259 = arith.mulf %256, %258 : vector<8x32xf32>
    %cst_64 = arith.constant dense<0.000000e+00> : vector<8xf32>
    %260 = vector.multi_reduction <add>, %259, %cst_64 [1] : vector<8x32xf32> to vector<8xf32>
    %261 = vector.shape_cast %260 : vector<8xf32> to vector<8x1xf32>
    %262 = arith.addf %255, %261 : vector<8x1xf32>
    %263 = vector.extract_strided_slice %243 {offsets = [0, 32], sizes = [8, 32], strides = [1, 1]} : vector<8x256xf32> to vector<8x32xf32>
    %264 = vector.extract_strided_slice %250 {offsets = [1, 0], sizes = [1, 32], strides = [1, 1]} : vector<8x32xf32> to vector<1x32xf32>
    %265 = vector.broadcast %264 : vector<1x32xf32> to vector<8x32xf32>
    %266 = arith.mulf %263, %265 : vector<8x32xf32>
    %cst_65 = arith.constant dense<0.000000e+00> : vector<8xf32>
    %267 = vector.multi_reduction <add>, %266, %cst_65 [1] : vector<8x32xf32> to vector<8xf32>
    %268 = vector.shape_cast %267 : vector<8xf32> to vector<8x1xf32>
    %269 = arith.addf %262, %268 : vector<8x1xf32>
    %270 = vector.extract_strided_slice %243 {offsets = [0, 64], sizes = [8, 32], strides = [1, 1]} : vector<8x256xf32> to vector<8x32xf32>
    %271 = vector.extract_strided_slice %250 {offsets = [2, 0], sizes = [1, 32], strides = [1, 1]} : vector<8x32xf32> to vector<1x32xf32>
    %272 = vector.broadcast %271 : vector<1x32xf32> to vector<8x32xf32>
    %273 = arith.mulf %270, %272 : vector<8x32xf32>
    %cst_66 = arith.constant dense<0.000000e+00> : vector<8xf32>
    %274 = vector.multi_reduction <add>, %273, %cst_66 [1] : vector<8x32xf32> to vector<8xf32>
    %275 = vector.shape_cast %274 : vector<8xf32> to vector<8x1xf32>
    %276 = arith.addf %269, %275 : vector<8x1xf32>
    %277 = vector.extract_strided_slice %243 {offsets = [0, 96], sizes = [8, 32], strides = [1, 1]} : vector<8x256xf32> to vector<8x32xf32>
    %278 = vector.extract_strided_slice %250 {offsets = [3, 0], sizes = [1, 32], strides = [1, 1]} : vector<8x32xf32> to vector<1x32xf32>
    %279 = vector.broadcast %278 : vector<1x32xf32> to vector<8x32xf32>
    %280 = arith.mulf %277, %279 : vector<8x32xf32>
    %cst_67 = arith.constant dense<0.000000e+00> : vector<8xf32>
    %281 = vector.multi_reduction <add>, %280, %cst_67 [1] : vector<8x32xf32> to vector<8xf32>
    %282 = vector.shape_cast %281 : vector<8xf32> to vector<8x1xf32>
    %283 = arith.addf %276, %282 : vector<8x1xf32>
    %284 = vector.extract_strided_slice %243 {offsets = [0, 128], sizes = [8, 32], strides = [1, 1]} : vector<8x256xf32> to vector<8x32xf32>
    %285 = vector.extract_strided_slice %250 {offsets = [4, 0], sizes = [1, 32], strides = [1, 1]} : vector<8x32xf32> to vector<1x32xf32>
    %286 = vector.broadcast %285 : vector<1x32xf32> to vector<8x32xf32>
    %287 = arith.mulf %284, %286 : vector<8x32xf32>
    %cst_68 = arith.constant dense<0.000000e+00> : vector<8xf32>
    %288 = vector.multi_reduction <add>, %287, %cst_68 [1] : vector<8x32xf32> to vector<8xf32>
    %289 = vector.shape_cast %288 : vector<8xf32> to vector<8x1xf32>
    %290 = arith.addf %283, %289 : vector<8x1xf32>
    %291 = vector.extract_strided_slice %243 {offsets = [0, 160], sizes = [8, 32], strides = [1, 1]} : vector<8x256xf32> to vector<8x32xf32>
    %292 = vector.extract_strided_slice %250 {offsets = [5, 0], sizes = [1, 32], strides = [1, 1]} : vector<8x32xf32> to vector<1x32xf32>
    %293 = vector.broadcast %292 : vector<1x32xf32> to vector<8x32xf32>
    %294 = arith.mulf %291, %293 : vector<8x32xf32>
    %cst_69 = arith.constant dense<0.000000e+00> : vector<8xf32>
    %295 = vector.multi_reduction <add>, %294, %cst_69 [1] : vector<8x32xf32> to vector<8xf32>
    %296 = vector.shape_cast %295 : vector<8xf32> to vector<8x1xf32>
    %297 = arith.addf %290, %296 : vector<8x1xf32>
    %298 = vector.extract_strided_slice %243 {offsets = [0, 192], sizes = [8, 32], strides = [1, 1]} : vector<8x256xf32> to vector<8x32xf32>
    %299 = vector.extract_strided_slice %250 {offsets = [6, 0], sizes = [1, 32], strides = [1, 1]} : vector<8x32xf32> to vector<1x32xf32>
    %300 = vector.broadcast %299 : vector<1x32xf32> to vector<8x32xf32>
    %301 = arith.mulf %298, %300 : vector<8x32xf32>
    %cst_70 = arith.constant dense<0.000000e+00> : vector<8xf32>
    %302 = vector.multi_reduction <add>, %301, %cst_70 [1] : vector<8x32xf32> to vector<8xf32>
    %303 = vector.shape_cast %302 : vector<8xf32> to vector<8x1xf32>
    %304 = arith.addf %297, %303 : vector<8x1xf32>
    %305 = vector.extract_strided_slice %243 {offsets = [0, 224], sizes = [8, 32], strides = [1, 1]} : vector<8x256xf32> to vector<8x32xf32>
    %306 = vector.extract_strided_slice %250 {offsets = [7, 0], sizes = [1, 32], strides = [1, 1]} : vector<8x32xf32> to vector<1x32xf32>
    %307 = vector.broadcast %306 : vector<1x32xf32> to vector<8x32xf32>
    %308 = arith.mulf %305, %307 : vector<8x32xf32>
    %cst_71 = arith.constant dense<0.000000e+00> : vector<8xf32>
    %309 = vector.multi_reduction <add>, %308, %cst_71 [1] : vector<8x32xf32> to vector<8xf32>
    %310 = vector.shape_cast %309 : vector<8xf32> to vector<8x1xf32>
    %311 = arith.addf %304, %310 : vector<8x1xf32>
    %cst_72 = arith.constant 1.000000e+00 : f32
    %312 = vector.broadcast %cst_72 : f32 to vector<1x1xf32>
    %313 = arith.divf %312, %254 : vector<1x1xf32>
    %cst_73 = arith.constant dense<0.000000e+00> : vector<8x1xf32>
    %314 = tpu.matmul %2, %311, %cst_73 {dimension_numbers = #tpu.dot_dimension_numbers<[1], [0], [0], [1], [0, 0, 1, 1], [], []>} : vector<8x8xf32>, vector<8x1xf32>, vector<8x1xf32> -> vector<8x1xf32>
    %315 = vector.broadcast %313 : vector<1x1xf32> to vector<8x1xf32>
    %316 = arith.mulf %314, %315 : vector<8x1xf32>
    %317 = arith.addf %316, %3 : vector<8x1xf32>
    %c3 = arith.constant 3 : index
    %c0_74 = arith.constant 0 : index
    %c0_75 = arith.constant 0 : index
    %318 = vector.load %arg5[%c3, %c0_74, %c0_75] : memref<8x8x1xf32, #tpu.memory_space<vmem>>, vector<1x8x1xf32>
    %319 = vector.shape_cast %318 : vector<1x8x1xf32> to vector<8x1xf32>
    %320 = vector.shape_cast %317 : vector<8x1xf32> to vector<1x8x1xf32>
    tpu.vector_store %arg5[%c3, %c0_74, %c0_75], %320 {strides = array<i32>} : memref<8x8x1xf32, #tpu.memory_space<vmem>>, vector<1x8x1xf32>,
    %321 = vector.extract_strided_slice %4 {offsets = [32, 0], sizes = [8, 32], strides = [1, 1]} : vector<64x32xf32> to vector<8x32xf32>
    %322 = vector.extract_strided_slice %0 {offsets = [32, 0], sizes = [8, 256], strides = [1, 1]} : vector<64x256xf32> to vector<8x256xf32>
    %cst_76 = arith.constant dense<0xFF800000> : vector<8xf32>
    %323 = vector.multi_reduction <maximumf>, %321, %cst_76 [1] : vector<8x32xf32> to vector<8xf32>
    %324 = vector.shape_cast %323 : vector<8xf32> to vector<8x1xf32>
    %cst_77 = arith.constant dense<0xFF800000> : vector<1xf32>
    %325 = vector.multi_reduction <maximumf>, %324, %cst_77 [0] : vector<8x1xf32> to vector<1xf32>
    %326 = vector.shape_cast %325 : vector<1xf32> to vector<1x1xf32>
    %327 = vector.broadcast %326 : vector<1x1xf32> to vector<8x32xf32>
    %328 = arith.subf %321, %327 : vector<8x32xf32>
    %329 = math.exp %328 : vector<8x32xf32>
    %cst_78 = arith.constant dense<0.000000e+00> : vector<8xf32>
    %330 = vector.multi_reduction <add>, %329, %cst_78 [1] : vector<8x32xf32> to vector<8xf32>
    %331 = vector.shape_cast %330 : vector<8xf32> to vector<8x1xf32>
    %cst_79 = arith.constant dense<0.000000e+00> : vector<1xf32>
    %332 = vector.multi_reduction <add>, %331, %cst_79 [0] : vector<8x1xf32> to vector<1xf32>
    %333 = vector.shape_cast %332 : vector<1xf32> to vector<1x1xf32>
    %cst_80 = arith.constant 0.000000e+00 : f32
    %334 = vector.broadcast %cst_80 : f32 to vector<8x1xf32>
    %335 = vector.extract_strided_slice %322 {offsets = [0, 0], sizes = [8, 32], strides = [1, 1]} : vector<8x256xf32> to vector<8x32xf32>
    %336 = vector.extract_strided_slice %329 {offsets = [0, 0], sizes = [1, 32], strides = [1, 1]} : vector<8x32xf32> to vector<1x32xf32>
    %337 = vector.broadcast %336 : vector<1x32xf32> to vector<8x32xf32>
    %338 = arith.mulf %335, %337 : vector<8x32xf32>
    %cst_81 = arith.constant dense<0.000000e+00> : vector<8xf32>
    %339 = vector.multi_reduction <add>, %338, %cst_81 [1] : vector<8x32xf32> to vector<8xf32>
    %340 = vector.shape_cast %339 : vector<8xf32> to vector<8x1xf32>
    %341 = arith.addf %334, %340 : vector<8x1xf32>
    %342 = vector.extract_strided_slice %322 {offsets = [0, 32], sizes = [8, 32], strides = [1, 1]} : vector<8x256xf32> to vector<8x32xf32>
    %343 = vector.extract_strided_slice %329 {offsets = [1, 0], sizes = [1, 32], strides = [1, 1]} : vector<8x32xf32> to vector<1x32xf32>
    %344 = vector.broadcast %343 : vector<1x32xf32> to vector<8x32xf32>
    %345 = arith.mulf %342, %344 : vector<8x32xf32>
    %cst_82 = arith.constant dense<0.000000e+00> : vector<8xf32>
    %346 = vector.multi_reduction <add>, %345, %cst_82 [1] : vector<8x32xf32> to vector<8xf32>
    %347 = vector.shape_cast %346 : vector<8xf32> to vector<8x1xf32>
    %348 = arith.addf %341, %347 : vector<8x1xf32>
    %349 = vector.extract_strided_slice %322 {offsets = [0, 64], sizes = [8, 32], strides = [1, 1]} : vector<8x256xf32> to vector<8x32xf32>
    %350 = vector.extract_strided_slice %329 {offsets = [2, 0], sizes = [1, 32], strides = [1, 1]} : vector<8x32xf32> to vector<1x32xf32>
    %351 = vector.broadcast %350 : vector<1x32xf32> to vector<8x32xf32>
    %352 = arith.mulf %349, %351 : vector<8x32xf32>
    %cst_83 = arith.constant dense<0.000000e+00> : vector<8xf32>
    %353 = vector.multi_reduction <add>, %352, %cst_83 [1] : vector<8x32xf32> to vector<8xf32>
    %354 = vector.shape_cast %353 : vector<8xf32> to vector<8x1xf32>
    %355 = arith.addf %348, %354 : vector<8x1xf32>
    %356 = vector.extract_strided_slice %322 {offsets = [0, 96], sizes = [8, 32], strides = [1, 1]} : vector<8x256xf32> to vector<8x32xf32>
    %357 = vector.extract_strided_slice %329 {offsets = [3, 0], sizes = [1, 32], strides = [1, 1]} : vector<8x32xf32> to vector<1x32xf32>
    %358 = vector.broadcast %357 : vector<1x32xf32> to vector<8x32xf32>
    %359 = arith.mulf %356, %358 : vector<8x32xf32>
    %cst_84 = arith.constant dense<0.000000e+00> : vector<8xf32>
    %360 = vector.multi_reduction <add>, %359, %cst_84 [1] : vector<8x32xf32> to vector<8xf32>
    %361 = vector.shape_cast %360 : vector<8xf32> to vector<8x1xf32>
    %362 = arith.addf %355, %361 : vector<8x1xf32>
    %363 = vector.extract_strided_slice %322 {offsets = [0, 128], sizes = [8, 32], strides = [1, 1]} : vector<8x256xf32> to vector<8x32xf32>
    %364 = vector.extract_strided_slice %329 {offsets = [4, 0], sizes = [1, 32], strides = [1, 1]} : vector<8x32xf32> to vector<1x32xf32>
    %365 = vector.broadcast %364 : vector<1x32xf32> to vector<8x32xf32>
    %366 = arith.mulf %363, %365 : vector<8x32xf32>
    %cst_85 = arith.constant dense<0.000000e+00> : vector<8xf32>
    %367 = vector.multi_reduction <add>, %366, %cst_85 [1] : vector<8x32xf32> to vector<8xf32>
    %368 = vector.shape_cast %367 : vector<8xf32> to vector<8x1xf32>
    %369 = arith.addf %362, %368 : vector<8x1xf32>
    %370 = vector.extract_strided_slice %322 {offsets = [0, 160], sizes = [8, 32], strides = [1, 1]} : vector<8x256xf32> to vector<8x32xf32>
    %371 = vector.extract_strided_slice %329 {offsets = [5, 0], sizes = [1, 32], strides = [1, 1]} : vector<8x32xf32> to vector<1x32xf32>
    %372 = vector.broadcast %371 : vector<1x32xf32> to vector<8x32xf32>
    %373 = arith.mulf %370, %372 : vector<8x32xf32>
    %cst_86 = arith.constant dense<0.000000e+00> : vector<8xf32>
    %374 = vector.multi_reduction <add>, %373, %cst_86 [1] : vector<8x32xf32> to vector<8xf32>
    %375 = vector.shape_cast %374 : vector<8xf32> to vector<8x1xf32>
    %376 = arith.addf %369, %375 : vector<8x1xf32>
    %377 = vector.extract_strided_slice %322 {offsets = [0, 192], sizes = [8, 32], strides = [1, 1]} : vector<8x256xf32> to vector<8x32xf32>
    %378 = vector.extract_strided_slice %329 {offsets = [6, 0], sizes = [1, 32], strides = [1, 1]} : vector<8x32xf32> to vector<1x32xf32>
    %379 = vector.broadcast %378 : vector<1x32xf32> to vector<8x32xf32>
    %380 = arith.mulf %377, %379 : vector<8x32xf32>
    %cst_87 = arith.constant dense<0.000000e+00> : vector<8xf32>
    %381 = vector.multi_reduction <add>, %380, %cst_87 [1] : vector<8x32xf32> to vector<8xf32>
    %382 = vector.shape_cast %381 : vector<8xf32> to vector<8x1xf32>
    %383 = arith.addf %376, %382 : vector<8x1xf32>
    %384 = vector.extract_strided_slice %322 {offsets = [0, 224], sizes = [8, 32], strides = [1, 1]} : vector<8x256xf32> to vector<8x32xf32>
    %385 = vector.extract_strided_slice %329 {offsets = [7, 0], sizes = [1, 32], strides = [1, 1]} : vector<8x32xf32> to vector<1x32xf32>
    %386 = vector.broadcast %385 : vector<1x32xf32> to vector<8x32xf32>
    %387 = arith.mulf %384, %386 : vector<8x32xf32>
    %cst_88 = arith.constant dense<0.000000e+00> : vector<8xf32>
    %388 = vector.multi_reduction <add>, %387, %cst_88 [1] : vector<8x32xf32> to vector<8xf32>
    %389 = vector.shape_cast %388 : vector<8xf32> to vector<8x1xf32>
    %390 = arith.addf %383, %389 : vector<8x1xf32>
    %cst_89 = arith.constant 1.000000e+00 : f32
    %391 = vector.broadcast %cst_89 : f32 to vector<1x1xf32>
    %392 = arith.divf %391, %333 : vector<1x1xf32>
    %cst_90 = arith.constant dense<0.000000e+00> : vector<8x1xf32>
    %393 = tpu.matmul %2, %390, %cst_90 {dimension_numbers = #tpu.dot_dimension_numbers<[1], [0], [0], [1], [0, 0, 1, 1], [], []>} : vector<8x8xf32>, vector<8x1xf32>, vector<8x1xf32> -> vector<8x1xf32>
    %394 = vector.broadcast %392 : vector<1x1xf32> to vector<8x1xf32>
    %395 = arith.mulf %393, %394 : vector<8x1xf32>
    %396 = arith.addf %395, %3 : vector<8x1xf32>
    %c4 = arith.constant 4 : index
    %c0_91 = arith.constant 0 : index
    %c0_92 = arith.constant 0 : index
    %397 = vector.load %arg5[%c4, %c0_91, %c0_92] : memref<8x8x1xf32, #tpu.memory_space<vmem>>, vector<1x8x1xf32>
    %398 = vector.shape_cast %397 : vector<1x8x1xf32> to vector<8x1xf32>
    %399 = vector.shape_cast %396 : vector<8x1xf32> to vector<1x8x1xf32>
    tpu.vector_store %arg5[%c4, %c0_91, %c0_92], %399 {strides = array<i32>} : memref<8x8x1xf32, #tpu.memory_space<vmem>>, vector<1x8x1xf32>,
    %400 = vector.extract_strided_slice %4 {offsets = [40, 0], sizes = [8, 32], strides = [1, 1]} : vector<64x32xf32> to vector<8x32xf32>
    %401 = vector.extract_strided_slice %0 {offsets = [40, 0], sizes = [8, 256], strides = [1, 1]} : vector<64x256xf32> to vector<8x256xf32>
    %cst_93 = arith.constant dense<0xFF800000> : vector<8xf32>
    %402 = vector.multi_reduction <maximumf>, %400, %cst_93 [1] : vector<8x32xf32> to vector<8xf32>
    %403 = vector.shape_cast %402 : vector<8xf32> to vector<8x1xf32>
    %cst_94 = arith.constant dense<0xFF800000> : vector<1xf32>
    %404 = vector.multi_reduction <maximumf>, %403, %cst_94 [0] : vector<8x1xf32> to vector<1xf32>
    %405 = vector.shape_cast %404 : vector<1xf32> to vector<1x1xf32>
    %406 = vector.broadcast %405 : vector<1x1xf32> to vector<8x32xf32>
    %407 = arith.subf %400, %406 : vector<8x32xf32>
    %408 = math.exp %407 : vector<8x32xf32>
    %cst_95 = arith.constant dense<0.000000e+00> : vector<8xf32>
    %409 = vector.multi_reduction <add>, %408, %cst_95 [1] : vector<8x32xf32> to vector<8xf32>
    %410 = vector.shape_cast %409 : vector<8xf32> to vector<8x1xf32>
    %cst_96 = arith.constant dense<0.000000e+00> : vector<1xf32>
    %411 = vector.multi_reduction <add>, %410, %cst_96 [0] : vector<8x1xf32> to vector<1xf32>
    %412 = vector.shape_cast %411 : vector<1xf32> to vector<1x1xf32>
    %cst_97 = arith.constant 0.000000e+00 : f32
    %413 = vector.broadcast %cst_97 : f32 to vector<8x1xf32>
    %414 = vector.extract_strided_slice %401 {offsets = [0, 0], sizes = [8, 32], strides = [1, 1]} : vector<8x256xf32> to vector<8x32xf32>
    %415 = vector.extract_strided_slice %408 {offsets = [0, 0], sizes = [1, 32], strides = [1, 1]} : vector<8x32xf32> to vector<1x32xf32>
    %416 = vector.broadcast %415 : vector<1x32xf32> to vector<8x32xf32>
    %417 = arith.mulf %414, %416 : vector<8x32xf32>
    %cst_98 = arith.constant dense<0.000000e+00> : vector<8xf32>
    %418 = vector.multi_reduction <add>, %417, %cst_98 [1] : vector<8x32xf32> to vector<8xf32>
    %419 = vector.shape_cast %418 : vector<8xf32> to vector<8x1xf32>
    %420 = arith.addf %413, %419 : vector<8x1xf32>
    %421 = vector.extract_strided_slice %401 {offsets = [0, 32], sizes = [8, 32], strides = [1, 1]} : vector<8x256xf32> to vector<8x32xf32>
    %422 = vector.extract_strided_slice %408 {offsets = [1, 0], sizes = [1, 32], strides = [1, 1]} : vector<8x32xf32> to vector<1x32xf32>
    %423 = vector.broadcast %422 : vector<1x32xf32> to vector<8x32xf32>
    %424 = arith.mulf %421, %423 : vector<8x32xf32>
    %cst_99 = arith.constant dense<0.000000e+00> : vector<8xf32>
    %425 = vector.multi_reduction <add>, %424, %cst_99 [1] : vector<8x32xf32> to vector<8xf32>
    %426 = vector.shape_cast %425 : vector<8xf32> to vector<8x1xf32>
    %427 = arith.addf %420, %426 : vector<8x1xf32>
    %428 = vector.extract_strided_slice %401 {offsets = [0, 64], sizes = [8, 32], strides = [1, 1]} : vector<8x256xf32> to vector<8x32xf32>
    %429 = vector.extract_strided_slice %408 {offsets = [2, 0], sizes = [1, 32], strides = [1, 1]} : vector<8x32xf32> to vector<1x32xf32>
    %430 = vector.broadcast %429 : vector<1x32xf32> to vector<8x32xf32>
    %431 = arith.mulf %428, %430 : vector<8x32xf32>
    %cst_100 = arith.constant dense<0.000000e+00> : vector<8xf32>
    %432 = vector.multi_reduction <add>, %431, %cst_100 [1] : vector<8x32xf32> to vector<8xf32>
    %433 = vector.shape_cast %432 : vector<8xf32> to vector<8x1xf32>
    %434 = arith.addf %427, %433 : vector<8x1xf32>
    %435 = vector.extract_strided_slice %401 {offsets = [0, 96], sizes = [8, 32], strides = [1, 1]} : vector<8x256xf32> to vector<8x32xf32>
    %436 = vector.extract_strided_slice %408 {offsets = [3, 0], sizes = [1, 32], strides = [1, 1]} : vector<8x32xf32> to vector<1x32xf32>
    %437 = vector.broadcast %436 : vector<1x32xf32> to vector<8x32xf32>
    %438 = arith.mulf %435, %437 : vector<8x32xf32>
    %cst_101 = arith.constant dense<0.000000e+00> : vector<8xf32>
    %439 = vector.multi_reduction <add>, %438, %cst_101 [1] : vector<8x32xf32> to vector<8xf32>
    %440 = vector.shape_cast %439 : vector<8xf32> to vector<8x1xf32>
    %441 = arith.addf %434, %440 : vector<8x1xf32>
    %442 = vector.extract_strided_slice %401 {offsets = [0, 128], sizes = [8, 32], strides = [1, 1]} : vector<8x256xf32> to vector<8x32xf32>
    %443 = vector.extract_strided_slice %408 {offsets = [4, 0], sizes = [1, 32], strides = [1, 1]} : vector<8x32xf32> to vector<1x32xf32>
    %444 = vector.broadcast %443 : vector<1x32xf32> to vector<8x32xf32>
    %445 = arith.mulf %442, %444 : vector<8x32xf32>
    %cst_102 = arith.constant dense<0.000000e+00> : vector<8xf32>
    %446 = vector.multi_reduction <add>, %445, %cst_102 [1] : vector<8x32xf32> to vector<8xf32>
    %447 = vector.shape_cast %446 : vector<8xf32> to vector<8x1xf32>
    %448 = arith.addf %441, %447 : vector<8x1xf32>
    %449 = vector.extract_strided_slice %401 {offsets = [0, 160], sizes = [8, 32], strides = [1, 1]} : vector<8x256xf32> to vector<8x32xf32>
    %450 = vector.extract_strided_slice %408 {offsets = [5, 0], sizes = [1, 32], strides = [1, 1]} : vector<8x32xf32> to vector<1x32xf32>
    %451 = vector.broadcast %450 : vector<1x32xf32> to vector<8x32xf32>
    %452 = arith.mulf %449, %451 : vector<8x32xf32>
    %cst_103 = arith.constant dense<0.000000e+00> : vector<8xf32>
    %453 = vector.multi_reduction <add>, %452, %cst_103 [1] : vector<8x32xf32> to vector<8xf32>
    %454 = vector.shape_cast %453 : vector<8xf32> to vector<8x1xf32>
    %455 = arith.addf %448, %454 : vector<8x1xf32>
    %456 = vector.extract_strided_slice %401 {offsets = [0, 192], sizes = [8, 32], strides = [1, 1]} : vector<8x256xf32> to vector<8x32xf32>
    %457 = vector.extract_strided_slice %408 {offsets = [6, 0], sizes = [1, 32], strides = [1, 1]} : vector<8x32xf32> to vector<1x32xf32>
    %458 = vector.broadcast %457 : vector<1x32xf32> to vector<8x32xf32>
    %459 = arith.mulf %456, %458 : vector<8x32xf32>
    %cst_104 = arith.constant dense<0.000000e+00> : vector<8xf32>
    %460 = vector.multi_reduction <add>, %459, %cst_104 [1] : vector<8x32xf32> to vector<8xf32>
    %461 = vector.shape_cast %460 : vector<8xf32> to vector<8x1xf32>
    %462 = arith.addf %455, %461 : vector<8x1xf32>
    %463 = vector.extract_strided_slice %401 {offsets = [0, 224], sizes = [8, 32], strides = [1, 1]} : vector<8x256xf32> to vector<8x32xf32>
    %464 = vector.extract_strided_slice %408 {offsets = [7, 0], sizes = [1, 32], strides = [1, 1]} : vector<8x32xf32> to vector<1x32xf32>
    %465 = vector.broadcast %464 : vector<1x32xf32> to vector<8x32xf32>
    %466 = arith.mulf %463, %465 : vector<8x32xf32>
    %cst_105 = arith.constant dense<0.000000e+00> : vector<8xf32>
    %467 = vector.multi_reduction <add>, %466, %cst_105 [1] : vector<8x32xf32> to vector<8xf32>
    %468 = vector.shape_cast %467 : vector<8xf32> to vector<8x1xf32>
    %469 = arith.addf %462, %468 : vector<8x1xf32>
    %cst_106 = arith.constant 1.000000e+00 : f32
    %470 = vector.broadcast %cst_106 : f32 to vector<1x1xf32>
    %471 = arith.divf %470, %412 : vector<1x1xf32>
    %cst_107 = arith.constant dense<0.000000e+00> : vector<8x1xf32>
    %472 = tpu.matmul %2, %469, %cst_107 {dimension_numbers = #tpu.dot_dimension_numbers<[1], [0], [0], [1], [0, 0, 1, 1], [], []>} : vector<8x8xf32>, vector<8x1xf32>, vector<8x1xf32> -> vector<8x1xf32>
    %473 = vector.broadcast %471 : vector<1x1xf32> to vector<8x1xf32>
    %474 = arith.mulf %472, %473 : vector<8x1xf32>
    %475 = arith.addf %474, %3 : vector<8x1xf32>
    %c5 = arith.constant 5 : index
    %c0_108 = arith.constant 0 : index
    %c0_109 = arith.constant 0 : index
    %476 = vector.load %arg5[%c5, %c0_108, %c0_109] : memref<8x8x1xf32, #tpu.memory_space<vmem>>, vector<1x8x1xf32>
    %477 = vector.shape_cast %476 : vector<1x8x1xf32> to vector<8x1xf32>
    %478 = vector.shape_cast %475 : vector<8x1xf32> to vector<1x8x1xf32>
    tpu.vector_store %arg5[%c5, %c0_108, %c0_109], %478 {strides = array<i32>} : memref<8x8x1xf32, #tpu.memory_space<vmem>>, vector<1x8x1xf32>,
    %479 = vector.extract_strided_slice %4 {offsets = [48, 0], sizes = [8, 32], strides = [1, 1]} : vector<64x32xf32> to vector<8x32xf32>
    %480 = vector.extract_strided_slice %0 {offsets = [48, 0], sizes = [8, 256], strides = [1, 1]} : vector<64x256xf32> to vector<8x256xf32>
    %cst_110 = arith.constant dense<0xFF800000> : vector<8xf32>
    %481 = vector.multi_reduction <maximumf>, %479, %cst_110 [1] : vector<8x32xf32> to vector<8xf32>
    %482 = vector.shape_cast %481 : vector<8xf32> to vector<8x1xf32>
    %cst_111 = arith.constant dense<0xFF800000> : vector<1xf32>
    %483 = vector.multi_reduction <maximumf>, %482, %cst_111 [0] : vector<8x1xf32> to vector<1xf32>
    %484 = vector.shape_cast %483 : vector<1xf32> to vector<1x1xf32>
    %485 = vector.broadcast %484 : vector<1x1xf32> to vector<8x32xf32>
    %486 = arith.subf %479, %485 : vector<8x32xf32>
    %487 = math.exp %486 : vector<8x32xf32>
    %cst_112 = arith.constant dense<0.000000e+00> : vector<8xf32>
    %488 = vector.multi_reduction <add>, %487, %cst_112 [1] : vector<8x32xf32> to vector<8xf32>
    %489 = vector.shape_cast %488 : vector<8xf32> to vector<8x1xf32>
    %cst_113 = arith.constant dense<0.000000e+00> : vector<1xf32>
    %490 = vector.multi_reduction <add>, %489, %cst_113 [0] : vector<8x1xf32> to vector<1xf32>
    %491 = vector.shape_cast %490 : vector<1xf32> to vector<1x1xf32>
    %cst_114 = arith.constant 0.000000e+00 : f32
    %492 = vector.broadcast %cst_114 : f32 to vector<8x1xf32>
    %493 = vector.extract_strided_slice %480 {offsets = [0, 0], sizes = [8, 32], strides = [1, 1]} : vector<8x256xf32> to vector<8x32xf32>
    %494 = vector.extract_strided_slice %487 {offsets = [0, 0], sizes = [1, 32], strides = [1, 1]} : vector<8x32xf32> to vector<1x32xf32>
    %495 = vector.broadcast %494 : vector<1x32xf32> to vector<8x32xf32>
    %496 = arith.mulf %493, %495 : vector<8x32xf32>
    %cst_115 = arith.constant dense<0.000000e+00> : vector<8xf32>
    %497 = vector.multi_reduction <add>, %496, %cst_115 [1] : vector<8x32xf32> to vector<8xf32>
    %498 = vector.shape_cast %497 : vector<8xf32> to vector<8x1xf32>
    %499 = arith.addf %492, %498 : vector<8x1xf32>
    %500 = vector.extract_strided_slice %480 {offsets = [0, 32], sizes = [8, 32], strides = [1, 1]} : vector<8x256xf32> to vector<8x32xf32>
    %501 = vector.extract_strided_slice %487 {offsets = [1, 0], sizes = [1, 32], strides = [1, 1]} : vector<8x32xf32> to vector<1x32xf32>
    %502 = vector.broadcast %501 : vector<1x32xf32> to vector<8x32xf32>
    %503 = arith.mulf %500, %502 : vector<8x32xf32>
    %cst_116 = arith.constant dense<0.000000e+00> : vector<8xf32>
    %504 = vector.multi_reduction <add>, %503, %cst_116 [1] : vector<8x32xf32> to vector<8xf32>
    %505 = vector.shape_cast %504 : vector<8xf32> to vector<8x1xf32>
    %506 = arith.addf %499, %505 : vector<8x1xf32>
    %507 = vector.extract_strided_slice %480 {offsets = [0, 64], sizes = [8, 32], strides = [1, 1]} : vector<8x256xf32> to vector<8x32xf32>
    %508 = vector.extract_strided_slice %487 {offsets = [2, 0], sizes = [1, 32], strides = [1, 1]} : vector<8x32xf32> to vector<1x32xf32>
    %509 = vector.broadcast %508 : vector<1x32xf32> to vector<8x32xf32>
    %510 = arith.mulf %507, %509 : vector<8x32xf32>
    %cst_117 = arith.constant dense<0.000000e+00> : vector<8xf32>
    %511 = vector.multi_reduction <add>, %510, %cst_117 [1] : vector<8x32xf32> to vector<8xf32>
    %512 = vector.shape_cast %511 : vector<8xf32> to vector<8x1xf32>
    %513 = arith.addf %506, %512 : vector<8x1xf32>
    %514 = vector.extract_strided_slice %480 {offsets = [0, 96], sizes = [8, 32], strides = [1, 1]} : vector<8x256xf32> to vector<8x32xf32>
    %515 = vector.extract_strided_slice %487 {offsets = [3, 0], sizes = [1, 32], strides = [1, 1]} : vector<8x32xf32> to vector<1x32xf32>
    %516 = vector.broadcast %515 : vector<1x32xf32> to vector<8x32xf32>
    %517 = arith.mulf %514, %516 : vector<8x32xf32>
    %cst_118 = arith.constant dense<0.000000e+00> : vector<8xf32>
    %518 = vector.multi_reduction <add>, %517, %cst_118 [1] : vector<8x32xf32> to vector<8xf32>
    %519 = vector.shape_cast %518 : vector<8xf32> to vector<8x1xf32>
    %520 = arith.addf %513, %519 : vector<8x1xf32>
    %521 = vector.extract_strided_slice %480 {offsets = [0, 128], sizes = [8, 32], strides = [1, 1]} : vector<8x256xf32> to vector<8x32xf32>
    %522 = vector.extract_strided_slice %487 {offsets = [4, 0], sizes = [1, 32], strides = [1, 1]} : vector<8x32xf32> to vector<1x32xf32>
    %523 = vector.broadcast %522 : vector<1x32xf32> to vector<8x32xf32>
    %524 = arith.mulf %521, %523 : vector<8x32xf32>
    %cst_119 = arith.constant dense<0.000000e+00> : vector<8xf32>
    %525 = vector.multi_reduction <add>, %524, %cst_119 [1] : vector<8x32xf32> to vector<8xf32>
    %526 = vector.shape_cast %525 : vector<8xf32> to vector<8x1xf32>
    %527 = arith.addf %520, %526 : vector<8x1xf32>
    %528 = vector.extract_strided_slice %480 {offsets = [0, 160], sizes = [8, 32], strides = [1, 1]} : vector<8x256xf32> to vector<8x32xf32>
    %529 = vector.extract_strided_slice %487 {offsets = [5, 0], sizes = [1, 32], strides = [1, 1]} : vector<8x32xf32> to vector<1x32xf32>
    %530 = vector.broadcast %529 : vector<1x32xf32> to vector<8x32xf32>
    %531 = arith.mulf %528, %530 : vector<8x32xf32>
    %cst_120 = arith.constant dense<0.000000e+00> : vector<8xf32>
    %532 = vector.multi_reduction <add>, %531, %cst_120 [1] : vector<8x32xf32> to vector<8xf32>
    %533 = vector.shape_cast %532 : vector<8xf32> to vector<8x1xf32>
    %534 = arith.addf %527, %533 : vector<8x1xf32>
    %535 = vector.extract_strided_slice %480 {offsets = [0, 192], sizes = [8, 32], strides = [1, 1]} : vector<8x256xf32> to vector<8x32xf32>
    %536 = vector.extract_strided_slice %487 {offsets = [6, 0], sizes = [1, 32], strides = [1, 1]} : vector<8x32xf32> to vector<1x32xf32>
    %537 = vector.broadcast %536 : vector<1x32xf32> to vector<8x32xf32>
    %538 = arith.mulf %535, %537 : vector<8x32xf32>
    %cst_121 = arith.constant dense<0.000000e+00> : vector<8xf32>
    %539 = vector.multi_reduction <add>, %538, %cst_121 [1] : vector<8x32xf32> to vector<8xf32>
    %540 = vector.shape_cast %539 : vector<8xf32> to vector<8x1xf32>
    %541 = arith.addf %534, %540 : vector<8x1xf32>
    %542 = vector.extract_strided_slice %480 {offsets = [0, 224], sizes = [8, 32], strides = [1, 1]} : vector<8x256xf32> to vector<8x32xf32>
    %543 = vector.extract_strided_slice %487 {offsets = [7, 0], sizes = [1, 32], strides = [1, 1]} : vector<8x32xf32> to vector<1x32xf32>
    %544 = vector.broadcast %543 : vector<1x32xf32> to vector<8x32xf32>
    %545 = arith.mulf %542, %544 : vector<8x32xf32>
    %cst_122 = arith.constant dense<0.000000e+00> : vector<8xf32>
    %546 = vector.multi_reduction <add>, %545, %cst_122 [1] : vector<8x32xf32> to vector<8xf32>
    %547 = vector.shape_cast %546 : vector<8xf32> to vector<8x1xf32>
    %548 = arith.addf %541, %547 : vector<8x1xf32>
    %cst_123 = arith.constant 1.000000e+00 : f32
    %549 = vector.broadcast %cst_123 : f32 to vector<1x1xf32>
    %550 = arith.divf %549, %491 : vector<1x1xf32>
    %cst_124 = arith.constant dense<0.000000e+00> : vector<8x1xf32>
    %551 = tpu.matmul %2, %548, %cst_124 {dimension_numbers = #tpu.dot_dimension_numbers<[1], [0], [0], [1], [0, 0, 1, 1], [], []>} : vector<8x8xf32>, vector<8x1xf32>, vector<8x1xf32> -> vector<8x1xf32>
    %552 = vector.broadcast %550 : vector<1x1xf32> to vector<8x1xf32>
    %553 = arith.mulf %551, %552 : vector<8x1xf32>
    %554 = arith.addf %553, %3 : vector<8x1xf32>
    %c6 = arith.constant 6 : index
    %c0_125 = arith.constant 0 : index
    %c0_126 = arith.constant 0 : index
    %555 = vector.load %arg5[%c6, %c0_125, %c0_126] : memref<8x8x1xf32, #tpu.memory_space<vmem>>, vector<1x8x1xf32>
    %556 = vector.shape_cast %555 : vector<1x8x1xf32> to vector<8x1xf32>
    %557 = vector.shape_cast %554 : vector<8x1xf32> to vector<1x8x1xf32>
    tpu.vector_store %arg5[%c6, %c0_125, %c0_126], %557 {strides = array<i32>} : memref<8x8x1xf32, #tpu.memory_space<vmem>>, vector<1x8x1xf32>,
    %558 = vector.extract_strided_slice %4 {offsets = [56, 0], sizes = [8, 32], strides = [1, 1]} : vector<64x32xf32> to vector<8x32xf32>
    %559 = vector.extract_strided_slice %0 {offsets = [56, 0], sizes = [8, 256], strides = [1, 1]} : vector<64x256xf32> to vector<8x256xf32>
    %cst_127 = arith.constant dense<0xFF800000> : vector<8xf32>
    %560 = vector.multi_reduction <maximumf>, %558, %cst_127 [1] : vector<8x32xf32> to vector<8xf32>
    %561 = vector.shape_cast %560 : vector<8xf32> to vector<8x1xf32>
    %cst_128 = arith.constant dense<0xFF800000> : vector<1xf32>
    %562 = vector.multi_reduction <maximumf>, %561, %cst_128 [0] : vector<8x1xf32> to vector<1xf32>
    %563 = vector.shape_cast %562 : vector<1xf32> to vector<1x1xf32>
    %564 = vector.broadcast %563 : vector<1x1xf32> to vector<8x32xf32>
    %565 = arith.subf %558, %564 : vector<8x32xf32>
    %566 = math.exp %565 : vector<8x32xf32>
    %cst_129 = arith.constant dense<0.000000e+00> : vector<8xf32>
    %567 = vector.multi_reduction <add>, %566, %cst_129 [1] : vector<8x32xf32> to vector<8xf32>
    %568 = vector.shape_cast %567 : vector<8xf32> to vector<8x1xf32>
    %cst_130 = arith.constant dense<0.000000e+00> : vector<1xf32>
    %569 = vector.multi_reduction <add>, %568, %cst_130 [0] : vector<8x1xf32> to vector<1xf32>
    %570 = vector.shape_cast %569 : vector<1xf32> to vector<1x1xf32>
    %cst_131 = arith.constant 0.000000e+00 : f32
    %571 = vector.broadcast %cst_131 : f32 to vector<8x1xf32>
    %572 = vector.extract_strided_slice %559 {offsets = [0, 0], sizes = [8, 32], strides = [1, 1]} : vector<8x256xf32> to vector<8x32xf32>
    %573 = vector.extract_strided_slice %566 {offsets = [0, 0], sizes = [1, 32], strides = [1, 1]} : vector<8x32xf32> to vector<1x32xf32>
    %574 = vector.broadcast %573 : vector<1x32xf32> to vector<8x32xf32>
    %575 = arith.mulf %572, %574 : vector<8x32xf32>
    %cst_132 = arith.constant dense<0.000000e+00> : vector<8xf32>
    %576 = vector.multi_reduction <add>, %575, %cst_132 [1] : vector<8x32xf32> to vector<8xf32>
    %577 = vector.shape_cast %576 : vector<8xf32> to vector<8x1xf32>
    %578 = arith.addf %571, %577 : vector<8x1xf32>
    %579 = vector.extract_strided_slice %559 {offsets = [0, 32], sizes = [8, 32], strides = [1, 1]} : vector<8x256xf32> to vector<8x32xf32>
    %580 = vector.extract_strided_slice %566 {offsets = [1, 0], sizes = [1, 32], strides = [1, 1]} : vector<8x32xf32> to vector<1x32xf32>
    %581 = vector.broadcast %580 : vector<1x32xf32> to vector<8x32xf32>
    %582 = arith.mulf %579, %581 : vector<8x32xf32>
    %cst_133 = arith.constant dense<0.000000e+00> : vector<8xf32>
    %583 = vector.multi_reduction <add>, %582, %cst_133 [1] : vector<8x32xf32> to vector<8xf32>
    %584 = vector.shape_cast %583 : vector<8xf32> to vector<8x1xf32>
    %585 = arith.addf %578, %584 : vector<8x1xf32>
    %586 = vector.extract_strided_slice %559 {offsets = [0, 64], sizes = [8, 32], strides = [1, 1]} : vector<8x256xf32> to vector<8x32xf32>
    %587 = vector.extract_strided_slice %566 {offsets = [2, 0], sizes = [1, 32], strides = [1, 1]} : vector<8x32xf32> to vector<1x32xf32>
    %588 = vector.broadcast %587 : vector<1x32xf32> to vector<8x32xf32>
    %589 = arith.mulf %586, %588 : vector<8x32xf32>
    %cst_134 = arith.constant dense<0.000000e+00> : vector<8xf32>
    %590 = vector.multi_reduction <add>, %589, %cst_134 [1] : vector<8x32xf32> to vector<8xf32>
    %591 = vector.shape_cast %590 : vector<8xf32> to vector<8x1xf32>
    %592 = arith.addf %585, %591 : vector<8x1xf32>
    %593 = vector.extract_strided_slice %559 {offsets = [0, 96], sizes = [8, 32], strides = [1, 1]} : vector<8x256xf32> to vector<8x32xf32>
    %594 = vector.extract_strided_slice %566 {offsets = [3, 0], sizes = [1, 32], strides = [1, 1]} : vector<8x32xf32> to vector<1x32xf32>
    %595 = vector.broadcast %594 : vector<1x32xf32> to vector<8x32xf32>
    %596 = arith.mulf %593, %595 : vector<8x32xf32>
    %cst_135 = arith.constant dense<0.000000e+00> : vector<8xf32>
    %597 = vector.multi_reduction <add>, %596, %cst_135 [1] : vector<8x32xf32> to vector<8xf32>
    %598 = vector.shape_cast %597 : vector<8xf32> to vector<8x1xf32>
    %599 = arith.addf %592, %598 : vector<8x1xf32>
    %600 = vector.extract_strided_slice %559 {offsets = [0, 128], sizes = [8, 32], strides = [1, 1]} : vector<8x256xf32> to vector<8x32xf32>
    %601 = vector.extract_strided_slice %566 {offsets = [4, 0], sizes = [1, 32], strides = [1, 1]} : vector<8x32xf32> to vector<1x32xf32>
    %602 = vector.broadcast %601 : vector<1x32xf32> to vector<8x32xf32>
    %603 = arith.mulf %600, %602 : vector<8x32xf32>
    %cst_136 = arith.constant dense<0.000000e+00> : vector<8xf32>
    %604 = vector.multi_reduction <add>, %603, %cst_136 [1] : vector<8x32xf32> to vector<8xf32>
    %605 = vector.shape_cast %604 : vector<8xf32> to vector<8x1xf32>
    %606 = arith.addf %599, %605 : vector<8x1xf32>
    %607 = vector.extract_strided_slice %559 {offsets = [0, 160], sizes = [8, 32], strides = [1, 1]} : vector<8x256xf32> to vector<8x32xf32>
    %608 = vector.extract_strided_slice %566 {offsets = [5, 0], sizes = [1, 32], strides = [1, 1]} : vector<8x32xf32> to vector<1x32xf32>
    %609 = vector.broadcast %608 : vector<1x32xf32> to vector<8x32xf32>
    %610 = arith.mulf %607, %609 : vector<8x32xf32>
    %cst_137 = arith.constant dense<0.000000e+00> : vector<8xf32>
    %611 = vector.multi_reduction <add>, %610, %cst_137 [1] : vector<8x32xf32> to vector<8xf32>
    %612 = vector.shape_cast %611 : vector<8xf32> to vector<8x1xf32>
    %613 = arith.addf %606, %612 : vector<8x1xf32>
    %614 = vector.extract_strided_slice %559 {offsets = [0, 192], sizes = [8, 32], strides = [1, 1]} : vector<8x256xf32> to vector<8x32xf32>
    %615 = vector.extract_strided_slice %566 {offsets = [6, 0], sizes = [1, 32], strides = [1, 1]} : vector<8x32xf32> to vector<1x32xf32>
    %616 = vector.broadcast %615 : vector<1x32xf32> to vector<8x32xf32>
    %617 = arith.mulf %614, %616 : vector<8x32xf32>
    %cst_138 = arith.constant dense<0.000000e+00> : vector<8xf32>
    %618 = vector.multi_reduction <add>, %617, %cst_138 [1] : vector<8x32xf32> to vector<8xf32>
    %619 = vector.shape_cast %618 : vector<8xf32> to vector<8x1xf32>
    %620 = arith.addf %613, %619 : vector<8x1xf32>
    %621 = vector.extract_strided_slice %559 {offsets = [0, 224], sizes = [8, 32], strides = [1, 1]} : vector<8x256xf32> to vector<8x32xf32>
    %622 = vector.extract_strided_slice %566 {offsets = [7, 0], sizes = [1, 32], strides = [1, 1]} : vector<8x32xf32> to vector<1x32xf32>
    %623 = vector.broadcast %622 : vector<1x32xf32> to vector<8x32xf32>
    %624 = arith.mulf %621, %623 : vector<8x32xf32>
    %cst_139 = arith.constant dense<0.000000e+00> : vector<8xf32>
    %625 = vector.multi_reduction <add>, %624, %cst_139 [1] : vector<8x32xf32> to vector<8xf32>
    %626 = vector.shape_cast %625 : vector<8xf32> to vector<8x1xf32>
    %627 = arith.addf %620, %626 : vector<8x1xf32>
    %cst_140 = arith.constant 1.000000e+00 : f32
    %628 = vector.broadcast %cst_140 : f32 to vector<1x1xf32>
    %629 = arith.divf %628, %570 : vector<1x1xf32>
    %cst_141 = arith.constant dense<0.000000e+00> : vector<8x1xf32>
    %630 = tpu.matmul %2, %627, %cst_141 {dimension_numbers = #tpu.dot_dimension_numbers<[1], [0], [0], [1], [0, 0, 1, 1], [], []>} : vector<8x8xf32>, vector<8x1xf32>, vector<8x1xf32> -> vector<8x1xf32>
    %631 = vector.broadcast %629 : vector<1x1xf32> to vector<8x1xf32>
    %632 = arith.mulf %630, %631 : vector<8x1xf32>
    %633 = arith.addf %632, %3 : vector<8x1xf32>
    %c7 = arith.constant 7 : index
    %c0_142 = arith.constant 0 : index
    %c0_143 = arith.constant 0 : index
    %634 = vector.load %arg5[%c7, %c0_142, %c0_143] : memref<8x8x1xf32, #tpu.memory_space<vmem>>, vector<1x8x1xf32>
    %635 = vector.shape_cast %634 : vector<1x8x1xf32> to vector<8x1xf32>
    %636 = vector.shape_cast %633 : vector<8x1xf32> to vector<1x8x1xf32>
    tpu.vector_store %arg5[%c7, %c0_142, %c0_143], %636 {strides = array<i32>} : memref<8x8x1xf32, #tpu.memory_space<vmem>>, vector<1x8x1xf32>,
    return
  }
  func.func @transform_0(%arg0: i32) -> (i32, i32) {
    %c0_i32 = arith.constant 0 : i32
    %c0_i32_0 = arith.constant 0 : i32
    return %arg0, %c0_i32 : i32, i32
  }
  func.func @transform_1(%arg0: i32) -> (i32, i32) {
    %c0_i32 = arith.constant 0 : i32
    %c0_i32_0 = arith.constant 0 : i32
    %c0_i32_1 = arith.constant 0 : i32
    return %c0_i32, %c0_i32_0 : i32, i32
  }
  func.func @transform_2(%arg0: i32) -> (i32, i32) {
    %c0_i32 = arith.constant 0 : i32
    %c0_i32_0 = arith.constant 0 : i32
    %c0_i32_1 = arith.constant 0 : i32
    return %c0_i32, %c0_i32_0 : i32, i32
  }
  func.func @transform_3(%arg0: i32) -> (i32, i32) {
    %c0_i32 = arith.constant 0 : i32
    %c0_i32_0 = arith.constant 0 : i32
    %c0_i32_1 = arith.constant 0 : i32
    return %c0_i32, %c0_i32_0 : i32, i32
  }
  func.func @transform_4(%arg0: i32) -> (i32, i32, i32) {
    %c0_i32 = arith.constant 0 : i32
    %c0_i32_0 = arith.constant 0 : i32
    %c0_i32_1 = arith.constant 0 : i32
    return %arg0, %c0_i32, %c0_i32_0 : i32, i32, i32
  }
}

</mosaic_0001>

<llo_original>
// kernel: tpu_custom_call.1
$region0: #{tpu_custom_call.1}
  #allocation0 [shape = 'u32[]', space=smem, size = 0x4, offset = 0x4, fixed_abs, tag = 'smem constant byte address 0x4 - core index']
  #allocation1 [shape = 'u32[144,128]{1,0:T(1,128)}', space=vmem, size = 0x12000, scoped, tag = 'internal scratch']
  %s0 = inlined_call_operand.vmem [shape: f32[128,256], index: 0, kind: input, shape index: {}]
  %s1 = inlined_call_operand.vmem [shape: f32[256,32], index: 1, kind: input, shape index: {}]
  %s2 = inlined_call_operand.vmem [shape: f32[8,8], index: 2, kind: input, shape index: {}]
  %s3 = inlined_call_operand.vmem [shape: f32[8,1], index: 3, kind: input, shape index: {}]
  %s4 = inlined_call_operand.vmem [shape: f32[16,8,1], index: 4, kind: output, shape index: {}]
  %s5 = sld [smem:[#allocation0]]
  $region49: #{tpu_custom_call.1} parent=0
    _
  %s7 = ssub.s32 1, %s5
  %s8 = scalar_select 0, %s7, %s5
  loop: start=0, step=1, limit=4
  $region2: #{tpu_custom_call.1} parent=0 // loop_pre_header
    _
  $region3: #{tpu_custom_call.1} parent=0 // loop_header
    %s10 = sphi 0, %s14
    %p11 = scmp.ge.s32.totalorder %s10, 4
    %s20 = sphi 0, %s22
    %s23 = sphi 0, %s20
    %s24 = sphi 0, %s23
    %s40 = sphi 0, %s24
    %s44 = sphi 0, %s44
    %s46 = sphi 0, %s44
    %s47 = sphi 0, %s46
    %s61 = sphi 0, %s47
    %s65 = sphi 0, %s65
    %s67 = sphi 0, %s65
    %s68 = sphi 0, %s67
    %s82 = sphi 0, %s68
    %s86 = sphi 0, %s86
    %s88 = sphi 0, %s86
    %s89 = sphi 0, %s88
    %s103 = sphi 0, %s89
    %s109 = sphi 0, %s111
    %s112 = sphi 0, %s109
    %s113 = sphi 0, %s112
    %s129 = sphi 0, %s113
  $region4: #{tpu_custom_call.1} parent=0 // loop_header_branch
    %13 = sbr.rel (%p11) target = $region8
  $region5: #{tpu_custom_call.1} parent=0 // loop_body
    %s15 = ssub.s32 %s10, 1
    %s16 = ssub.s32 %s10, 2
    %s17 = sadd.s32 %s10, 1
    %s18 = ssub.s32 %s10, %s17
    %p19 = scmp.eq.s32.totalorder %s18, 0
    %s21 = sadd.s32 %s20, 1
    %s22 = scalar_select %p19, %s20, %s21
    %p25 = pneg %p19
    %p26 = scmp.eq.s32.totalorder %s10, 1
    %p27 = por %p25, %p26
    %p28 = scmp.ne.s32.totalorder %s20, %s23
    %p29 = scmp.eq.s32.totalorder %s10, 0
    %p30 = por %p28, %p29
    %p31 = scmp.ne.s32.totalorder %s20, %s23
    %p32 = scmp.eq.s32.totalorder %s15, 1
    %p33 = por %p31, %p32
    %p34 = scmp.ne.s32.totalorder %s23, %s24
    %p35 = scmp.eq.s32.totalorder %s15, 0
    %p36 = por %p34, %p35
    %p37 = scmp.ne.s32.totalorder %s23, %s24
    %p38 = scmp.eq.s32.totalorder %s16, 1
    %p39 = por %p37, %p38
    %p41 = scmp.ne.s32.totalorder %s24, %s40
    %p42 = scmp.eq.s32.totalorder %s16, 0
    %p43 = por %p41, %p42
    %s45 = sadd.s32 %s44, 1
    %p48 = scmp.eq.s32.totalorder %s10, 1
    %p49 = scmp.ne.s32.totalorder %s44, %s46
    %p50 = scmp.eq.s32.totalorder %s10, 0
    %p51 = por %p49, %p50
    %p52 = scmp.ne.s32.totalorder %s44, %s46
    %p53 = scmp.eq.s32.totalorder %s15, 1
    %p54 = por %p52, %p53
    %p55 = scmp.ne.s32.totalorder %s46, %s47
    %p56 = scmp.eq.s32.totalorder %s15, 0
    %p57 = por %p55, %p56
    %p58 = scmp.ne.s32.totalorder %s46, %s47
    %p59 = scmp.eq.s32.totalorder %s16, 1
    %p60 = por %p58, %p59
    %p62 = scmp.ne.s32.totalorder %s47, %s61
    %p63 = scmp.eq.s32.totalorder %s16, 0
    %p64 = por %p62, %p63
    %s66 = sadd.s32 %s65, 1
    %p69 = scmp.eq.s32.totalorder %s10, 1
    %p70 = scmp.ne.s32.totalorder %s65, %s67
    %p71 = scmp.eq.s32.totalorder %s10, 0
    %p72 = por %p70, %p71
    %p73 = scmp.ne.s32.totalorder %s65, %s67
    %p74 = scmp.eq.s32.totalorder %s15, 1
    %p75 = por %p73, %p74
    %p76 = scmp.ne.s32.totalorder %s67, %s68
    %p77 = scmp.eq.s32.totalorder %s15, 0
    %p78 = por %p76, %p77
    %p79 = scmp.ne.s32.totalorder %s67, %s68
    %p80 = scmp.eq.s32.totalorder %s16, 1
    %p81 = por %p79, %p80
    %p83 = scmp.ne.s32.totalorder %s68, %s82
    %p84 = scmp.eq.s32.totalorder %s16, 0
    %p85 = por %p83, %p84
    %s87 = sadd.s32 %s86, 1
    %p90 = scmp.eq.s32.totalorder %s10, 1
    %p91 = scmp.ne.s32.totalorder %s86, %s88
    %p92 = scmp.eq.s32.totalorder %s10, 0
    %p93 = por %p91, %p92
    %p94 = scmp.ne.s32.totalorder %s86, %s88
    %p95 = scmp.eq.s32.totalorder %s15, 1
    %p96 = por %p94, %p95
    %p97 = scmp.ne.s32.totalorder %s88, %s89
    %p98 = scmp.eq.s32.totalorder %s15, 0
    %p99 = por %p97, %p98
    %p100 = scmp.ne.s32.totalorder %s88, %s89
    %p101 = scmp.eq.s32.totalorder %s16, 1
    %p102 = por %p100, %p101
    %p104 = scmp.ne.s32.totalorder %s89, %s103
    %p105 = scmp.eq.s32.totalorder %s16, 0
    %p106 = por %p104, %p105
    %s107 = ssub.s32 %s10, %s17
    %p108 = scmp.eq.s32.totalorder %s107, 0
    %s110 = sadd.s32 %s109, 1
    %s111 = scalar_select %p108, %s109, %s110
    %p114 = pneg %p108
    %p115 = scmp.eq.s32.totalorder %s10, 1
    %p116 = por %p114, %p115
    %p117 = scmp.ne.s32.totalorder %s109, %s112
    %p118 = scmp.eq.s32.totalorder %s10, 0
    %p119 = por %p117, %p118
    %p120 = scmp.ne.s32.totalorder %s109, %s112
    %p121 = scmp.eq.s32.totalorder %s15, 1
    %p122 = por %p120, %p121
    %p123 = scmp.ne.s32.totalorder %s112, %s113
    %p124 = scmp.eq.s32.totalorder %s15, 0
    %p125 = por %p123, %p124
    %p126 = scmp.ne.s32.totalorder %s112, %s113
    %p127 = scmp.eq.s32.totalorder %s16, 1
    %p128 = por %p126, %p127
    %p130 = scmp.ne.s32.totalorder %s113, %s129
    %p131 = scmp.eq.s32.totalorder %s16, 0
    %p132 = por %p130, %p131
    %p133 = scmp.le.s32.totalorder 1, %s10
    %p134 = scmp.lt.s32.totalorder %s10, 3
    %p135 = pnand %p133, %p134
    %p136 = pneg %p135
    // Predicated region
    $region9: #{tpu_custom_call.1} parent=5 // pred_check
      _
    $region10: #{tpu_custom_call.1} parent=5 // pred_check_branch
      %138 = sbr.rel (%p135) target = $region12
    $region11: #{tpu_custom_call.1} parent=5 // pred_region
      %s139 = ssub.s32 %s10, 1
      // Predicated region
      $region13: #{tpu_custom_call.1} parent=11 // pred_check
        %p140 = pneg %p57
      $region14: #{tpu_custom_call.1} parent=11 // pred_check_branch
        %142 = sbr.rel (%p140) target = $region16
      $region15: #{tpu_custom_call.1} parent=11 // pred_region
        _
      $region16: #{tpu_custom_call.1} parent=11 // pred_fallthru
        _
      // Predicated region
      $region17: #{tpu_custom_call.1} parent=11 // pred_check
        %p143 = pneg %p78
      $region18: #{tpu_custom_call.1} parent=11 // pred_check_branch
        %145 = sbr.rel (%p143) target = $region20
      $region19: #{tpu_custom_call.1} parent=11 // pred_region
        _
      $region20: #{tpu_custom_call.1} parent=11 // pred_fallthru
        _
      // Predicated region
      $region21: #{tpu_custom_call.1} parent=11 // pred_check
        %p146 = pneg %p99
      $region22: #{tpu_custom_call.1} parent=11 // pred_check_branch
        %148 = sbr.rel (%p146) target = $region24
      $region23: #{tpu_custom_call.1} parent=11 // pred_region
        _
      $region24: #{tpu_custom_call.1} parent=11 // pred_fallthru
        _
    $region12: #{tpu_custom_call.1} parent=5 // pred_fallthru
      _
    %p149 = scmp.lt.s32.totalorder %s10, 2
    // Predicated region
    $region25: #{tpu_custom_call.1} parent=5 // pred_check
      %p150 = pneg %p149
    $region26: #{tpu_custom_call.1} parent=5 // pred_check_branch
      %152 = sbr.rel (%p150) target = $region28
    $region27: #{tpu_custom_call.1} parent=5 // pred_region
      // Predicated region
      $region29: #{tpu_custom_call.1} parent=27 // pred_check
        %p153 = pneg %p30
      $region30: #{tpu_custom_call.1} parent=27 // pred_check_branch
        %155 = sbr.rel (%p153) target = $region32
      $region31: #{tpu_custom_call.1} parent=27 // pred_region
        %s156 = smul.u32 8, %s10
        %p157 = scmp.lt.s32.totalorder %s156, 15
        %s158 = scalar_select %p157, %s156, 15
        %s159 = smul.addr %s158, 2
        %s160 = smul.addr %s159, 8
        %s161 = scalar_lea.vmem %s0, %s160
        %s162 = smul.u32 8, %s10
      $region32: #{tpu_custom_call.1} parent=27 // pred_fallthru
        _
    $region28: #{tpu_custom_call.1} parent=5 // pred_fallthru
      _
    %p163 = scmp.le.s32.totalorder 1, %s10
    %p164 = scmp.lt.s32.totalorder %s10, 3
    %p165 = pnand %p163, %p164
    %p166 = pneg %p165
    // Predicated region
    $region33: #{tpu_custom_call.1} parent=5 // pred_check
      _
    $region34: #{tpu_custom_call.1} parent=5 // pred_check_branch
      %168 = sbr.rel (%p165) target = $region36
    $region35: #{tpu_custom_call.1} parent=5 // pred_region
      %s169 = ssub.s32 %s10, 1
      %s170 = smul.u32 8, %s15
      %p171 = scmp.lt.s32.totalorder %s170, 15
      %s172 = scalar_select %p171, %s170, 15
      %s173 = smul.addr %s172, 2
      %s174 = smul.addr %s173, 8
      %s175 = scalar_lea.vmem %s0, %s174
      %p176 = pneg %p36
      %p177 = pneg %p33
      %p178 = pneg %p57
      %p179 = pneg %p54
      %p180 = pneg %p78
      %p181 = pneg %p75
      %p182 = pneg %p99
      %p183 = pneg %p96
      %p184 = pneg %p125
      %p185 = pneg %p122
      %s186 = smul.u32 8, %s15
      %p187 = scmp.lt.s32.totalorder %s186, 15
      %s188 = scalar_select %p187, %s186, 15
      %s189 = smul.addr %s188, 8
      %s190 = scalar_lea.vmem %s4, %s189
      %s191 = smul.u32 8, %s15
      %p192 = scmp.lt.s32.totalorder %s191, 15
      %s193 = scalar_select %p192, %s191, 15
      %s194 = smul.addr %s193, 2
      %s195 = smul.addr %s194, 8
      %s196 = scalar_lea.vmem %s0, %s195
      %s197 = smul.u32 8, %s15
      %s198 = smul.u32 8, %s15
      %p199 = scmp.lt.s32.totalorder %s198, 15
      %s200 = scalar_select %p199, %s198, 15
      %s201 = smul.addr %s200, 8
      %s202 = scalar_lea.vmem %s4, %s201
      %s203 = smul.u32 8, %s15
      %v204 = vld [vmem:[%s196] sm:$0xff]
      %v205 = vld [vmem:[%s196 + $0x8] sm:$0xff]
      %v206 = vld [vmem:[%s196 + $0x10] sm:$0xff]
      %v207 = vld [vmem:[%s196 + $0x18] sm:$0xff]
      %v208 = vld [vmem:[%s196 + $0x20] sm:$0xff]
      %v209 = vld [vmem:[%s196 + $0x28] sm:$0xff]
      %v210 = vld [vmem:[%s196 + $0x30] sm:$0xff]
      %v211 = vld [vmem:[%s196 + $0x38] sm:$0xff]
      %v212 = vld [vmem:[%s196 + $0x40] sm:$0xff]
      %v213 = vld [vmem:[%s196 + $0x48] sm:$0xff]
      %v214 = vld [vmem:[%s196 + $0x50] sm:$0xff]
      %v215 = vld [vmem:[%s196 + $0x58] sm:$0xff]
      %v216 = vld [vmem:[%s196 + $0x60] sm:$0xff]
      %v217 = vld [vmem:[%s196 + $0x68] sm:$0xff]
      %v218 = vld [vmem:[%s196 + $0x70] sm:$0xff]
      %v219 = vld [vmem:[%s196 + $0x78] sm:$0xff]
      %v220 = vld [vmem:[%s1] sm:$0xff]
      %v221 = vld [vmem:[%s1 + $0x8] sm:$0xff]
      %v222 = vld [vmem:[%s1 + $0x10] sm:$0xff]
      %v223 = vld [vmem:[%s1 + $0x18] sm:$0xff]
      %v224 = vld [vmem:[%s1 + $0x20] sm:$0xff]
      %v225 = vld [vmem:[%s1 + $0x28] sm:$0xff]
      %v226 = vld [vmem:[%s1 + $0x30] sm:$0xff]
      %v227 = vld [vmem:[%s1 + $0x38] sm:$0xff]
      %v228 = vld [vmem:[%s1 + $0x40] sm:$0xff]
      %v229 = vld [vmem:[%s1 + $0x48] sm:$0xff]
      %v230 = vld [vmem:[%s1 + $0x50] sm:$0xff]
      %v231 = vld [vmem:[%s1 + $0x58] sm:$0xff]
      %v232 = vld [vmem:[%s1 + $0x60] sm:$0xff]
      %v233 = vld [vmem:[%s1 + $0x68] sm:$0xff]
      %v234 = vld [vmem:[%s1 + $0x70] sm:$0xff]
      %v235 = vld [vmem:[%s1 + $0x78] sm:$0xff]
      %v236 = vld [vmem:[%s1 + $0x80] sm:$0xff]
      %v237 = vld [vmem:[%s1 + $0x88] sm:$0xff]
      %v238 = vld [vmem:[%s1 + $0x90] sm:$0xff]
      %v239 = vld [vmem:[%s1 + $0x98] sm:$0xff]
      %v240 = vld [vmem:[%s1 + $0xa0] sm:$0xff]
      %v241 = vld [vmem:[%s1 + $0xa8] sm:$0xff]
      %v242 = vld [vmem:[%s1 + $0xb0] sm:$0xff]
      %v243 = vld [vmem:[%s1 + $0xb8] sm:$0xff]
      %v244 = vld [vmem:[%s1 + $0xc0] sm:$0xff]
      %v245 = vld [vmem:[%s1 + $0xc8] sm:$0xff]
      %v246 = vld [vmem:[%s1 + $0xd0] sm:$0xff]
      %v247 = vld [vmem:[%s1 + $0xd8] sm:$0xff]
      %v248 = vld [vmem:[%s1 + $0xe0] sm:$0xff]
      %v249 = vld [vmem:[%s1 + $0xe8] sm:$0xff]
      %v250 = vld [vmem:[%s1 + $0xf0] sm:$0xff]
      %v251 = vld [vmem:[%s1 + $0xf8] sm:$0xff]
      %v252 = vld [vmem:[%s2] sm:$0xff]
      %v253 = vld [vmem:[%s3] sm:$0xff]
      %254 = vmatprep.subr.mxu0 0.0
      %255 = vmatpush1.msra.mxu0 %v235
      %256 = vmatprep.subr.mxu0 0.0
      %257 = vmatpush1.msra.mxu0 %v234
      %258 = vmatprep.subr.mxu0 0.0
      %259 = vmatpush1.msra.mxu0 %v233
      %260 = vmatprep.subr.mxu0 0.0
      %261 = vmatpush1.msra.mxu0 %v232
      %262 = vmatprep.subr.mxu0 0.0
      %263 = vmatpush1.msra.mxu0 %v231
      %264 = vmatprep.subr.mxu0 0.0
      %265 = vmatpush1.msra.mxu0 %v230
      %266 = vmatprep.subr.mxu0 0.0
      %267 = vmatpush1.msra.mxu0 %v229
      %268 = vmatprep.subr.mxu0 0.0
      %269 = vmatpush1.msra.mxu0 %v228
      %270 = vmatprep.subr.mxu0 0.0
      %271 = vmatpush1.msra.mxu0 %v227
      %272 = vmatprep.subr.mxu0 0.0
      %273 = vmatpush1.msra.mxu0 %v226
      %274 = vmatprep.subr.mxu0 0.0
      %275 = vmatpush1.msra.mxu0 %v225
      %276 = vmatprep.subr.mxu0 0.0
      %277 = vmatpush1.msra.mxu0 %v224
      %278 = vmatprep.subr.mxu0 0.0
      %279 = vmatpush1.msra.mxu0 %v223
      %280 = vmatprep.subr.mxu0 0.0
      %281 = vmatpush1.msra.mxu0 %v222
      %282 = vmatprep.subr.mxu0 0.0
      %283 = vmatpush1.msra.mxu0 %v221
      %284 = vmatprep.subr.mxu0 0.0
      %285 = vmatpush1.msra.mxu0 %v220
      %286 = vmatprep.subr.mxu0 0.0
      %287 = vmatpush2.msra.mxu0 %v251
      %288 = vmatprep.subr.mxu0 0.0
      %289 = vmatpush2.msra.mxu0 %v250
      %290 = vmatprep.subr.mxu0 0.0
      %291 = vmatpush2.msra.mxu0 %v249
      %292 = vmatprep.subr.mxu0 0.0
      %293 = vmatpush2.msra.mxu0 %v248
      %294 = vmatprep.subr.mxu0 0.0
      %295 = vmatpush2.msra.mxu0 %v247
      %296 = vmatprep.subr.mxu0 0.0
      %297 = vmatpush2.msra.mxu0 %v246
      %298 = vmatprep.subr.mxu0 0.0
      %299 = vmatpush2.msra.mxu0 %v245
      %300 = vmatprep.subr.mxu0 0.0
      %301 = vmatpush2.msra.mxu0 %v244
      %302 = vmatprep.subr.mxu0 0.0
      %303 = vmatpush2.msra.mxu0 %v243
      %304 = vmatprep.subr.mxu0 0.0
      %305 = vmatpush2.msra.mxu0 %v242
      %306 = vmatprep.subr.mxu0 0.0
      %307 = vmatpush2.msra.mxu0 %v241
      %308 = vmatprep.subr.mxu0 0.0
      %309 = vmatpush2.msra.mxu0 %v240
      %310 = vmatprep.subr.mxu0 0.0
      %311 = vmatpush2.msra.mxu0 %v239
      %312 = vmatprep.subr.mxu0 0.0
      %313 = vmatpush2.msra.mxu0 %v238
      %314 = vmatprep.subr.mxu0 0.0
      %315 = vmatpush2.msra.mxu0 %v237
      %316 = vmatprep.subr.mxu0 0.0
      %317 = vmatpush2.msra.mxu0 %v236
      %318 = vmatprep.mubr.f32.mxu0 %v205
      %319 = vmatmul.mubr.f32.gmra.mxu0 %v204
      %v320 = vpop.f32.mrf.mxu0
      %v321 = vadd.f32 0.0, %v320
      %v322 = vpop.f32.mrf.mxu0
      %323 = vmatprep.mubr.f32.mxu0 %v207
      %324 = vmatmul.mubr.f32.gmra.mxu0 %v206
      %v325 = vpop.f32.mrf.mxu0
      %v326 = vadd.f32 0.0, %v325
      %v327 = vpop.f32.mrf.mxu0
      %328 = vmatprep.mubr.f32.mxu0 %v209
      %329 = vmatmul.mubr.f32.gmra.mxu0 %v208
      %v330 = vpop.f32.mrf.mxu0
      %v331 = vadd.f32 0.0, %v330
      %v332 = vpop.f32.mrf.mxu0
      %333 = vmatprep.mubr.f32.mxu0 %v211
      %334 = vmatmul.mubr.f32.gmra.mxu0 %v210
      %v335 = vpop.f32.mrf.mxu0
      %v336 = vadd.f32 0.0, %v335
      %v337 = vpop.f32.mrf.mxu0
      %338 = vmatprep.mubr.f32.mxu0 %v213
      %339 = vmatmul.mubr.f32.gmra.mxu0 %v212
      %v340 = vpop.f32.mrf.mxu0
      %v341 = vadd.f32 0.0, %v340
      %v342 = vpop.f32.mrf.mxu0
      %343 = vmatprep.mubr.f32.mxu0 %v215
      %344 = vmatmul.mubr.f32.gmra.mxu0 %v214
      %v345 = vpop.f32.mrf.mxu0
      %v346 = vadd.f32 0.0, %v345
      %v347 = vpop.f32.mrf.mxu0
      %348 = vmatprep.mubr.f32.mxu0 %v217
      %349 = vmatmul.mubr.f32.gmra.mxu0 %v216
      %v350 = vpop.f32.mrf.mxu0
      %v351 = vadd.f32 0.0, %v350
      %v352 = vpop.f32.mrf.mxu0
      %353 = vmatprep.mubr.f32.mxu0 %v219
      %354 = vmatmul.mubr.f32.gmra.mxu0 %v218
      %v355 = vpop.f32.mrf.mxu0
      %v356 = vadd.f32 0.0, %v355
      %v357 = vpop.f32.mrf.mxu0
      %358 = vdwg.mxu0
      %vm359 = vcmask 261120
      %v360 = vsel %vm359, %v321, -inf
      %361 = vmax.xlane.f32.xlu0 %v360
      %v362 = vpop.xlane.xlu0 %361
      %v363 = vrot.slane %v362, 4
      %v364 = vmax.f32 %v362, %v363
      %v365 = vrot.slane %v364, 2
      %v366 = vmax.f32 %v364, %v365
      %v367 = vrot.slane %v366, 1
      %v368 = vmax.f32 %v366, %v367
      %v369 = vsub.f32 %v321, %v368
      %v370 = vmul.f32 %v369, 1.442695
      %v371 = vpow.pop %v370
      %v372 = vsel %vm359, %v371, 0.0
      %373 = vadd.xlane.f32.xlu0 %v372
      %v374 = vpop.xlane.xlu0 %373
      %v375 = vrot.slane %v374, 4
      %v376 = vadd.f32 %v374, %v375
      %v377 = vrot.slane %v376, 2
      %v378 = vadd.f32 %v376, %v377
      %v379 = vrot.slane %v378, 1
      %v380 = vadd.f32 %v378, %v379
      %v381 = vlaneseq
      %v382 = vshrl.u32 %v381, 7
      %v383 = vsub.s32 0, %v382
      %v384 = vrot.slane %v371, %v383
      %v385 = vmul.f32 %v204, %v384
      %v386 = vsel %vm359, %v385, 0.0
      %387 = vadd.xlane.f32.xlu0 %v386
      %v388 = vpop.xlane.xlu0 %387
      %v389 = vadd.f32 %v388, 0.0
      %v390 = vlaneseq
      %v391 = vshrl.u32 %v390, 7
      %v392 = vsub.s32 1, %v391
      %v393 = vrot.slane %v371, %v392
      %395 = vrot.lane.b32.xlu0 %v393, 32
      %v396 = vpop.permute.xlu0 %395
      %v398 = vmul.f32 %v204, %v396
      %400 = vrot.lane.b32.xlu0 %v398, 96
      %v401 = vpop.permute.xlu0 %400
      %v403 = vsel %vm359, %v401, 0.0
      %404 = vadd.xlane.f32.xlu0 %v403
      %v405 = vpop.xlane.xlu0 %404
      %v406 = vadd.f32 %v389, %v405
      %v407 = vlaneseq
      %v408 = vshrl.u32 %v407, 7
      %v409 = vsub.s32 2, %v408
      %v410 = vrot.slane %v371, %v409
      %412 = vrot.lane.b32.xlu0 %v410, 64
      %v413 = vpop.permute.xlu0 %412
      %v415 = vmul.f32 %v204, %v413
      %417 = vrot.lane.b32.xlu0 %v415, 64
      %v418 = vpop.permute.xlu0 %417
      %v420 = vsel %vm359, %v418, 0.0
      %421 = vadd.xlane.f32.xlu0 %v420
      %v422 = vpop.xlane.xlu0 %421
      %v423 = vadd.f32 %v406, %v422
      %v424 = vlaneseq
      %v425 = vshrl.u32 %v424, 7
      %v426 = vsub.s32 3, %v425
      %v427 = vrot.slane %v371, %v426
      %429 = vrot.lane.b32.xlu0 %v427, 96
      %v430 = vpop.permute.xlu0 %429
      %v432 = vmul.f32 %v204, %v430
      %434 = vrot.lane.b32.xlu0 %v432, 32
      %v435 = vpop.permute.xlu0 %434
      %v437 = vsel %vm359, %v435, 0.0
      %438 = vadd.xlane.f32.xlu0 %v437
      %v439 = vpop.xlane.xlu0 %438
      %v440 = vadd.f32 %v423, %v439
      %v441 = vlaneseq
      %v442 = vshrl.u32 %v441, 7
      %v443 = vsub.s32 4, %v442
      %v444 = vrot.slane %v371, %v443
      %v445 = vmul.f32 %v205, %v444
      %v446 = vsel %vm359, %v445, 0.0
      %447 = vadd.xlane.f32.xlu0 %v446
      %v448 = vpop.xlane.xlu0 %447
      %v449 = vadd.f32 %v440, %v448
      %v450 = vlaneseq
      %v451 = vshrl.u32 %v450, 7
      %v452 = vsub.s32 5, %v451
      %v453 = vrot.slane %v371, %v452
      %455 = vrot.lane.b32.xlu0 %v453, 32
      %v456 = vpop.permute.xlu0 %455
      %v458 = vmul.f32 %v205, %v456
      %460 = vrot.lane.b32.xlu0 %v458, 96
      %v461 = vpop.permute.xlu0 %460
      %v463 = vsel %vm359, %v461, 0.0
      %464 = vadd.xlane.f32.xlu0 %v463
      %v465 = vpop.xlane.xlu0 %464
      %v466 = vadd.f32 %v449, %v465
      %v467 = vlaneseq
      %v468 = vshrl.u32 %v467, 7
      %v469 = vsub.s32 6, %v468
      %v470 = vrot.slane %v371, %v469
      %472 = vrot.lane.b32.xlu0 %v470, 64
      %v473 = vpop.permute.xlu0 %472
      %v475 = vmul.f32 %v205, %v473
      %477 = vrot.lane.b32.xlu0 %v475, 64
      %v478 = vpop.permute.xlu0 %477
      %v480 = vsel %vm359, %v478, 0.0
      %481 = vadd.xlane.f32.xlu0 %v480
      %v482 = vpop.xlane.xlu0 %481
      %v483 = vadd.f32 %v466, %v482
      %v484 = vlaneseq
      %v485 = vshrl.u32 %v484, 7
      %v486 = vsub.s32 7, %v485
      %v487 = vrot.slane %v371, %v486
      %489 = vrot.lane.b32.xlu0 %v487, 96
      %v490 = vpop.permute.xlu0 %489
      %v492 = vmul.f32 %v205, %v490
      %494 = vrot.lane.b32.xlu0 %v492, 32
      %v495 = vpop.permute.xlu0 %494
      %v497 = vsel %vm359, %v495, 0.0
      %498 = vadd.xlane.f32.xlu0 %v497
      %v499 = vpop.xlane.xlu0 %498
      %v500 = vadd.f32 %v483, %v499
      %v501 = vrcp.pop %v380
      %v502 = vmul.f32 1.0, %v501
      %vm503 = vcmask 64512
      %v505 = vsel %vm503, %v252, 0
      %507 = vmatprep.subr.mxu0 0.0
      %508 = vmatpush1.msra.mxu0 0.0
      %509 = vmatprep.subr.mxu0 0.0
      %510 = vmatpush1.msra.mxu0 0.0
      %511 = vmatprep.subr.mxu0 0.0
      %512 = vmatpush1.msra.mxu0 0.0
      %513 = vmatprep.subr.mxu0 0.0
      %514 = vmatpush1.msra.mxu0 0.0
      %515 = vmatprep.subr.mxu0 0.0
      %516 = vmatpush1.msra.mxu0 0.0
      %517 = vmatprep.subr.mxu0 0.0
      %518 = vmatpush1.msra.mxu0 0.0
      %519 = vmatprep.subr.mxu0 0.0
      %520 = vmatpush1.msra.mxu0 0.0
      %521 = vmatprep.subr.mxu0 0.0
      %522 = vmatpush1.msra.mxu0 0.0
      %523 = vmatprep.subr.mxu0 0.0
      %524 = vmatpush1.msra.mxu0 0.0
      %525 = vmatprep.subr.mxu0 0.0
      %526 = vmatpush1.msra.mxu0 0.0
      %527 = vmatprep.subr.mxu0 0.0
      %528 = vmatpush1.msra.mxu0 0.0
      %529 = vmatprep.subr.mxu0 0.0
      %530 = vmatpush1.msra.mxu0 0.0
      %531 = vmatprep.subr.mxu0 0.0
      %532 = vmatpush1.msra.mxu0 0.0
      %533 = vmatprep.subr.mxu0 0.0
      %534 = vmatpush1.msra.mxu0 0.0
      %535 = vmatprep.subr.mxu0 0.0
      %536 = vmatpush1.msra.mxu0 0.0
      %537 = vmatprep.subr.mxu0 0.0
      %538 = vmatpush1.msra.mxu0 %v500
      %539 = vmatprep.subr.mxu0 0.0
      %540 = vmatpush2.msra.mxu0 0.0
      %541 = vmatprep.subr.mxu0 0.0
      %542 = vmatpush2.msra.mxu0 0.0
      %543 = vmatprep.subr.mxu0 0.0
      %544 = vmatpush2.msra.mxu0 0.0
      %545 = vmatprep.subr.mxu0 0.0
      %546 = vmatpush2.msra.mxu0 0.0
      %547 = vmatprep.subr.mxu0 0.0
      %548 = vmatpush2.msra.mxu0 0.0
      %549 = vmatprep.subr.mxu0 0.0
      %550 = vmatpush2.msra.mxu0 0.0
      %551 = vmatprep.subr.mxu0 0.0
      %552 = vmatpush2.msra.mxu0 0.0
      %553 = vmatprep.subr.mxu0 0.0
      %554 = vmatpush2.msra.mxu0 0.0
      %555 = vmatprep.subr.mxu0 0.0
      %556 = vmatpush2.msra.mxu0 0.0
      %557 = vmatprep.subr.mxu0 0.0
      %558 = vmatpush2.msra.mxu0 0.0
      %559 = vmatprep.subr.mxu0 0.0
      %560 = vmatpush2.msra.mxu0 0.0
      %561 = vmatprep.subr.mxu0 0.0
      %562 = vmatpush2.msra.mxu0 0.0
      %563 = vmatprep.subr.mxu0 0.0
      %564 = vmatpush2.msra.mxu0 0.0
      %565 = vmatprep.subr.mxu0 0.0
      %566 = vmatpush2.msra.mxu0 0.0
      %567 = vmatprep.subr.mxu0 0.0
      %568 = vmatpush2.msra.mxu0 0.0
      %569 = vmatprep.subr.mxu0 0.0
      %570 = vmatpush2.msra.mxu0 0.0
      %571 = vmatprep.mubr.f32.mxu0 0.0
      %572 = vmatmul.mubr.f32.gmra.mxu0 %v505
      %v573 = vpop.f32.mrf.mxu0
      %v574 = vadd.f32 0.0, %v573
      %v575 = vpop.f32.mrf.mxu0
      %576 = vdwg.mxu0
      %v577 = vmul.f32 %v574, %v502
      %v578 = vadd.f32 %v577, %v253
      %vm579 = vcmask 7168
      %580 = vst.msk [vmem:[%s202] sm:$0xff] %vm579, %v578
      %v581 = vsel %vm359, %v326, -inf
      %582 = vmax.xlane.f32.xlu0 %v581
      %v583 = vpop.xlane.xlu0 %582
      %v584 = vrot.slane %v583, 4
      %v585 = vmax.f32 %v583, %v584
      %v586 = vrot.slane %v585, 2
      %v587 = vmax.f32 %v585, %v586
      %v588 = vrot.slane %v587, 1
      %v589 = vmax.f32 %v587, %v588
      %v590 = vsub.f32 %v326, %v589
      %v591 = vmul.f32 %v590, 1.442695
      %v592 = vpow.pop %v591
      %v593 = vsel %vm359, %v592, 0.0
      %594 = vadd.xlane.f32.xlu0 %v593
      %v595 = vpop.xlane.xlu0 %594
      %v596 = vrot.slane %v595, 4
      %v597 = vadd.f32 %v595, %v596
      %v598 = vrot.slane %v597, 2
      %v599 = vadd.f32 %v597, %v598
      %v600 = vrot.slane %v599, 1
      %v601 = vadd.f32 %v599, %v600
      %v602 = vlaneseq
      %v603 = vshrl.u32 %v602, 7
      %v604 = vsub.s32 0, %v603
      %v605 = vrot.slane %v592, %v604
      %v606 = vmul.f32 %v206, %v605
      %v607 = vsel %vm359, %v606, 0.0
      %608 = vadd.xlane.f32.xlu0 %v607
      %v609 = vpop.xlane.xlu0 %608
      %v610 = vadd.f32 %v609, 0.0
      %v611 = vlaneseq
      %v612 = vshrl.u32 %v611, 7
      %v613 = vsub.s32 1, %v612
      %v614 = vrot.slane %v592, %v613
      %616 = vrot.lane.b32.xlu0 %v614, 32
      %v617 = vpop.permute.xlu0 %616
      %v619 = vmul.f32 %v206, %v617
      %621 = vrot.lane.b32.xlu0 %v619, 96
      %v622 = vpop.permute.xlu0 %621
      %v624 = vsel %vm359, %v622, 0.0
      %625 = vadd.xlane.f32.xlu0 %v624
      %v626 = vpop.xlane.xlu0 %625
      %v627 = vadd.f32 %v610, %v626
      %v628 = vlaneseq
      %v629 = vshrl.u32 %v628, 7
      %v630 = vsub.s32 2, %v629
      %v631 = vrot.slane %v592, %v630
      %633 = vrot.lane.b32.xlu0 %v631, 64
      %v634 = vpop.permute.xlu0 %633
      %v636 = vmul.f32 %v206, %v634
      %638 = vrot.lane.b32.xlu0 %v636, 64
      %v639 = vpop.permute.xlu0 %638
      %v641 = vsel %vm359, %v639, 0.0
      %642 = vadd.xlane.f32.xlu0 %v641
      %v643 = vpop.xlane.xlu0 %642
      %v644 = vadd.f32 %v627, %v643
      %v645 = vlaneseq
      %v646 = vshrl.u32 %v645, 7
      %v647 = vsub.s32 3, %v646
      %v648 = vrot.slane %v592, %v647
      %650 = vrot.lane.b32.xlu0 %v648, 96
      %v651 = vpop.permute.xlu0 %650
      %v653 = vmul.f32 %v206, %v651
      %655 = vrot.lane.b32.xlu0 %v653, 32
      %v656 = vpop.permute.xlu0 %655
      %v658 = vsel %vm359, %v656, 0.0
      %659 = vadd.xlane.f32.xlu0 %v658
      %v660 = vpop.xlane.xlu0 %659
      %v661 = vadd.f32 %v644, %v660
      %v662 = vlaneseq
      %v663 = vshrl.u32 %v662, 7
      %v664 = vsub.s32 4, %v663
      %v665 = vrot.slane %v592, %v664
      %v666 = vmul.f32 %v207, %v665
      %v667 = vsel %vm359, %v666, 0.0
      %668 = vadd.xlane.f32.xlu0 %v667
      %v669 = vpop.xlane.xlu0 %668
      %v670 = vadd.f32 %v661, %v669
      %v671 = vlaneseq
      %v672 = vshrl.u32 %v671, 7
      %v673 = vsub.s32 5, %v672
      %v674 = vrot.slane %v592, %v673
      %676 = vrot.lane.b32.xlu0 %v674, 32
      %v677 = vpop.permute.xlu0 %676
      %v679 = vmul.f32 %v207, %v677
      %681 = vrot.lane.b32.xlu0 %v679, 96
      %v682 = vpop.permute.xlu0 %681
      %v684 = vsel %vm359, %v682, 0.0
      %685 = vadd.xlane.f32.xlu0 %v684
      %v686 = vpop.xlane.xlu0 %685
      %v687 = vadd.f32 %v670, %v686
      %v688 = vlaneseq
      %v689 = vshrl.u32 %v688, 7
      %v690 = vsub.s32 6, %v689
      %v691 = vrot.slane %v592, %v690
      %693 = vrot.lane.b32.xlu0 %v691, 64
      %v694 = vpop.permute.xlu0 %693
      %v696 = vmul.f32 %v207, %v694
      %698 = vrot.lane.b32.xlu0 %v696, 64
      %v699 = vpop.permute.xlu0 %698
      %v701 = vsel %vm359, %v699, 0.0
      %702 = vadd.xlane.f32.xlu0 %v701
      %v703 = vpop.xlane.xlu0 %702
      %v704 = vadd.f32 %v687, %v703
      %v705 = vlaneseq
      %v706 = vshrl.u32 %v705, 7
      %v707 = vsub.s32 7, %v706
      %v708 = vrot.slane %v592, %v707
      %710 = vrot.lane.b32.xlu0 %v708, 96
      %v711 = vpop.permute.xlu0 %710
      %v713 = vmul.f32 %v207, %v711
      %715 = vrot.lane.b32.xlu0 %v713, 32
      %v716 = vpop.permute.xlu0 %715
      %v718 = vsel %vm359, %v716, 0.0
      %719 = vadd.xlane.f32.xlu0 %v718
      %v720 = vpop.xlane.xlu0 %719
      %v721 = vadd.f32 %v704, %v720
      %v722 = vrcp.pop %v601
      %v723 = vmul.f32 1.0, %v722
      %724 = vmatprep.subr.mxu0 0.0
      %725 = vmatpush1.msra.mxu0 0.0
      %726 = vmatprep.subr.mxu0 0.0
      %727 = vmatpush1.msra.mxu0 0.0
      %728 = vmatprep.subr.mxu0 0.0
      %729 = vmatpush1.msra.mxu0 0.0
      %730 = vmatprep.subr.mxu0 0.0
      %731 = vmatpush1.msra.mxu0 0.0
      %732 = vmatprep.subr.mxu0 0.0
      %733 = vmatpush1.msra.mxu0 0.0
      %734 = vmatprep.subr.mxu0 0.0
      %735 = vmatpush1.msra.mxu0 0.0
      %736 = vmatprep.subr.mxu0 0.0
      %737 = vmatpush1.msra.mxu0 0.0
      %738 = vmatprep.subr.mxu0 0.0
      %739 = vmatpush1.msra.mxu0 0.0
      %740 = vmatprep.subr.mxu0 0.0
      %741 = vmatpush1.msra.mxu0 0.0
      %742 = vmatprep.subr.mxu0 0.0
      %743 = vmatpush1.msra.mxu0 0.0
      %744 = vmatprep.subr.mxu0 0.0
      %745 = vmatpush1.msra.mxu0 0.0
      %746 = vmatprep.subr.mxu0 0.0
      %747 = vmatpush1.msra.mxu0 0.0
      %748 = vmatprep.subr.mxu0 0.0
      %749 = vmatpush1.msra.mxu0 0.0
      %750 = vmatprep.subr.mxu0 0.0
      %751 = vmatpush1.msra.mxu0 0.0
      %752 = vmatprep.subr.mxu0 0.0
      %753 = vmatpush1.msra.mxu0 0.0
      %754 = vmatprep.subr.mxu0 0.0
      %755 = vmatpush1.msra.mxu0 %v721
      %756 = vmatprep.subr.mxu0 0.0
      %757 = vmatpush2.msra.mxu0 0.0
      %758 = vmatprep.subr.mxu0 0.0
      %759 = vmatpush2.msra.mxu0 0.0
      %760 = vmatprep.subr.mxu0 0.0
      %761 = vmatpush2.msra.mxu0 0.0
      %762 = vmatprep.subr.mxu0 0.0
      %763 = vmatpush2.msra.mxu0 0.0
      %764 = vmatprep.subr.mxu0 0.0
      %765 = vmatpush2.msra.mxu0 0.0
      %766 = vmatprep.subr.mxu0 0.0
      %767 = vmatpush2.msra.mxu0 0.0
      %768 = vmatprep.subr.mxu0 0.0
      %769 = vmatpush2.msra.mxu0 0.0
      %770 = vmatprep.subr.mxu0 0.0
      %771 = vmatpush2.msra.mxu0 0.0
      %772 = vmatprep.subr.mxu0 0.0
      %773 = vmatpush2.msra.mxu0 0.0
      %774 = vmatprep.subr.mxu0 0.0
      %775 = vmatpush2.msra.mxu0 0.0
      %776 = vmatprep.subr.mxu0 0.0
      %777 = vmatpush2.msra.mxu0 0.0
      %778 = vmatprep.subr.mxu0 0.0
      %779 = vmatpush2.msra.mxu0 0.0
      %780 = vmatprep.subr.mxu0 0.0
      %781 = vmatpush2.msra.mxu0 0.0
      %782 = vmatprep.subr.mxu0 0.0
      %783 = vmatpush2.msra.mxu0 0.0
      %784 = vmatprep.subr.mxu0 0.0
      %785 = vmatpush2.msra.mxu0 0.0
      %786 = vmatprep.subr.mxu0 0.0
      %787 = vmatpush2.msra.mxu0 0.0
      %788 = vmatprep.mubr.f32.mxu0 0.0
      %789 = vmatmul.mubr.f32.gmra.mxu0 %v505
      %v790 = vpop.f32.mrf.mxu0
      %v791 = vadd.f32 0.0, %v790
      %v792 = vpop.f32.mrf.mxu0
      %793 = vdwg.mxu0
      %v794 = vmul.f32 %v791, %v723
      %v795 = vadd.f32 %v794, %v253
      %s796 = scalar_lea.vmem %s202, 8
      %797 = vst.msk [vmem:[%s796] sm:$0xff] %vm579, %v795
      %v798 = vsel %vm359, %v331, -inf
      %799 = vmax.xlane.f32.xlu0 %v798
      %v800 = vpop.xlane.xlu0 %799
      %v801 = vrot.slane %v800, 4
      %v802 = vmax.f32 %v800, %v801
      %v803 = vrot.slane %v802, 2
      %v804 = vmax.f32 %v802, %v803
      %v805 = vrot.slane %v804, 1
      %v806 = vmax.f32 %v804, %v805
      %v807 = vsub.f32 %v331, %v806
      %v808 = vmul.f32 %v807, 1.442695
      %v809 = vpow.pop %v808
      %v810 = vsel %vm359, %v809, 0.0
      %811 = vadd.xlane.f32.xlu0 %v810
      %v812 = vpop.xlane.xlu0 %811
      %v813 = vrot.slane %v812, 4
      %v814 = vadd.f32 %v812, %v813
      %v815 = vrot.slane %v814, 2
      %v816 = vadd.f32 %v814, %v815
      %v817 = vrot.slane %v816, 1
      %v818 = vadd.f32 %v816, %v817
      %v819 = vlaneseq
      %v820 = vshrl.u32 %v819, 7
      %v821 = vsub.s32 0, %v820
      %v822 = vrot.slane %v809, %v821
      %v823 = vmul.f32 %v208, %v822
      %v824 = vsel %vm359, %v823, 0.0
      %825 = vadd.xlane.f32.xlu0 %v824
      %v826 = vpop.xlane.xlu0 %825
      %v827 = vadd.f32 %v826, 0.0
      %v828 = vlaneseq
      %v829 = vshrl.u32 %v828, 7
      %v830 = vsub.s32 1, %v829
      %v831 = vrot.slane %v809, %v830
      %833 = vrot.lane.b32.xlu0 %v831, 32
      %v834 = vpop.permute.xlu0 %833
      %v836 = vmul.f32 %v208, %v834
      %838 = vrot.lane.b32.xlu0 %v836, 96
      %v839 = vpop.permute.xlu0 %838
      %v841 = vsel %vm359, %v839, 0.0
      %842 = vadd.xlane.f32.xlu0 %v841
      %v843 = vpop.xlane.xlu0 %842
      %v844 = vadd.f32 %v827, %v843
      %v845 = vlaneseq
      %v846 = vshrl.u32 %v845, 7
      %v847 = vsub.s32 2, %v846
      %v848 = vrot.slane %v809, %v847
      %850 = vrot.lane.b32.xlu0 %v848, 64
      %v851 = vpop.permute.xlu0 %850
      %v853 = vmul.f32 %v208, %v851
      %855 = vrot.lane.b32.xlu0 %v853, 64
      %v856 = vpop.permute.xlu0 %855
      %v858 = vsel %vm359, %v856, 0.0
      %859 = vadd.xlane.f32.xlu0 %v858
      %v860 = vpop.xlane.xlu0 %859
      %v861 = vadd.f32 %v844, %v860
      %v862 = vlaneseq
      %v863 = vshrl.u32 %v862, 7
      %v864 = vsub.s32 3, %v863
      %v865 = vrot.slane %v809, %v864
      %867 = vrot.lane.b32.xlu0 %v865, 96
      %v868 = vpop.permute.xlu0 %867
      %v870 = vmul.f32 %v208, %v868
      %872 = vrot.lane.b32.xlu0 %v870, 32
      %v873 = vpop.permute.xlu0 %872
      %v875 = vsel %vm359, %v873, 0.0
      %876 = vadd.xlane.f32.xlu0 %v875
      %v877 = vpop.xlane.xlu0 %876
      %v878 = vadd.f32 %v861, %v877
      %v879 = vlaneseq
      %v880 = vshrl.u32 %v879, 7
      %v881 = vsub.s32 4, %v880
      %v882 = vrot.slane %v809, %v881
      %v883 = vmul.f32 %v209, %v882
      %v884 = vsel %vm359, %v883, 0.0
      %885 = vadd.xlane.f32.xlu0 %v884
      %v886 = vpop.xlane.xlu0 %885
      %v887 = vadd.f32 %v878, %v886
      %v888 = vlaneseq
      %v889 = vshrl.u32 %v888, 7
      %v890 = vsub.s32 5, %v889
      %v891 = vrot.slane %v809, %v890
      %893 = vrot.lane.b32.xlu0 %v891, 32
      %v894 = vpop.permute.xlu0 %893
      %v896 = vmul.f32 %v209, %v894
      %898 = vrot.lane.b32.xlu0 %v896, 96
      %v899 = vpop.permute.xlu0 %898
      %v901 = vsel %vm359, %v899, 0.0
      %902 = vadd.xlane.f32.xlu0 %v901
      %v903 = vpop.xlane.xlu0 %902
      %v904 = vadd.f32 %v887, %v903
      %v905 = vlaneseq
      %v906 = vshrl.u32 %v905, 7
      %v907 = vsub.s32 6, %v906
      %v908 = vrot.slane %v809, %v907
      %910 = vrot.lane.b32.xlu0 %v908, 64
      %v911 = vpop.permute.xlu0 %910
      %v913 = vmul.f32 %v209, %v911
      %915 = vrot.lane.b32.xlu0 %v913, 64
      %v916 = vpop.permute.xlu0 %915
      %v918 = vsel %vm359, %v916, 0.0
      %919 = vadd.xlane.f32.xlu0 %v918
      %v920 = vpop.xlane.xlu0 %919
      %v921 = vadd.f32 %v904, %v920
      %v922 = vlaneseq
      %v923 = vshrl.u32 %v922, 7
      %v924 = vsub.s32 7, %v923
      %v925 = vrot.slane %v809, %v924
      %927 = vrot.lane.b32.xlu0 %v925, 96
      %v928 = vpop.permute.xlu0 %927
      %v930 = vmul.f32 %v209, %v928
      %932 = vrot.lane.b32.xlu0 %v930, 32
      %v933 = vpop.permute.xlu0 %932
      %v935 = vsel %vm359, %v933, 0.0
      %936 = vadd.xlane.f32.xlu0 %v935
      %v937 = vpop.xlane.xlu0 %936
      %v938 = vadd.f32 %v921, %v937
      %v939 = vrcp.pop %v818
      %v940 = vmul.f32 1.0, %v939
      %941 = vmatprep.subr.mxu0 0.0
      %942 = vmatpush1.msra.mxu0 0.0
      %943 = vmatprep.subr.mxu0 0.0
      %944 = vmatpush1.msra.mxu0 0.0
      %945 = vmatprep.subr.mxu0 0.0
      %946 = vmatpush1.msra.mxu0 0.0
      %947 = vmatprep.subr.mxu0 0.0
      %948 = vmatpush1.msra.mxu0 0.0
      %949 = vmatprep.subr.mxu0 0.0
      %950 = vmatpush1.msra.mxu0 0.0
      %951 = vmatprep.subr.mxu0 0.0
      %952 = vmatpush1.msra.mxu0 0.0
      %953 = vmatprep.subr.mxu0 0.0
      %954 = vmatpush1.msra.mxu0 0.0
      %955 = vmatprep.subr.mxu0 0.0
      %956 = vmatpush1.msra.mxu0 0.0
      %957 = vmatprep.subr.mxu0 0.0
      %958 = vmatpush1.msra.mxu0 0.0
      %959 = vmatprep.subr.mxu0 0.0
      %960 = vmatpush1.msra.mxu0 0.0
      %961 = vmatprep.subr.mxu0 0.0
      %962 = vmatpush1.msra.mxu0 0.0
      %963 = vmatprep.subr.mxu0 0.0
      %964 = vmatpush1.msra.mxu0 0.0
      %965 = vmatprep.subr.mxu0 0.0
      %966 = vmatpush1.msra.mxu0 0.0
      %967 = vmatprep.subr.mxu0 0.0
      %968 = vmatpush1.msra.mxu0 0.0
      %969 = vmatprep.subr.mxu0 0.0
      %970 = vmatpush1.msra.mxu0 0.0
      %971 = vmatprep.subr.mxu0 0.0
      %972 = vmatpush1.msra.mxu0 %v938
      %973 = vmatprep.subr.mxu0 0.0
      %974 = vmatpush2.msra.mxu0 0.0
      %975 = vmatprep.subr.mxu0 0.0
      %976 = vmatpush2.msra.mxu0 0.0
      %977 = vmatprep.subr.mxu0 0.0
      %978 = vmatpush2.msra.mxu0 0.0
      %979 = vmatprep.subr.mxu0 0.0
      %980 = vmatpush2.msra.mxu0 0.0
      %981 = vmatprep.subr.mxu0 0.0
      %982 = vmatpush2.msra.mxu0 0.0
      %983 = vmatprep.subr.mxu0 0.0
      %984 = vmatpush2.msra.mxu0 0.0
      %985 = vmatprep.subr.mxu0 0.0
      %986 = vmatpush2.msra.mxu0 0.0
      %987 = vmatprep.subr.mxu0 0.0
      %988 = vmatpush2.msra.mxu0 0.0
      %989 = vmatprep.subr.mxu0 0.0
      %990 = vmatpush2.msra.mxu0 0.0
      %991 = vmatprep.subr.mxu0 0.0
      %992 = vmatpush2.msra.mxu0 0.0
      %993 = vmatprep.subr.mxu0 0.0
      %994 = vmatpush2.msra.mxu0 0.0
      %995 = vmatprep.subr.mxu0 0.0
      %996 = vmatpush2.msra.mxu0 0.0
      %997 = vmatprep.subr.mxu0 0.0
      %998 = vmatpush2.msra.mxu0 0.0
      %999 = vmatprep.subr.mxu0 0.0
      %1000 = vmatpush2.msra.mxu0 0.0
      %1001 = vmatprep.subr.mxu0 0.0
      %1002 = vmatpush2.msra.mxu0 0.0
      %1003 = vmatprep.subr.mxu0 0.0
      %1004 = vmatpush2.msra.mxu0 0.0
      %1005 = vmatprep.mubr.f32.mxu0 0.0
      %1006 = vmatmul.mubr.f32.gmra.mxu0 %v505
      %v1007 = vpop.f32.mrf.mxu0
      %v1008 = vadd.f32 0.0, %v1007
      %v1009 = vpop.f32.mrf.mxu0
      %1010 = vdwg.mxu0
      %v1011 = vmul.f32 %v1008, %v940
      %v1012 = vadd.f32 %v1011, %v253
      %s1013 = scalar_lea.vmem %s202, 16
      %1014 = vst.msk [vmem:[%s1013] sm:$0xff] %vm579, %v1012
      %v1015 = vsel %vm359, %v336, -inf
      %1016 = vmax.xlane.f32.xlu0 %v1015
      %v1017 = vpop.xlane.xlu0 %1016
      %v1018 = vrot.slane %v1017, 4
      %v1019 = vmax.f32 %v1017, %v1018
      %v1020 = vrot.slane %v1019, 2
      %v1021 = vmax.f32 %v1019, %v1020
      %v1022 = vrot.slane %v1021, 1
      %v1023 = vmax.f32 %v1021, %v1022
      %v1024 = vsub.f32 %v336, %v1023
      %v1025 = vmul.f32 %v1024, 1.442695
      %v1026 = vpow.pop %v1025
      %v1027 = vsel %vm359, %v1026, 0.0
      %1028 = vadd.xlane.f32.xlu0 %v1027
      %v1029 = vpop.xlane.xlu0 %1028
      %v1030 = vrot.slane %v1029, 4
      %v1031 = vadd.f32 %v1029, %v1030
      %v1032 = vrot.slane %v1031, 2
      %v1033 = vadd.f32 %v1031, %v1032
      %v1034 = vrot.slane %v1033, 1
      %v1035 = vadd.f32 %v1033, %v1034
      %v1036 = vlaneseq
      %v1037 = vshrl.u32 %v1036, 7
      %v1038 = vsub.s32 0, %v1037
      %v1039 = vrot.slane %v1026, %v1038
      %v1040 = vmul.f32 %v210, %v1039
      %v1041 = vsel %vm359, %v1040, 0.0
      %1042 = vadd.xlane.f32.xlu0 %v1041
      %v1043 = vpop.xlane.xlu0 %1042
      %v1044 = vadd.f32 %v1043, 0.0
      %v1045 = vlaneseq
      %v1046 = vshrl.u32 %v1045, 7
      %v1047 = vsub.s32 1, %v1046
      %v1048 = vrot.slane %v1026, %v1047
      %1050 = vrot.lane.b32.xlu0 %v1048, 32
      %v1051 = vpop.permute.xlu0 %1050
      %v1053 = vmul.f32 %v210, %v1051
      %1055 = vrot.lane.b32.xlu0 %v1053, 96
      %v1056 = vpop.permute.xlu0 %1055
      %v1058 = vsel %vm359, %v1056, 0.0
      %1059 = vadd.xlane.f32.xlu0 %v1058
      %v1060 = vpop.xlane.xlu0 %1059
      %v1061 = vadd.f32 %v1044, %v1060
      %v1062 = vlaneseq
      %v1063 = vshrl.u32 %v1062, 7
      %v1064 = vsub.s32 2, %v1063
      %v1065 = vrot.slane %v1026, %v1064
      %1067 = vrot.lane.b32.xlu0 %v1065, 64
      %v1068 = vpop.permute.xlu0 %1067
      %v1070 = vmul.f32 %v210, %v1068
      %1072 = vrot.lane.b32.xlu0 %v1070, 64
      %v1073 = vpop.permute.xlu0 %1072
      %v1075 = vsel %vm359, %v1073, 0.0
      %1076 = vadd.xlane.f32.xlu0 %v1075
      %v1077 = vpop.xlane.xlu0 %1076
      %v1078 = vadd.f32 %v1061, %v1077
      %v1079 = vlaneseq
      %v1080 = vshrl.u32 %v1079, 7
      %v1081 = vsub.s32 3, %v1080
      %v1082 = vrot.slane %v1026, %v1081
      %1084 = vrot.lane.b32.xlu0 %v1082, 96
      %v1085 = vpop.permute.xlu0 %1084
      %v1087 = vmul.f32 %v210, %v1085
      %1089 = vrot.lane.b32.xlu0 %v1087, 32
      %v1090 = vpop.permute.xlu0 %1089
      %v1092 = vsel %vm359, %v1090, 0.0
      %1093 = vadd.xlane.f32.xlu0 %v1092
      %v1094 = vpop.xlane.xlu0 %1093
      %v1095 = vadd.f32 %v1078, %v1094
      %v1096 = vlaneseq
      %v1097 = vshrl.u32 %v1096, 7
      %v1098 = vsub.s32 4, %v1097
      %v1099 = vrot.slane %v1026, %v1098
      %v1100 = vmul.f32 %v211, %v1099
      %v1101 = vsel %vm359, %v1100, 0.0
      %1102 = vadd.xlane.f32.xlu0 %v1101
      %v1103 = vpop.xlane.xlu0 %1102
      %v1104 = vadd.f32 %v1095, %v1103
      %v1105 = vlaneseq
      %v1106 = vshrl.u32 %v1105, 7
      %v1107 = vsub.s32 5, %v1106
      %v1108 = vrot.slane %v1026, %v1107
      %1110 = vrot.lane.b32.xlu0 %v1108, 32
      %v1111 = vpop.permute.xlu0 %1110
      %v1113 = vmul.f32 %v211, %v1111
      %1115 = vrot.lane.b32.xlu0 %v1113, 96
      %v1116 = vpop.permute.xlu0 %1115
      %v1118 = vsel %vm359, %v1116, 0.0
      %1119 = vadd.xlane.f32.xlu0 %v1118
      %v1120 = vpop.xlane.xlu0 %1119
      %v1121 = vadd.f32 %v1104, %v1120
      %v1122 = vlaneseq
      %v1123 = vshrl.u32 %v1122, 7
      %v1124 = vsub.s32 6, %v1123
      %v1125 = vrot.slane %v1026, %v1124
      %1127 = vrot.lane.b32.xlu0 %v1125, 64
      %v1128 = vpop.permute.xlu0 %1127
      %v1130 = vmul.f32 %v211, %v1128
      %1132 = vrot.lane.b32.xlu0 %v1130, 64
      %v1133 = vpop.permute.xlu0 %1132
      %v1135 = vsel %vm359, %v1133, 0.0
      %1136 = vadd.xlane.f32.xlu0 %v1135
      %v1137 = vpop.xlane.xlu0 %1136
      %v1138 = vadd.f32 %v1121, %v1137
      %v1139 = vlaneseq
      %v1140 = vshrl.u32 %v1139, 7
      %v1141 = vsub.s32 7, %v1140
      %v1142 = vrot.slane %v1026, %v1141
      %1144 = vrot.lane.b32.xlu0 %v1142, 96
      %v1145 = vpop.permute.xlu0 %1144
      %v1147 = vmul.f32 %v211, %v1145
      %1149 = vrot.lane.b32.xlu0 %v1147, 32
      %v1150 = vpop.permute.xlu0 %1149
      %v1152 = vsel %vm359, %v1150, 0.0
      %1153 = vadd.xlane.f32.xlu0 %v1152
      %v1154 = vpop.xlane.xlu0 %1153
      %v1155 = vadd.f32 %v1138, %v1154
      %v1156 = vrcp.pop %v1035
      %v1157 = vmul.f32 1.0, %v1156
      %1158 = vmatprep.subr.mxu0 0.0
      %1159 = vmatpush1.msra.mxu0 0.0
      %1160 = vmatprep.subr.mxu0 0.0
      %1161 = vmatpush1.msra.mxu0 0.0
      %1162 = vmatprep.subr.mxu0 0.0
      %1163 = vmatpush1.msra.mxu0 0.0
      %1164 = vmatprep.subr.mxu0 0.0
      %1165 = vmatpush1.msra.mxu0 0.0
      %1166 = vmatprep.subr.mxu0 0.0
      %1167 = vmatpush1.msra.mxu0 0.0
      %1168 = vmatprep.subr.mxu0 0.0
      %1169 = vmatpush1.msra.mxu0 0.0
      %1170 = vmatprep.subr.mxu0 0.0
      %1171 = vmatpush1.msra.mxu0 0.0
      %1172 = vmatprep.subr.mxu0 0.0
      %1173 = vmatpush1.msra.mxu0 0.0
      %1174 = vmatprep.subr.mxu0 0.0
      %1175 = vmatpush1.msra.mxu0 0.0
      %1176 = vmatprep.subr.mxu0 0.0
      %1177 = vmatpush1.msra.mxu0 0.0
      %1178 = vmatprep.subr.mxu0 0.0
      %1179 = vmatpush1.msra.mxu0 0.0
      %1180 = vmatprep.subr.mxu0 0.0
      %1181 = vmatpush1.msra.mxu0 0.0
      %1182 = vmatprep.subr.mxu0 0.0
      %1183 = vmatpush1.msra.mxu0 0.0
      %1184 = vmatprep.subr.mxu0 0.0
      %1185 = vmatpush1.msra.mxu0 0.0
      %1186 = vmatprep.subr.mxu0 0.0
      %1187 = vmatpush1.msra.mxu0 0.0
      %1188 = vmatprep.subr.mxu0 0.0
      %1189 = vmatpush1.msra.mxu0 %v1155
      %1190 = vmatprep.subr.mxu0 0.0
      %1191 = vmatpush2.msra.mxu0 0.0
      %1192 = vmatprep.subr.mxu0 0.0
      %1193 = vmatpush2.msra.mxu0 0.0
      %1194 = vmatprep.subr.mxu0 0.0
      %1195 = vmatpush2.msra.mxu0 0.0
      %1196 = vmatprep.subr.mxu0 0.0
      %1197 = vmatpush2.msra.mxu0 0.0
      %1198 = vmatprep.subr.mxu0 0.0
      %1199 = vmatpush2.msra.mxu0 0.0
      %1200 = vmatprep.subr.mxu0 0.0
      %1201 = vmatpush2.msra.mxu0 0.0
      %1202 = vmatprep.subr.mxu0 0.0
      %1203 = vmatpush2.msra.mxu0 0.0
      %1204 = vmatprep.subr.mxu0 0.0
      %1205 = vmatpush2.msra.mxu0 0.0
      %1206 = vmatprep.subr.mxu0 0.0
      %1207 = vmatpush2.msra.mxu0 0.0
      %1208 = vmatprep.subr.mxu0 0.0
      %1209 = vmatpush2.msra.mxu0 0.0
      %1210 = vmatprep.subr.mxu0 0.0
      %1211 = vmatpush2.msra.mxu0 0.0
      %1212 = vmatprep.subr.mxu0 0.0
      %1213 = vmatpush2.msra.mxu0 0.0
      %1214 = vmatprep.subr.mxu0 0.0
      %1215 = vmatpush2.msra.mxu0 0.0
      %1216 = vmatprep.subr.mxu0 0.0
      %1217 = vmatpush2.msra.mxu0 0.0
      %1218 = vmatprep.subr.mxu0 0.0
      %1219 = vmatpush2.msra.mxu0 0.0
      %1220 = vmatprep.subr.mxu0 0.0
      %1221 = vmatpush2.msra.mxu0 0.0
      %1222 = vmatprep.mubr.f32.mxu0 0.0
      %1223 = vmatmul.mubr.f32.gmra.mxu0 %v505
      %v1224 = vpop.f32.mrf.mxu0
      %v1225 = vadd.f32 0.0, %v1224
      %v1226 = vpop.f32.mrf.mxu0
      %1227 = vdwg.mxu0
      %v1228 = vmul.f32 %v1225, %v1157
      %v1229 = vadd.f32 %v1228, %v253
      %s1230 = scalar_lea.vmem %s202, 24
      %1231 = vst.msk [vmem:[%s1230] sm:$0xff] %vm579, %v1229
      %v1232 = vsel %vm359, %v341, -inf
      %1233 = vmax.xlane.f32.xlu0 %v1232
      %v1234 = vpop.xlane.xlu0 %1233
      %v1235 = vrot.slane %v1234, 4
      %v1236 = vmax.f32 %v1234, %v1235
      %v1237 = vrot.slane %v1236, 2
      %v1238 = vmax.f32 %v1236, %v1237
      %v1239 = vrot.slane %v1238, 1
      %v1240 = vmax.f32 %v1238, %v1239
      %v1241 = vsub.f32 %v341, %v1240
      %v1242 = vmul.f32 %v1241, 1.442695
      %v1243 = vpow.pop %v1242
      %v1244 = vsel %vm359, %v1243, 0.0
      %1245 = vadd.xlane.f32.xlu0 %v1244
      %v1246 = vpop.xlane.xlu0 %1245
      %v1247 = vrot.slane %v1246, 4
      %v1248 = vadd.f32 %v1246, %v1247
      %v1249 = vrot.slane %v1248, 2
      %v1250 = vadd.f32 %v1248, %v1249
      %v1251 = vrot.slane %v1250, 1
      %v1252 = vadd.f32 %v1250, %v1251
      %v1253 = vlaneseq
      %v1254 = vshrl.u32 %v1253, 7
      %v1255 = vsub.s32 0, %v1254
      %v1256 = vrot.slane %v1243, %v1255
      %v1257 = vmul.f32 %v212, %v1256
      %v1258 = vsel %vm359, %v1257, 0.0
      %1259 = vadd.xlane.f32.xlu0 %v1258
      %v1260 = vpop.xlane.xlu0 %1259
      %v1261 = vadd.f32 %v1260, 0.0
      %v1262 = vlaneseq
      %v1263 = vshrl.u32 %v1262, 7
      %v1264 = vsub.s32 1, %v1263
      %v1265 = vrot.slane %v1243, %v1264
      %1267 = vrot.lane.b32.xlu0 %v1265, 32
      %v1268 = vpop.permute.xlu0 %1267
      %v1270 = vmul.f32 %v212, %v1268
      %1272 = vrot.lane.b32.xlu0 %v1270, 96
      %v1273 = vpop.permute.xlu0 %1272
      %v1275 = vsel %vm359, %v1273, 0.0
      %1276 = vadd.xlane.f32.xlu0 %v1275
      %v1277 = vpop.xlane.xlu0 %1276
      %v1278 = vadd.f32 %v1261, %v1277
      %v1279 = vlaneseq
      %v1280 = vshrl.u32 %v1279, 7
      %v1281 = vsub.s32 2, %v1280
      %v1282 = vrot.slane %v1243, %v1281
      %1284 = vrot.lane.b32.xlu0 %v1282, 64
      %v1285 = vpop.permute.xlu0 %1284
      %v1287 = vmul.f32 %v212, %v1285
      %1289 = vrot.lane.b32.xlu0 %v1287, 64
      %v1290 = vpop.permute.xlu0 %1289
      %v1292 = vsel %vm359, %v1290, 0.0
      %1293 = vadd.xlane.f32.xlu0 %v1292
      %v1294 = vpop.xlane.xlu0 %1293
      %v1295 = vadd.f32 %v1278, %v1294
      %v1296 = vlaneseq
      %v1297 = vshrl.u32 %v1296, 7
      %v1298 = vsub.s32 3, %v1297
      %v1299 = vrot.slane %v1243, %v1298
      %1301 = vrot.lane.b32.xlu0 %v1299, 96
      %v1302 = vpop.permute.xlu0 %1301
      %v1304 = vmul.f32 %v212, %v1302
      %1306 = vrot.lane.b32.xlu0 %v1304, 32
      %v1307 = vpop.permute.xlu0 %1306
      %v1309 = vsel %vm359, %v1307, 0.0
      %1310 = vadd.xlane.f32.xlu0 %v1309
      %v1311 = vpop.xlane.xlu0 %1310
      %v1312 = vadd.f32 %v1295, %v1311
      %v1313 = vlaneseq
      %v1314 = vshrl.u32 %v1313, 7
      %v1315 = vsub.s32 4, %v1314
      %v1316 = vrot.slane %v1243, %v1315
      %v1317 = vmul.f32 %v213, %v1316
      %v1318 = vsel %vm359, %v1317, 0.0
      %1319 = vadd.xlane.f32.xlu0 %v1318
      %v1320 = vpop.xlane.xlu0 %1319
      %v1321 = vadd.f32 %v1312, %v1320
      %v1322 = vlaneseq
      %v1323 = vshrl.u32 %v1322, 7
      %v1324 = vsub.s32 5, %v1323
      %v1325 = vrot.slane %v1243, %v1324
      %1327 = vrot.lane.b32.xlu0 %v1325, 32
      %v1328 = vpop.permute.xlu0 %1327
      %v1330 = vmul.f32 %v213, %v1328
      %1332 = vrot.lane.b32.xlu0 %v1330, 96
      %v1333 = vpop.permute.xlu0 %1332
      %v1335 = vsel %vm359, %v1333, 0.0
      %1336 = vadd.xlane.f32.xlu0 %v1335
      %v1337 = vpop.xlane.xlu0 %1336
      %v1338 = vadd.f32 %v1321, %v1337
      %v1339 = vlaneseq
      %v1340 = vshrl.u32 %v1339, 7
      %v1341 = vsub.s32 6, %v1340
      %v1342 = vrot.slane %v1243, %v1341
      %1344 = vrot.lane.b32.xlu0 %v1342, 64
      %v1345 = vpop.permute.xlu0 %1344
      %v1347 = vmul.f32 %v213, %v1345
      %1349 = vrot.lane.b32.xlu0 %v1347, 64
      %v1350 = vpop.permute.xlu0 %1349
      %v1352 = vsel %vm359, %v1350, 0.0
      %1353 = vadd.xlane.f32.xlu0 %v1352
      %v1354 = vpop.xlane.xlu0 %1353
      %v1355 = vadd.f32 %v1338, %v1354
      %v1356 = vlaneseq
      %v1357 = vshrl.u32 %v1356, 7
      %v1358 = vsub.s32 7, %v1357
      %v1359 = vrot.slane %v1243, %v1358
      %1361 = vrot.lane.b32.xlu0 %v1359, 96
      %v1362 = vpop.permute.xlu0 %1361
      %v1364 = vmul.f32 %v213, %v1362
      %1366 = vrot.lane.b32.xlu0 %v1364, 32
      %v1367 = vpop.permute.xlu0 %1366
      %v1369 = vsel %vm359, %v1367, 0.0
      %1370 = vadd.xlane.f32.xlu0 %v1369
      %v1371 = vpop.xlane.xlu0 %1370
      %v1372 = vadd.f32 %v1355, %v1371
      %v1373 = vrcp.pop %v1252
      %v1374 = vmul.f32 1.0, %v1373
      %1375 = vmatprep.subr.mxu0 0.0
      %1376 = vmatpush1.msra.mxu0 0.0
      %1377 = vmatprep.subr.mxu0 0.0
      %1378 = vmatpush1.msra.mxu0 0.0
      %1379 = vmatprep.subr.mxu0 0.0
      %1380 = vmatpush1.msra.mxu0 0.0
      %1381 = vmatprep.subr.mxu0 0.0
      %1382 = vmatpush1.msra.mxu0 0.0
      %1383 = vmatprep.subr.mxu0 0.0
      %1384 = vmatpush1.msra.mxu0 0.0
      %1385 = vmatprep.subr.mxu0 0.0
      %1386 = vmatpush1.msra.mxu0 0.0
      %1387 = vmatprep.subr.mxu0 0.0
      %1388 = vmatpush1.msra.mxu0 0.0
      %1389 = vmatprep.subr.mxu0 0.0
      %1390 = vmatpush1.msra.mxu0 0.0
      %1391 = vmatprep.subr.mxu0 0.0
      %1392 = vmatpush1.msra.mxu0 0.0
      %1393 = vmatprep.subr.mxu0 0.0
      %1394 = vmatpush1.msra.mxu0 0.0
      %1395 = vmatprep.subr.mxu0 0.0
      %1396 = vmatpush1.msra.mxu0 0.0
      %1397 = vmatprep.subr.mxu0 0.0
      %1398 = vmatpush1.msra.mxu0 0.0
      %1399 = vmatprep.subr.mxu0 0.0
      %1400 = vmatpush1.msra.mxu0 0.0
      %1401 = vmatprep.subr.mxu0 0.0
      %1402 = vmatpush1.msra.mxu0 0.0
      %1403 = vmatprep.subr.mxu0 0.0
      %1404 = vmatpush1.msra.mxu0 0.0
      %1405 = vmatprep.subr.mxu0 0.0
      %1406 = vmatpush1.msra.mxu0 %v1372
      %1407 = vmatprep.subr.mxu0 0.0
      %1408 = vmatpush2.msra.mxu0 0.0
      %1409 = vmatprep.subr.mxu0 0.0
      %1410 = vmatpush2.msra.mxu0 0.0
      %1411 = vmatprep.subr.mxu0 0.0
      %1412 = vmatpush2.msra.mxu0 0.0
      %1413 = vmatprep.subr.mxu0 0.0
      %1414 = vmatpush2.msra.mxu0 0.0
      %1415 = vmatprep.subr.mxu0 0.0
      %1416 = vmatpush2.msra.mxu0 0.0
      %1417 = vmatprep.subr.mxu0 0.0
      %1418 = vmatpush2.msra.mxu0 0.0
      %1419 = vmatprep.subr.mxu0 0.0
      %1420 = vmatpush2.msra.mxu0 0.0
      %1421 = vmatprep.subr.mxu0 0.0
      %1422 = vmatpush2.msra.mxu0 0.0
      %1423 = vmatprep.subr.mxu0 0.0
      %1424 = vmatpush2.msra.mxu0 0.0
      %1425 = vmatprep.subr.mxu0 0.0
      %1426 = vmatpush2.msra.mxu0 0.0
      %1427 = vmatprep.subr.mxu0 0.0
      %1428 = vmatpush2.msra.mxu0 0.0
      %1429 = vmatprep.subr.mxu0 0.0
      %1430 = vmatpush2.msra.mxu0 0.0
      %1431 = vmatprep.subr.mxu0 0.0
      %1432 = vmatpush2.msra.mxu0 0.0
      %1433 = vmatprep.subr.mxu0 0.0
      %1434 = vmatpush2.msra.mxu0 0.0
      %1435 = vmatprep.subr.mxu0 0.0
      %1436 = vmatpush2.msra.mxu0 0.0
      %1437 = vmatprep.subr.mxu0 0.0
      %1438 = vmatpush2.msra.mxu0 0.0
      %1439 = vmatprep.mubr.f32.mxu0 0.0
      %1440 = vmatmul.mubr.f32.gmra.mxu0 %v505
      %v1441 = vpop.f32.mrf.mxu0
      %v1442 = vadd.f32 0.0, %v1441
      %v1443 = vpop.f32.mrf.mxu0
      %1444 = vdwg.mxu0
      %v1445 = vmul.f32 %v1442, %v1374
      %v1446 = vadd.f32 %v1445, %v253
      %s1447 = scalar_lea.vmem %s202, 32
      %1448 = vst.msk [vmem:[%s1447] sm:$0xff] %vm579, %v1446
      %v1449 = vsel %vm359, %v346, -inf
      %1450 = vmax.xlane.f32.xlu0 %v1449
      %v1451 = vpop.xlane.xlu0 %1450
      %v1452 = vrot.slane %v1451, 4
      %v1453 = vmax.f32 %v1451, %v1452
      %v1454 = vrot.slane %v1453, 2
      %v1455 = vmax.f32 %v1453, %v1454
      %v1456 = vrot.slane %v1455, 1
      %v1457 = vmax.f32 %v1455, %v1456
      %v1458 = vsub.f32 %v346, %v1457
      %v1459 = vmul.f32 %v1458, 1.442695
      %v1460 = vpow.pop %v1459
      %v1461 = vsel %vm359, %v1460, 0.0
      %1462 = vadd.xlane.f32.xlu0 %v1461
      %v1463 = vpop.xlane.xlu0 %1462
      %v1464 = vrot.slane %v1463, 4
      %v1465 = vadd.f32 %v1463, %v1464
      %v1466 = vrot.slane %v1465, 2
      %v1467 = vadd.f32 %v1465, %v1466
      %v1468 = vrot.slane %v1467, 1
      %v1469 = vadd.f32 %v1467, %v1468
      %v1470 = vlaneseq
      %v1471 = vshrl.u32 %v1470, 7
      %v1472 = vsub.s32 0, %v1471
      %v1473 = vrot.slane %v1460, %v1472
      %v1474 = vmul.f32 %v214, %v1473
      %v1475 = vsel %vm359, %v1474, 0.0
      %1476 = vadd.xlane.f32.xlu0 %v1475
      %v1477 = vpop.xlane.xlu0 %1476
      %v1478 = vadd.f32 %v1477, 0.0
      %v1479 = vlaneseq
      %v1480 = vshrl.u32 %v1479, 7
      %v1481 = vsub.s32 1, %v1480
      %v1482 = vrot.slane %v1460, %v1481
      %1484 = vrot.lane.b32.xlu0 %v1482, 32
      %v1485 = vpop.permute.xlu0 %1484
      %v1487 = vmul.f32 %v214, %v1485
      %1489 = vrot.lane.b32.xlu0 %v1487, 96
      %v1490 = vpop.permute.xlu0 %1489
      %v1492 = vsel %vm359, %v1490, 0.0
      %1493 = vadd.xlane.f32.xlu0 %v1492
      %v1494 = vpop.xlane.xlu0 %1493
      %v1495 = vadd.f32 %v1478, %v1494
      %v1496 = vlaneseq
      %v1497 = vshrl.u32 %v1496, 7
      %v1498 = vsub.s32 2, %v1497
      %v1499 = vrot.slane %v1460, %v1498
      %1501 = vrot.lane.b32.xlu0 %v1499, 64
      %v1502 = vpop.permute.xlu0 %1501
      %v1504 = vmul.f32 %v214, %v1502
      %1506 = vrot.lane.b32.xlu0 %v1504, 64
      %v1507 = vpop.permute.xlu0 %1506
      %v1509 = vsel %vm359, %v1507, 0.0
      %1510 = vadd.xlane.f32.xlu0 %v1509
      %v1511 = vpop.xlane.xlu0 %1510
      %v1512 = vadd.f32 %v1495, %v1511
      %v1513 = vlaneseq
      %v1514 = vshrl.u32 %v1513, 7
      %v1515 = vsub.s32 3, %v1514
      %v1516 = vrot.slane %v1460, %v1515
      %1518 = vrot.lane.b32.xlu0 %v1516, 96
      %v1519 = vpop.permute.xlu0 %1518
      %v1521 = vmul.f32 %v214, %v1519
      %1523 = vrot.lane.b32.xlu0 %v1521, 32
      %v1524 = vpop.permute.xlu0 %1523
      %v1526 = vsel %vm359, %v1524, 0.0
      %1527 = vadd.xlane.f32.xlu0 %v1526
      %v1528 = vpop.xlane.xlu0 %1527
      %v1529 = vadd.f32 %v1512, %v1528
      %v1530 = vlaneseq
      %v1531 = vshrl.u32 %v1530, 7
      %v1532 = vsub.s32 4, %v1531
      %v1533 = vrot.slane %v1460, %v1532
      %v1534 = vmul.f32 %v215, %v1533
      %v1535 = vsel %vm359, %v1534, 0.0
      %1536 = vadd.xlane.f32.xlu0 %v1535
      %v1537 = vpop.xlane.xlu0 %1536
      %v1538 = vadd.f32 %v1529, %v1537
      %v1539 = vlaneseq
      %v1540 = vshrl.u32 %v1539, 7
      %v1541 = vsub.s32 5, %v1540
      %v1542 = vrot.slane %v1460, %v1541
      %1544 = vrot.lane.b32.xlu0 %v1542, 32
      %v1545 = vpop.permute.xlu0 %1544
      %v1547 = vmul.f32 %v215, %v1545
      %1549 = vrot.lane.b32.xlu0 %v1547, 96
      %v1550 = vpop.permute.xlu0 %1549
      %v1552 = vsel %vm359, %v1550, 0.0
      %1553 = vadd.xlane.f32.xlu0 %v1552
      %v1554 = vpop.xlane.xlu0 %1553
      %v1555 = vadd.f32 %v1538, %v1554
      %v1556 = vlaneseq
      %v1557 = vshrl.u32 %v1556, 7
      %v1558 = vsub.s32 6, %v1557
      %v1559 = vrot.slane %v1460, %v1558
      %1561 = vrot.lane.b32.xlu0 %v1559, 64
      %v1562 = vpop.permute.xlu0 %1561
      %v1564 = vmul.f32 %v215, %v1562
      %1566 = vrot.lane.b32.xlu0 %v1564, 64
      %v1567 = vpop.permute.xlu0 %1566
      %v1569 = vsel %vm359, %v1567, 0.0
      %1570 = vadd.xlane.f32.xlu0 %v1569
      %v1571 = vpop.xlane.xlu0 %1570
      %v1572 = vadd.f32 %v1555, %v1571
      %v1573 = vlaneseq
      %v1574 = vshrl.u32 %v1573, 7
      %v1575 = vsub.s32 7, %v1574
      %v1576 = vrot.slane %v1460, %v1575
      %1578 = vrot.lane.b32.xlu0 %v1576, 96
      %v1579 = vpop.permute.xlu0 %1578
      %v1581 = vmul.f32 %v215, %v1579
      %1583 = vrot.lane.b32.xlu0 %v1581, 32
      %v1584 = vpop.permute.xlu0 %1583
      %v1586 = vsel %vm359, %v1584, 0.0
      %1587 = vadd.xlane.f32.xlu0 %v1586
      %v1588 = vpop.xlane.xlu0 %1587
      %v1589 = vadd.f32 %v1572, %v1588
      %v1590 = vrcp.pop %v1469
      %v1591 = vmul.f32 1.0, %v1590
      %1592 = vmatprep.subr.mxu0 0.0
      %1593 = vmatpush1.msra.mxu0 0.0
      %1594 = vmatprep.subr.mxu0 0.0
      %1595 = vmatpush1.msra.mxu0 0.0
      %1596 = vmatprep.subr.mxu0 0.0
      %1597 = vmatpush1.msra.mxu0 0.0
      %1598 = vmatprep.subr.mxu0 0.0
      %1599 = vmatpush1.msra.mxu0 0.0
      %1600 = vmatprep.subr.mxu0 0.0
      %1601 = vmatpush1.msra.mxu0 0.0
      %1602 = vmatprep.subr.mxu0 0.0
      %1603 = vmatpush1.msra.mxu0 0.0
      %1604 = vmatprep.subr.mxu0 0.0
      %1605 = vmatpush1.msra.mxu0 0.0
      %1606 = vmatprep.subr.mxu0 0.0
      %1607 = vmatpush1.msra.mxu0 0.0
      %1608 = vmatprep.subr.mxu0 0.0
      %1609 = vmatpush1.msra.mxu0 0.0
      %1610 = vmatprep.subr.mxu0 0.0
      %1611 = vmatpush1.msra.mxu0 0.0
      %1612 = vmatprep.subr.mxu0 0.0
      %1613 = vmatpush1.msra.mxu0 0.0
      %1614 = vmatprep.subr.mxu0 0.0
      %1615 = vmatpush1.msra.mxu0 0.0
      %1616 = vmatprep.subr.mxu0 0.0
      %1617 = vmatpush1.msra.mxu0 0.0
      %1618 = vmatprep.subr.mxu0 0.0
      %1619 = vmatpush1.msra.mxu0 0.0
      %1620 = vmatprep.subr.mxu0 0.0
      %1621 = vmatpush1.msra.mxu0 0.0
      %1622 = vmatprep.subr.mxu0 0.0
      %1623 = vmatpush1.msra.mxu0 %v1589
      %1624 = vmatprep.subr.mxu0 0.0
      %1625 = vmatpush2.msra.mxu0 0.0
      %1626 = vmatprep.subr.mxu0 0.0
      %1627 = vmatpush2.msra.mxu0 0.0
      %1628 = vmatprep.subr.mxu0 0.0
      %1629 = vmatpush2.msra.mxu0 0.0
      %1630 = vmatprep.subr.mxu0 0.0
      %1631 = vmatpush2.msra.mxu0 0.0
      %1632 = vmatprep.subr.mxu0 0.0
      %1633 = vmatpush2.msra.mxu0 0.0
      %1634 = vmatprep.subr.mxu0 0.0
      %1635 = vmatpush2.msra.mxu0 0.0
      %1636 = vmatprep.subr.mxu0 0.0
      %1637 = vmatpush2.msra.mxu0 0.0
      %1638 = vmatprep.subr.mxu0 0.0
      %1639 = vmatpush2.msra.mxu0 0.0
      %1640 = vmatprep.subr.mxu0 0.0
      %1641 = vmatpush2.msra.mxu0 0.0
      %1642 = vmatprep.subr.mxu0 0.0
      %1643 = vmatpush2.msra.mxu0 0.0
      %1644 = vmatprep.subr.mxu0 0.0
      %1645 = vmatpush2.msra.mxu0 0.0
      %1646 = vmatprep.subr.mxu0 0.0
      %1647 = vmatpush2.msra.mxu0 0.0
      %1648 = vmatprep.subr.mxu0 0.0
      %1649 = vmatpush2.msra.mxu0 0.0
      %1650 = vmatprep.subr.mxu0 0.0
      %1651 = vmatpush2.msra.mxu0 0.0
      %1652 = vmatprep.subr.mxu0 0.0
      %1653 = vmatpush2.msra.mxu0 0.0
      %1654 = vmatprep.subr.mxu0 0.0
      %1655 = vmatpush2.msra.mxu0 0.0
      %1656 = vmatprep.mubr.f32.mxu0 0.0
      %1657 = vmatmul.mubr.f32.gmra.mxu0 %v505
      %v1658 = vpop.f32.mrf.mxu0
      %v1659 = vadd.f32 0.0, %v1658
      %v1660 = vpop.f32.mrf.mxu0
      %1661 = vdwg.mxu0
      %v1662 = vmul.f32 %v1659, %v1591
      %v1663 = vadd.f32 %v1662, %v253
      %s1664 = scalar_lea.vmem %s202, 40
      %1665 = vst.msk [vmem:[%s1664] sm:$0xff] %vm579, %v1663
      %v1666 = vsel %vm359, %v351, -inf
      %1667 = vmax.xlane.f32.xlu0 %v1666
      %v1668 = vpop.xlane.xlu0 %1667
      %v1669 = vrot.slane %v1668, 4
      %v1670 = vmax.f32 %v1668, %v1669
      %v1671 = vrot.slane %v1670, 2
      %v1672 = vmax.f32 %v1670, %v1671
      %v1673 = vrot.slane %v1672, 1
      %v1674 = vmax.f32 %v1672, %v1673
      %v1675 = vsub.f32 %v351, %v1674
      %v1676 = vmul.f32 %v1675, 1.442695
      %v1677 = vpow.pop %v1676
      %v1678 = vsel %vm359, %v1677, 0.0
      %1679 = vadd.xlane.f32.xlu0 %v1678
      %v1680 = vpop.xlane.xlu0 %1679
      %v1681 = vrot.slane %v1680, 4
      %v1682 = vadd.f32 %v1680, %v1681
      %v1683 = vrot.slane %v1682, 2
      %v1684 = vadd.f32 %v1682, %v1683
      %v1685 = vrot.slane %v1684, 1
      %v1686 = vadd.f32 %v1684, %v1685
      %v1687 = vlaneseq
      %v1688 = vshrl.u32 %v1687, 7
      %v1689 = vsub.s32 0, %v1688
      %v1690 = vrot.slane %v1677, %v1689
      %v1691 = vmul.f32 %v216, %v1690
      %v1692 = vsel %vm359, %v1691, 0.0
      %1693 = vadd.xlane.f32.xlu0 %v1692
      %v1694 = vpop.xlane.xlu0 %1693
      %v1695 = vadd.f32 %v1694, 0.0
      %v1696 = vlaneseq
      %v1697 = vshrl.u32 %v1696, 7
      %v1698 = vsub.s32 1, %v1697
      %v1699 = vrot.slane %v1677, %v1698
      %1701 = vrot.lane.b32.xlu0 %v1699, 32
      %v1702 = vpop.permute.xlu0 %1701
      %v1704 = vmul.f32 %v216, %v1702
      %1706 = vrot.lane.b32.xlu0 %v1704, 96
      %v1707 = vpop.permute.xlu0 %1706
      %v1709 = vsel %vm359, %v1707, 0.0
      %1710 = vadd.xlane.f32.xlu0 %v1709
      %v1711 = vpop.xlane.xlu0 %1710
      %v1712 = vadd.f32 %v1695, %v1711
      %v1713 = vlaneseq
      %v1714 = vshrl.u32 %v1713, 7
      %v1715 = vsub.s32 2, %v1714
      %v1716 = vrot.slane %v1677, %v1715
      %1718 = vrot.lane.b32.xlu0 %v1716, 64
      %v1719 = vpop.permute.xlu0 %1718
      %v1721 = vmul.f32 %v216, %v1719
      %1723 = vrot.lane.b32.xlu0 %v1721, 64
      %v1724 = vpop.permute.xlu0 %1723
      %v1726 = vsel %vm359, %v1724, 0.0
      %1727 = vadd.xlane.f32.xlu0 %v1726
      %v1728 = vpop.xlane.xlu0 %1727
      %v1729 = vadd.f32 %v1712, %v1728
      %v1730 = vlaneseq
      %v1731 = vshrl.u32 %v1730, 7
      %v1732 = vsub.s32 3, %v1731
      %v1733 = vrot.slane %v1677, %v1732
      %1735 = vrot.lane.b32.xlu0 %v1733, 96
      %v1736 = vpop.permute.xlu0 %1735
      %v1738 = vmul.f32 %v216, %v1736
      %1740 = vrot.lane.b32.xlu0 %v1738, 32
      %v1741 = vpop.permute.xlu0 %1740
      %v1743 = vsel %vm359, %v1741, 0.0
      %1744 = vadd.xlane.f32.xlu0 %v1743
      %v1745 = vpop.xlane.xlu0 %1744
      %v1746 = vadd.f32 %v1729, %v1745
      %v1747 = vlaneseq
      %v1748 = vshrl.u32 %v1747, 7
      %v1749 = vsub.s32 4, %v1748
      %v1750 = vrot.slane %v1677, %v1749
      %v1751 = vmul.f32 %v217, %v1750
      %v1752 = vsel %vm359, %v1751, 0.0
      %1753 = vadd.xlane.f32.xlu0 %v1752
      %v1754 = vpop.xlane.xlu0 %1753
      %v1755 = vadd.f32 %v1746, %v1754
      %v1756 = vlaneseq
      %v1757 = vshrl.u32 %v1756, 7
      %v1758 = vsub.s32 5, %v1757
      %v1759 = vrot.slane %v1677, %v1758
      %1761 = vrot.lane.b32.xlu0 %v1759, 32
      %v1762 = vpop.permute.xlu0 %1761
      %v1764 = vmul.f32 %v217, %v1762
      %1766 = vrot.lane.b32.xlu0 %v1764, 96
      %v1767 = vpop.permute.xlu0 %1766
      %v1769 = vsel %vm359, %v1767, 0.0
      %1770 = vadd.xlane.f32.xlu0 %v1769
      %v1771 = vpop.xlane.xlu0 %1770
      %v1772 = vadd.f32 %v1755, %v1771
      %v1773 = vlaneseq
      %v1774 = vshrl.u32 %v1773, 7
      %v1775 = vsub.s32 6, %v1774
      %v1776 = vrot.slane %v1677, %v1775
      %1778 = vrot.lane.b32.xlu0 %v1776, 64
      %v1779 = vpop.permute.xlu0 %1778
      %v1781 = vmul.f32 %v217, %v1779
      %1783 = vrot.lane.b32.xlu0 %v1781, 64
      %v1784 = vpop.permute.xlu0 %1783
      %v1786 = vsel %vm359, %v1784, 0.0
      %1787 = vadd.xlane.f32.xlu0 %v1786
      %v1788 = vpop.xlane.xlu0 %1787
      %v1789 = vadd.f32 %v1772, %v1788
      %v1790 = vlaneseq
      %v1791 = vshrl.u32 %v1790, 7
      %v1792 = vsub.s32 7, %v1791
      %v1793 = vrot.slane %v1677, %v1792
      %1795 = vrot.lane.b32.xlu0 %v1793, 96
      %v1796 = vpop.permute.xlu0 %1795
      %v1798 = vmul.f32 %v217, %v1796
      %1800 = vrot.lane.b32.xlu0 %v1798, 32
      %v1801 = vpop.permute.xlu0 %1800
      %v1803 = vsel %vm359, %v1801, 0.0
      %1804 = vadd.xlane.f32.xlu0 %v1803
      %v1805 = vpop.xlane.xlu0 %1804
      %v1806 = vadd.f32 %v1789, %v1805
      %v1807 = vrcp.pop %v1686
      %v1808 = vmul.f32 1.0, %v1807
      %1809 = vmatprep.subr.mxu0 0.0
      %1810 = vmatpush1.msra.mxu0 0.0
      %1811 = vmatprep.subr.mxu0 0.0
      %1812 = vmatpush1.msra.mxu0 0.0
      %1813 = vmatprep.subr.mxu0 0.0
      %1814 = vmatpush1.msra.mxu0 0.0
      %1815 = vmatprep.subr.mxu0 0.0
      %1816 = vmatpush1.msra.mxu0 0.0
      %1817 = vmatprep.subr.mxu0 0.0
      %1818 = vmatpush1.msra.mxu0 0.0
      %1819 = vmatprep.subr.mxu0 0.0
      %1820 = vmatpush1.msra.mxu0 0.0
      %1821 = vmatprep.subr.mxu0 0.0
      %1822 = vmatpush1.msra.mxu0 0.0
      %1823 = vmatprep.subr.mxu0 0.0
      %1824 = vmatpush1.msra.mxu0 0.0
      %1825 = vmatprep.subr.mxu0 0.0
      %1826 = vmatpush1.msra.mxu0 0.0
      %1827 = vmatprep.subr.mxu0 0.0
      %1828 = vmatpush1.msra.mxu0 0.0
      %1829 = vmatprep.subr.mxu0 0.0
      %1830 = vmatpush1.msra.mxu0 0.0
      %1831 = vmatprep.subr.mxu0 0.0
      %1832 = vmatpush1.msra.mxu0 0.0
      %1833 = vmatprep.subr.mxu0 0.0
      %1834 = vmatpush1.msra.mxu0 0.0
      %1835 = vmatprep.subr.mxu0 0.0
      %1836 = vmatpush1.msra.mxu0 0.0
      %1837 = vmatprep.subr.mxu0 0.0
      %1838 = vmatpush1.msra.mxu0 0.0
      %1839 = vmatprep.subr.mxu0 0.0
      %1840 = vmatpush1.msra.mxu0 %v1806
      %1841 = vmatprep.subr.mxu0 0.0
      %1842 = vmatpush2.msra.mxu0 0.0
      %1843 = vmatprep.subr.mxu0 0.0
      %1844 = vmatpush2.msra.mxu0 0.0
      %1845 = vmatprep.subr.mxu0 0.0
      %1846 = vmatpush2.msra.mxu0 0.0
      %1847 = vmatprep.subr.mxu0 0.0
      %1848 = vmatpush2.msra.mxu0 0.0
      %1849 = vmatprep.subr.mxu0 0.0
      %1850 = vmatpush2.msra.mxu0 0.0
      %1851 = vmatprep.subr.mxu0 0.0
      %1852 = vmatpush2.msra.mxu0 0.0
      %1853 = vmatprep.subr.mxu0 0.0
      %1854 = vmatpush2.msra.mxu0 0.0
      %1855 = vmatprep.subr.mxu0 0.0
      %1856 = vmatpush2.msra.mxu0 0.0
      %1857 = vmatprep.subr.mxu0 0.0
      %1858 = vmatpush2.msra.mxu0 0.0
      %1859 = vmatprep.subr.mxu0 0.0
      %1860 = vmatpush2.msra.mxu0 0.0
      %1861 = vmatprep.subr.mxu0 0.0
      %1862 = vmatpush2.msra.mxu0 0.0
      %1863 = vmatprep.subr.mxu0 0.0
      %1864 = vmatpush2.msra.mxu0 0.0
      %1865 = vmatprep.subr.mxu0 0.0
      %1866 = vmatpush2.msra.mxu0 0.0
      %1867 = vmatprep.subr.mxu0 0.0
      %1868 = vmatpush2.msra.mxu0 0.0
      %1869 = vmatprep.subr.mxu0 0.0
      %1870 = vmatpush2.msra.mxu0 0.0
      %1871 = vmatprep.subr.mxu0 0.0
      %1872 = vmatpush2.msra.mxu0 0.0
      %1873 = vmatprep.mubr.f32.mxu0 0.0
      %1874 = vmatmul.mubr.f32.gmra.mxu0 %v505
      %v1875 = vpop.f32.mrf.mxu0
      %v1876 = vadd.f32 0.0, %v1875
      %v1877 = vpop.f32.mrf.mxu0
      %1878 = vdwg.mxu0
      %v1879 = vmul.f32 %v1876, %v1808
      %v1880 = vadd.f32 %v1879, %v253
      %s1881 = scalar_lea.vmem %s202, 48
      %1882 = vst.msk [vmem:[%s1881] sm:$0xff] %vm579, %v1880
      %v1883 = vsel %vm359, %v356, -inf
      %1884 = vmax.xlane.f32.xlu0 %v1883
      %v1885 = vpop.xlane.xlu0 %1884
      %v1886 = vrot.slane %v1885, 4
      %v1887 = vmax.f32 %v1885, %v1886
      %v1888 = vrot.slane %v1887, 2
      %v1889 = vmax.f32 %v1887, %v1888
      %v1890 = vrot.slane %v1889, 1
      %v1891 = vmax.f32 %v1889, %v1890
      %v1892 = vsub.f32 %v356, %v1891
      %v1893 = vmul.f32 %v1892, 1.442695
      %v1894 = vpow.pop %v1893
      %v1895 = vsel %vm359, %v1894, 0.0
      %1896 = vadd.xlane.f32.xlu0 %v1895
      %v1897 = vpop.xlane.xlu0 %1896
      %v1898 = vrot.slane %v1897, 4
      %v1899 = vadd.f32 %v1897, %v1898
      %v1900 = vrot.slane %v1899, 2
      %v1901 = vadd.f32 %v1899, %v1900
      %v1902 = vrot.slane %v1901, 1
      %v1903 = vadd.f32 %v1901, %v1902
      %v1904 = vlaneseq
      %v1905 = vshrl.u32 %v1904, 7
      %v1906 = vsub.s32 0, %v1905
      %v1907 = vrot.slane %v1894, %v1906
      %v1908 = vmul.f32 %v218, %v1907
      %v1909 = vsel %vm359, %v1908, 0.0
      %1910 = vadd.xlane.f32.xlu0 %v1909
      %v1911 = vpop.xlane.xlu0 %1910
      %v1912 = vadd.f32 %v1911, 0.0
      %v1913 = vlaneseq
      %v1914 = vshrl.u32 %v1913, 7
      %v1915 = vsub.s32 1, %v1914
      %v1916 = vrot.slane %v1894, %v1915
      %1918 = vrot.lane.b32.xlu0 %v1916, 32
      %v1919 = vpop.permute.xlu0 %1918
      %v1921 = vmul.f32 %v218, %v1919
      %1923 = vrot.lane.b32.xlu0 %v1921, 96
      %v1924 = vpop.permute.xlu0 %1923
      %v1926 = vsel %vm359, %v1924, 0.0
      %1927 = vadd.xlane.f32.xlu0 %v1926
      %v1928 = vpop.xlane.xlu0 %1927
      %v1929 = vadd.f32 %v1912, %v1928
      %v1930 = vlaneseq
      %v1931 = vshrl.u32 %v1930, 7
      %v1932 = vsub.s32 2, %v1931
      %v1933 = vrot.slane %v1894, %v1932
      %1935 = vrot.lane.b32.xlu0 %v1933, 64
      %v1936 = vpop.permute.xlu0 %1935
      %v1938 = vmul.f32 %v218, %v1936
      %1940 = vrot.lane.b32.xlu0 %v1938, 64
      %v1941 = vpop.permute.xlu0 %1940
      %v1943 = vsel %vm359, %v1941, 0.0
      %1944 = vadd.xlane.f32.xlu0 %v1943
      %v1945 = vpop.xlane.xlu0 %1944
      %v1946 = vadd.f32 %v1929, %v1945
      %v1947 = vlaneseq
      %v1948 = vshrl.u32 %v1947, 7
      %v1949 = vsub.s32 3, %v1948
      %v1950 = vrot.slane %v1894, %v1949
      %1952 = vrot.lane.b32.xlu0 %v1950, 96
      %v1953 = vpop.permute.xlu0 %1952
      %v1955 = vmul.f32 %v218, %v1953
      %1957 = vrot.lane.b32.xlu0 %v1955, 32
      %v1958 = vpop.permute.xlu0 %1957
      %v1960 = vsel %vm359, %v1958, 0.0
      %1961 = vadd.xlane.f32.xlu0 %v1960
      %v1962 = vpop.xlane.xlu0 %1961
      %v1963 = vadd.f32 %v1946, %v1962
      %v1964 = vlaneseq
      %v1965 = vshrl.u32 %v1964, 7
      %v1966 = vsub.s32 4, %v1965
      %v1967 = vrot.slane %v1894, %v1966
      %v1968 = vmul.f32 %v219, %v1967
      %v1969 = vsel %vm359, %v1968, 0.0
      %1970 = vadd.xlane.f32.xlu0 %v1969
      %v1971 = vpop.xlane.xlu0 %1970
      %v1972 = vadd.f32 %v1963, %v1971
      %v1973 = vlaneseq
      %v1974 = vshrl.u32 %v1973, 7
      %v1975 = vsub.s32 5, %v1974
      %v1976 = vrot.slane %v1894, %v1975
      %1978 = vrot.lane.b32.xlu0 %v1976, 32
      %v1979 = vpop.permute.xlu0 %1978
      %v1981 = vmul.f32 %v219, %v1979
      %1983 = vrot.lane.b32.xlu0 %v1981, 96
      %v1984 = vpop.permute.xlu0 %1983
      %v1986 = vsel %vm359, %v1984, 0.0
      %1987 = vadd.xlane.f32.xlu0 %v1986
      %v1988 = vpop.xlane.xlu0 %1987
      %v1989 = vadd.f32 %v1972, %v1988
      %v1990 = vlaneseq
      %v1991 = vshrl.u32 %v1990, 7
      %v1992 = vsub.s32 6, %v1991
      %v1993 = vrot.slane %v1894, %v1992
      %1995 = vrot.lane.b32.xlu0 %v1993, 64
      %v1996 = vpop.permute.xlu0 %1995
      %v1998 = vmul.f32 %v219, %v1996
      %2000 = vrot.lane.b32.xlu0 %v1998, 64
      %v2001 = vpop.permute.xlu0 %2000
      %v2003 = vsel %vm359, %v2001, 0.0
      %2004 = vadd.xlane.f32.xlu0 %v2003
      %v2005 = vpop.xlane.xlu0 %2004
      %v2006 = vadd.f32 %v1989, %v2005
      %v2007 = vlaneseq
      %v2008 = vshrl.u32 %v2007, 7
      %v2009 = vsub.s32 7, %v2008
      %v2010 = vrot.slane %v1894, %v2009
      %2012 = vrot.lane.b32.xlu0 %v2010, 96
      %v2013 = vpop.permute.xlu0 %2012
      %v2015 = vmul.f32 %v219, %v2013
      %2017 = vrot.lane.b32.xlu0 %v2015, 32
      %v2018 = vpop.permute.xlu0 %2017
      %v2020 = vsel %vm359, %v2018, 0.0
      %2021 = vadd.xlane.f32.xlu0 %v2020
      %v2022 = vpop.xlane.xlu0 %2021
      %v2023 = vadd.f32 %v2006, %v2022
      %v2024 = vrcp.pop %v1903
      %v2025 = vmul.f32 1.0, %v2024
      %2026 = vmatprep.subr.mxu0 0.0
      %2027 = vmatpush1.msra.mxu0 0.0
      %2028 = vmatprep.subr.mxu0 0.0
      %2029 = vmatpush1.msra.mxu0 0.0
      %2030 = vmatprep.subr.mxu0 0.0
      %2031 = vmatpush1.msra.mxu0 0.0
      %2032 = vmatprep.subr.mxu0 0.0
      %2033 = vmatpush1.msra.mxu0 0.0
      %2034 = vmatprep.subr.mxu0 0.0
      %2035 = vmatpush1.msra.mxu0 0.0
      %2036 = vmatprep.subr.mxu0 0.0
      %2037 = vmatpush1.msra.mxu0 0.0
      %2038 = vmatprep.subr.mxu0 0.0
      %2039 = vmatpush1.msra.mxu0 0.0
      %2040 = vmatprep.subr.mxu0 0.0
      %2041 = vmatpush1.msra.mxu0 0.0
      %2042 = vmatprep.subr.mxu0 0.0
      %2043 = vmatpush1.msra.mxu0 0.0
      %2044 = vmatprep.subr.mxu0 0.0
      %2045 = vmatpush1.msra.mxu0 0.0
      %2046 = vmatprep.subr.mxu0 0.0
      %2047 = vmatpush1.msra.mxu0 0.0
      %2048 = vmatprep.subr.mxu0 0.0
      %2049 = vmatpush1.msra.mxu0 0.0
      %2050 = vmatprep.subr.mxu0 0.0
      %2051 = vmatpush1.msra.mxu0 0.0
      %2052 = vmatprep.subr.mxu0 0.0
      %2053 = vmatpush1.msra.mxu0 0.0
      %2054 = vmatprep.subr.mxu0 0.0
      %2055 = vmatpush1.msra.mxu0 0.0
      %2056 = vmatprep.subr.mxu0 0.0
      %2057 = vmatpush1.msra.mxu0 %v2023
      %2058 = vmatprep.subr.mxu0 0.0
      %2059 = vmatpush2.msra.mxu0 0.0
      %2060 = vmatprep.subr.mxu0 0.0
      %2061 = vmatpush2.msra.mxu0 0.0
      %2062 = vmatprep.subr.mxu0 0.0
      %2063 = vmatpush2.msra.mxu0 0.0
      %2064 = vmatprep.subr.mxu0 0.0
      %2065 = vmatpush2.msra.mxu0 0.0
      %2066 = vmatprep.subr.mxu0 0.0
      %2067 = vmatpush2.msra.mxu0 0.0
      %2068 = vmatprep.subr.mxu0 0.0
      %2069 = vmatpush2.msra.mxu0 0.0
      %2070 = vmatprep.subr.mxu0 0.0
      %2071 = vmatpush2.msra.mxu0 0.0
      %2072 = vmatprep.subr.mxu0 0.0
      %2073 = vmatpush2.msra.mxu0 0.0
      %2074 = vmatprep.subr.mxu0 0.0
      %2075 = vmatpush2.msra.mxu0 0.0
      %2076 = vmatprep.subr.mxu0 0.0
      %2077 = vmatpush2.msra.mxu0 0.0
      %2078 = vmatprep.subr.mxu0 0.0
      %2079 = vmatpush2.msra.mxu0 0.0
      %2080 = vmatprep.subr.mxu0 0.0
      %2081 = vmatpush2.msra.mxu0 0.0
      %2082 = vmatprep.subr.mxu0 0.0
      %2083 = vmatpush2.msra.mxu0 0.0
      %2084 = vmatprep.subr.mxu0 0.0
      %2085 = vmatpush2.msra.mxu0 0.0
      %2086 = vmatprep.subr.mxu0 0.0
      %2087 = vmatpush2.msra.mxu0 0.0
      %2088 = vmatprep.subr.mxu0 0.0
      %2089 = vmatpush2.msra.mxu0 0.0
      %2090 = vmatprep.mubr.f32.mxu0 0.0
      %2091 = vmatmul.mubr.f32.gmra.mxu0 %v505
      %v2092 = vpop.f32.mrf.mxu0
      %v2093 = vadd.f32 0.0, %v2092
      %v2094 = vpop.f32.mrf.mxu0
      %2095 = vdwg.mxu0
      %v2096 = vmul.f32 %v2093, %v2025
      %v2097 = vadd.f32 %v2096, %v253
      %s2098 = scalar_lea.vmem %s202, 56
      %2099 = vst.msk [vmem:[%s2098] sm:$0xff] %vm579, %v2097
      %s2100 = smul.u32 8, %s15
      %p2101 = scmp.lt.s32.totalorder %s2100, 15
      %s2102 = scalar_select %p2101, %s2100, 15
      %s2103 = smul.addr %s2102, 8
      %s2104 = scalar_lea.vmem %s4, %s2103
      // Predicated region
      $region37: #{tpu_custom_call.1} parent=35 // pred_check
        %p2105 = pneg %p122
      $region38: #{tpu_custom_call.1} parent=35 // pred_check_branch
        %2107 = sbr.rel (%p2105) target = $region40
      $region39: #{tpu_custom_call.1} parent=35 // pred_region
        %s2108 = smul.u32 8, %s15
      $region40: #{tpu_custom_call.1} parent=35 // pred_fallthru
        _
    $region36: #{tpu_custom_call.1} parent=5 // pred_fallthru
      _
    %p2109 = scmp.le.s32.totalorder 2, %s10
    // Predicated region
    $region41: #{tpu_custom_call.1} parent=5 // pred_check
      %p2110 = pneg %p2109
    $region42: #{tpu_custom_call.1} parent=5 // pred_check_branch
      %2112 = sbr.rel (%p2110) target = $region44
    $region43: #{tpu_custom_call.1} parent=5 // pred_region
      %s2113 = ssub.s32 %s10, 2
      // Predicated region
      $region45: #{tpu_custom_call.1} parent=43 // pred_check
        %p2114 = pneg %p128
      $region46: #{tpu_custom_call.1} parent=43 // pred_check_branch
        %2116 = sbr.rel (%p2114) target = $region48
      $region47: #{tpu_custom_call.1} parent=43 // pred_region
        %s2117 = smul.u32 8, %s16
        %p2118 = scmp.lt.s32.totalorder %s2117, 15
        %s2119 = scalar_select %p2118, %s2117, 15
        %s2120 = smul.addr %s2119, 8
        %s2121 = scalar_lea.vmem %s4, %s2120
      $region48: #{tpu_custom_call.1} parent=43 // pred_fallthru
        _
    $region44: #{tpu_custom_call.1} parent=5 // pred_fallthru
      _
  $region6: #{tpu_custom_call.1} parent=0 // loop_footer
    %s14 = sadd.s32 1, %s10
  $region7: #{tpu_custom_call.1} parent=0 // loop_footer_branch
    %9 = sbr.rel target = $region3
  $region8: #{tpu_custom_call.1} parent=0 // loop_exit
    _

</llo_original>
